<compile_context>
chip_gen: v6e
topology: v6e:2x2x1
jax: 0.10.0
libtpu: 0.0.40
codegen_flags: <defaults>
</compile_context>

<pallas_src>
import math

import jax
import jax.numpy as jnp
from jax import lax
from jax.experimental import pallas as pl
from jax.experimental.pallas import tpu as pltpu

# ---------------- model hyperparameters (small, consistent with the module) ---------------
B = 2            # batch_size
T = 8            # input sequence length
VOCAB = 20       # len(vocab.stoi)
E = 32           # embed_size
H = 32           # hidden_size
O = 32           # output_size (== E here, so both share the 32-lane misc slab)
NUM_LAYERS = 2   # num_layers (bidirectional GRU)

TB = T * B
G = 6 * H        # gate lanes per combined (fwd+bwd) step: [r_f r_b z_f z_b n_f n_b]

# ---- w_slab row offsets (lane width = 6H = 192) ----
W_STK0 = 0                      # (2E, 6H)   stacked input projection, layer 0
W_HH0 = W_STK0 + 2 * E          # (2H, 6H)   block-diagonal recurrent weights, layer 0
W_STK1 = W_HH0 + 2 * H          # (4H, 6H)   stacked input projection, layer 1
W_HH1 = W_STK1 + 4 * H          # (2H, 6H)
B_GI0 = W_HH1 + 2 * H           # (1, 6H)    b_ih (+ folded r/z part of b_hh), layer 0
B_GI1 = B_GI0 + 1
B_HN0 = B_GI1 + 1               # (1, 2H)    n-gate part of b_hh, layer 0 (cols 0:2H)
B_HN1 = B_HN0 + 1
W_ROWS = B_HN1 + 1              # 324

# ---- p_slab row offsets (lane width = E = O = 32) ----
P_EMB = 0                       # (VOCAB+1, E)
P_OW = 24                       # (2H, O)    output_layer weight (transposed)
P_AW = P_OW + 2 * H             # (2H, 1)    attention weight (col 0)
P_R = P_AW + 2 * H              # (TB, TB)   time-block reversal permutation (cols 0:TB)
P_S = P_R + TB                  # (B, TB)    per-batch row-selection matrix (cols 0:TB)
P_OB = P_S + B                  # (1, O)     output bias
P_AB = P_OB + 1                 # (1, 1)     attention bias (col 0)
P_ROWS = P_AB + 1               # 172


# ------------------------------- fused Pallas kernel ---------------------------------------
def fused_def2vec_kernel(ids_ref, w_ref, p_ref, out_ref):
    f32 = jnp.float32
    H2, H4 = 2 * H, 4 * H

    # ---- embedding via one-hot matmul: rows 0:TB time-major, rows TB:2TB time-reversed ----
    ids = ids_ref[...]                                                  # (2TB, 1) int32
    iota = lax.broadcasted_iota(jnp.int32, (2 * TB, VOCAB + 1), 1)
    onehot = (iota == ids).astype(f32)                                  # (2TB, V+1)
    emb = p_ref[P_EMB:P_EMB + VOCAB + 1, :]                             # (V+1, E)
    x_all = jnp.dot(onehot, emb, preferred_element_type=f32)            # (2TB, E)
    xx = jnp.concatenate([x_all[0:TB, :], x_all[TB:2 * TB, :]], axis=1)  # (TB, 2E) = [x | x_rev]

    R_mat = p_ref[P_R:P_R + TB, 0:TB]                                   # (TB, TB) time reversal

    def bidir_layer(xx_in, w_stk, w_hh, b_gi, b_hn):
        # Hoisted input projection for BOTH directions: one MXU push per layer.
        gi_all = jnp.dot(xx_in, w_stk, preferred_element_type=f32) + b_gi   # (TB, 6H)
        bhn = jnp.broadcast_to(b_hn, (B, H2))        # hoisted n-gate b_hh broadcast
        h = jnp.zeros((B, H2), f32)                  # h_cat = [h_f | h_b]
        hs = []
        for s in range(T):                           # fully unrolled (T=8 static)
            gi = gi_all[s * B:(s + 1) * B, :]        # (B, 6H) contiguous slice
            gh = jnp.dot(h, w_hh, preferred_element_type=f32)   # ONE push per step
            rz = jax.nn.sigmoid(gi[:, :H4] + gh[:, :H4])        # [r_f r_b z_f z_b], 128 lanes
            r = rz[:, :H2]                                      # [r_f | r_b]
            z = rz[:, H2:]                                      # [z_f | z_b]
            n = jnp.tanh(gi[:, H4:] + r * (gh[:, H4:] + bhn))   # [n_f | n_b]
            h = (1.0 - z) * n + z * h
            hs.append(h)
        # (TB, 2H) step-major: row s*B+b = [h_f(t=s) | h_b(t=T-1-s)]
        return jnp.concatenate(hs, axis=0)

    Hs0 = bidir_layer(xx,
                      w_ref[W_STK0:W_STK0 + 2 * E, :],
                      w_ref[W_HH0:W_HH0 + H2, :],
                      w_ref[B_GI0:B_GI0 + 1, :],
                      w_ref[B_HN0:B_HN0 + 1, 0:H2])
    Hs0r = jnp.dot(R_mat, Hs0, preferred_element_type=f32)      # time-block reversal
    # next-layer input [y | y_rev]; y (time-major) = [Hs0[:, :H] | Hs0r[:, H:]]
    xx1 = jnp.concatenate([Hs0[:, :H], Hs0r[:, H:], Hs0r[:, :H], Hs0[:, H:]], axis=1)  # (TB, 4H)

    Hs1 = bidir_layer(xx1,
                      w_ref[W_STK1:W_STK1 + H4, :],
                      w_ref[W_HH1:W_HH1 + H2, :],
                      w_ref[B_GI1:B_GI1 + 1, :],
                      w_ref[B_HN1:B_HN1 + 1, 0:H2])
    Hs1r = jnp.dot(R_mat, Hs1, preferred_element_type=f32)
    y2 = jnp.concatenate([Hs1[:, :H], Hs1r[:, H:]], axis=1)     # (TB, 2H), row = (t, b)

    # ---- batched attention pooling + output linear (no per-row loops / stores) ----
    aw = p_ref[P_AW:P_AW + H2, 0:1]                             # (2H, 1)
    ab = p_ref[P_AB:P_AB + 1, 0:1]                              # (1, 1)
    ow = p_ref[P_OW:P_OW + H2, :]                               # (2H, O)
    ob = p_ref[P_OB:P_OB + 1, :]                                # (1, O)
    S_mat = p_ref[P_S:P_S + B, 0:TB]                            # (B, TB) batch selector

    logits = jnp.dot(y2, aw, preferred_element_type=f32) + ab   # (TB, 1)
    m = jnp.max(logits, axis=0, keepdims=True)                  # global shift (softmax-safe)
    e = jnp.exp(logits - m)                                     # (TB, 1)
    agg = jnp.dot(S_mat, jnp.concatenate([e, e * y2], axis=1),
                  preferred_element_type=f32)                   # (B, 1+2H) = [Z | sum(e*y)]
    mean = agg[:, 1:] / agg[:, 0:1]                             # (B, 2H) attention-pooled
    out = jnp.dot(mean, ow, preferred_element_type=f32) + ob    # (B, O)
    out_ref[...] = out.astype(out_ref.dtype)                    # single full store


# ------------------------------- host-side packing -----------------------------------------
def _gate_cols(W, fwd):
    """(rows, 3H) [r|z|n] for one direction -> (rows, 6H) in layout [r_f r_b z_f z_b n_f n_b]."""
    rows = W.shape[0]
    Z = jnp.zeros((rows, H), jnp.float32)
    r, z, n = W[:, 0:H], W[:, H:2 * H], W[:, 2 * H:3 * H]
    if fwd:
        return jnp.concatenate([r, Z, z, Z, n, Z], axis=1)
    return jnp.concatenate([Z, r, Z, z, Z, n], axis=1)


def _gate_row(bf, bb):
    """(3H,), (3H,) -> (1, 6H) bias row in layout [r_f r_b z_f z_b n_f n_b]."""
    return jnp.concatenate([bf[0:H], bb[0:H], bf[H:2 * H], bb[H:2 * H],
                            bf[2 * H:3 * H], bb[2 * H:3 * H]])[None, :]


def pack_params(params):
    f32 = jnp.float32
    w_rows, b_gi_rows, b_hn_rows = [], [], []
    for l in range(NUM_LAYERS):
        w_ih_f, w_hh_f, b_ih_f, b_hh_f = params["gru"][l]["fwd"]
        w_ih_b, w_hh_b, b_ih_b, b_hh_b = params["gru"][l]["bwd"]
        # stacked input projection: rows [0:Din] act on x (time-major), rows [Din:2Din] on x_rev
        w_stk = jnp.concatenate([_gate_cols(w_ih_f.T, True),
                                 _gate_cols(w_ih_b.T, False)], axis=0)        # (2Din, 6H)
        # block-diagonal recurrent weights: rows [0:H] act on h_f, rows [H:2H] on h_b
        w_hh = jnp.concatenate([_gate_cols(w_hh_f.T, True),
                                _gate_cols(w_hh_b.T, False)], axis=0)         # (2H, 6H)
        w_rows += [w_stk, w_hh]
        b_ih_row = _gate_row(b_ih_f, b_ih_b)
        b_hh_row = _gate_row(b_hh_f, b_hh_b)
        # fold the r/z slice of b_hh into the hoisted gi bias; keep n-gate b_hh separate.
        b_gi_rows.append(jnp.concatenate([b_ih_row[:, :4 * H] + b_hh_row[:, :4 * H],
                                          b_ih_row[:, 4 * H:]], axis=1))      # (1, 6H)
        b_hn_rows.append(jnp.pad(b_hh_row[:, 4 * H:], ((0, 0), (0, 4 * H))))  # (1, 6H), cols 0:2H used
    w_slab = jnp.concatenate(w_rows + b_gi_rows + b_hn_rows, axis=0).astype(f32)   # (324, 192)

    p = jnp.zeros((P_ROWS, E), f32)
    p = p.at[P_EMB:P_EMB + VOCAB + 1, :].set(params["emb"])
    p = p.at[P_OW:P_OW + 2 * H, :].set(params["out_w"].T)
    p = p.at[P_AW:P_AW + 2 * H, 0:1].set(params["attn_w"].T)
    idx = jnp.arange(TB)
    src = (T - 1 - idx // B) * B + (idx % B)               # time-block reversal permutation
    R_mat = jnp.zeros((TB, TB), f32).at[idx, src].set(1.0)
    p = p.at[P_R:P_R + TB, 0:TB].set(R_mat)
    S_mat = (jnp.arange(TB)[None, :] % B == jnp.arange(B)[:, None]).astype(f32)
    p = p.at[P_S:P_S + B, 0:TB].set(S_mat)
    p = p.at[P_OB, :].set(params["out_b"])
    p = p.at[P_AB, 0].set(params["attn_b"][0])
    return w_slab, p


def pack_ids(inputs):
    # rows 0:TB   -> time-major    row t*B+b = inputs[b, t]
    # rows TB:2TB -> time-reversed row s*B+b = inputs[b, T-1-s]
    ids_tm = jnp.transpose(inputs).reshape(-1)
    ids_rev = jnp.transpose(inputs[:, ::-1]).reshape(-1)
    return jnp.concatenate([ids_tm, ids_rev]).astype(jnp.int32)[:, None]       # (2TB, 1)


# ------------------------------- wrapper ----------------------------------------------------
def def2vec_forward(inputs, params):
    w_slab, p_slab = pack_params(params)
    ids_all = pack_ids(inputs)
    in_specs = [
        pl.BlockSpec((2 * TB, 1), lambda i: (0, 0)),
        pl.BlockSpec((W_ROWS, G), lambda i: (0, 0)),
        pl.BlockSpec((P_ROWS, E), lambda i: (0, 0)),
    ]
    return pl.pallas_call(
        fused_def2vec_kernel,
        out_shape=jax.ShapeDtypeStruct((B, O), jnp.float32),
        grid=(1,),
        in_specs=in_specs,
        out_specs=pl.BlockSpec((B, O), lambda i: (0, 0)),
        compiler_params=pltpu.CompilerParams(dimension_semantics=("arbitrary",)),
    )(ids_all, w_slab, p_slab)


# ------------------------------- pure-JAX reference ---------------------------------------
def _ref_gru_dir(x_bt, w_ih, w_hh, b_ih, b_hh, reverse):
    Bn, Tn, _ = x_bt.shape
    Hn = w_hh.shape[1]
    xs = x_bt[:, ::-1, :] if reverse else x_bt

    def step(h, x_t):
        gi = x_t @ w_ih.T + b_ih
        gh = h @ w_hh.T + b_hh
        i_r, i_z, i_n = jnp.split(gi, 3, axis=-1)
        h_r, h_z, h_n = jnp.split(gh, 3, axis=-1)
        r = jax.nn.sigmoid(i_r + h_r)
        z = jax.nn.sigmoid(i_z + h_z)
        n = jnp.tanh(i_n + r * h_n)
        h_new = (1.0 - z) * n + z * h
        return h_new, h_new

    _, ys = lax.scan(step, jnp.zeros((Bn, Hn), jnp.float32), jnp.swapaxes(xs, 0, 1))
    ys = jnp.swapaxes(ys, 0, 1)
    return ys[:, ::-1, :] if reverse else ys


def ref_forward(inputs, params):
    x = params["emb"][inputs]
    for l in range(NUM_LAYERS):
        yf = _ref_gru_dir(x, *params["gru"][l]["fwd"], reverse=False)
        yb = _ref_gru_dir(x, *params["gru"][l]["bwd"], reverse=True)
        x = jnp.concatenate([yf, yb], axis=-1)
    logits = x @ params["attn_w"].T + params["attn_b"]       # (B, T, 1)
    p = jax.nn.softmax(logits, axis=1)
    mean = jnp.sum(p * x, axis=1)
    return mean @ params["out_w"].T + params["out_b"]


# ------------------------------- parameter init --------------------------------------------
def init_params(key):
    keys = iter(jax.random.split(key, 64))

    def u(shape, scale):
        return jax.random.uniform(next(keys), shape, jnp.float32, -scale, scale)

    emb = jax.random.normal(next(keys), (VOCAB + 1, E), jnp.float32) * 0.5
    emb = emb.at[0].set(0.0)          # padding_idx = 0
    gru = []
    s = 1.0 / math.sqrt(H)
    for l in range(NUM_LAYERS):
        din = E if l == 0 else 2 * H
        layer = {}
        for d in ("fwd", "bwd"):
            layer[d] = (u((3 * H, din), s), u((3 * H, H), s), u((3 * H,), s), u((3 * H,), s))
        gru.append(layer)
    sa = 1.0 / math.sqrt(2 * H)
    return {
        "emb": emb,
        "gru": gru,
        "attn_w": u((1, 2 * H), sa),
        "attn_b": u((1,), sa),
        "out_w": u((O, 2 * H), sa),
        "out_b": u((O,), sa),
    }


# TODO(synk): use_packing path (pack_padded_sequence / length masking) is not implemented;
#             it is off by default in the PyTorch module.

if __name__ == "__main__":
    key = jax.random.PRNGKey(0)
    params = init_params(key)
    inputs = jax.random.randint(jax.random.fold_in(key, 123), (B, T), 1, VOCAB + 1)

    out = def2vec_forward(inputs, params)
    out = jax.block_until_ready(out)

    ref = ref_forward(inputs, params)
    assert out.shape == (B, O)
    err = float(jnp.max(jnp.abs(out - ref)))
    if not err < 5e-3:
        raise AssertionError(f"mismatch vs reference, max abs err = {err}")
    print("KERNEL_OK")
</pallas_src>

<mosaic_0001>
module attributes {stable_mosaic.version = 11 : i64} {
  func.func @fused_def2vec_kernel(%arg0: i32, %arg1: memref<32x1xi32, #tpu.memory_space<vmem>>, %arg2: memref<324x192xf32, #tpu.memory_space<vmem>>, %arg3: memref<172x32xf32, #tpu.memory_space<vmem>>, %arg4: memref<2x32xf32, #tpu.memory_space<vmem>>) attributes {dimension_semantics = [#tpu.dimension_semantics<arbitrary>], iteration_bounds = array<i64: 1>, scalar_prefetch = 0 : i64, scratch_operands = 0 : i64, tpu.core_type = #tpu.core_type<tc>, window_params = [{pipeline_mode = #tpu.pipeline_mode<synchronous>, transform_indices = @transform_0, window_bounds = array<i64: 32, 1>}, {pipeline_mode = #tpu.pipeline_mode<synchronous>, transform_indices = @transform_1, window_bounds = array<i64: 324, 192>}, {pipeline_mode = #tpu.pipeline_mode<synchronous>, transform_indices = @transform_2, window_bounds = array<i64: 172, 32>}, {pipeline_mode = #tpu.pipeline_mode<synchronous>, transform_indices = @transform_3, window_bounds = array<i64: 2, 32>}]} {
    %c0 = arith.constant 0 : index
    %c0_0 = arith.constant 0 : index
    %0 = vector.load %arg1[%c0, %c0_0] : memref<32x1xi32, #tpu.memory_space<vmem>>, vector<32x1xi32>
    %1 = tpu.iota {dimensions = array<i32: 1>} : vector<32x21xi32>
    %2 = vector.broadcast %0 : vector<32x1xi32> to vector<32x21xi32>
    %3 = arith.cmpi eq, %1, %2 : vector<32x21xi32>
    %4 = arith.extui %3 : vector<32x21xi1> to vector<32x21xi32>
    %5 = arith.sitofp %4 : vector<32x21xi32> to vector<32x21xf32>
    %c0_1 = arith.constant 0 : index
    %c0_2 = arith.constant 0 : index
    %6 = vector.load %arg3[%c0_1, %c0_2] : memref<172x32xf32, #tpu.memory_space<vmem>>, vector<21x32xf32>
    %cst = arith.constant dense<0.000000e+00> : vector<32x32xf32>
    %7 = tpu.matmul %5, %6, %cst {dimension_numbers = #tpu.dot_dimension_numbers<[1], [0], [0], [1], [0, 0, 1, 1], [], []>} : vector<32x21xf32>, vector<21x32xf32>, vector<32x32xf32> -> vector<32x32xf32>
    %8 = vector.extract_strided_slice %7 {offsets = [0, 0], sizes = [16, 32], strides = [1, 1]} : vector<32x32xf32> to vector<16x32xf32>
    %9 = vector.extract_strided_slice %7 {offsets = [16, 0], sizes = [16, 32], strides = [1, 1]} : vector<32x32xf32> to vector<16x32xf32>
    %10 = tpu.concatenate %8, %9 in 1 : vector<16x32xf32>, vector<16x32xf32> -> vector<16x64xf32>
    %c152 = arith.constant 152 : index
    %c0_3 = arith.constant 0 : index
    %11 = vector.load %arg3[%c152, %c0_3] : memref<172x32xf32, #tpu.memory_space<vmem>>, vector<16x16xf32>
    %c0_4 = arith.constant 0 : index
    %c0_5 = arith.constant 0 : index
    %12 = vector.load %arg2[%c0_4, %c0_5] : memref<324x192xf32, #tpu.memory_space<vmem>>, vector<64x192xf32>
    %c64 = arith.constant 64 : index
    %c0_6 = arith.constant 0 : index
    %13 = vector.load %arg2[%c64, %c0_6] : memref<324x192xf32, #tpu.memory_space<vmem>>, vector<64x192xf32>
    %c320 = arith.constant 320 : index
    %c0_7 = arith.constant 0 : index
    %14 = vector.load %arg2[%c320, %c0_7] : memref<324x192xf32, #tpu.memory_space<vmem>>, vector<1x192xf32>
    %c322 = arith.constant 322 : index
    %c0_8 = arith.constant 0 : index
    %15 = vector.load %arg2[%c322, %c0_8] : memref<324x192xf32, #tpu.memory_space<vmem>>, vector<1x64xf32>
    %cst_9 = arith.constant dense<0.000000e+00> : vector<16x192xf32>
    %16 = tpu.matmul %10, %12, %cst_9 {dimension_numbers = #tpu.dot_dimension_numbers<[1], [0], [0], [1], [0, 0, 1, 1], [], []>} : vector<16x64xf32>, vector<64x192xf32>, vector<16x192xf32> -> vector<16x192xf32>
    %17 = vector.broadcast %14 : vector<1x192xf32> to vector<16x192xf32>
    %18 = arith.addf %16, %17 : vector<16x192xf32>
    %19 = vector.shape_cast %15 : vector<1x64xf32> to vector<1x64xf32>
    %20 = vector.broadcast %19 : vector<1x64xf32> to vector<2x64xf32>
    %cst_10 = arith.constant 0.000000e+00 : f32
    %21 = vector.broadcast %cst_10 : f32 to vector<2x64xf32>
    %22 = vector.extract_strided_slice %18 {offsets = [0, 0], sizes = [2, 192], strides = [1, 1]} : vector<16x192xf32> to vector<2x192xf32>
    %cst_11 = arith.constant dense<0.000000e+00> : vector<2x192xf32>
    %23 = tpu.matmul %21, %13, %cst_11 {dimension_numbers = #tpu.dot_dimension_numbers<[1], [0], [0], [1], [0, 0, 1, 1], [], []>} : vector<2x64xf32>, vector<64x192xf32>, vector<2x192xf32> -> vector<2x192xf32>
    %24 = vector.extract_strided_slice %22 {offsets = [0, 0], sizes = [2, 128], strides = [1, 1]} : vector<2x192xf32> to vector<2x128xf32>
    %25 = vector.extract_strided_slice %23 {offsets = [0, 0], sizes = [2, 128], strides = [1, 1]} : vector<2x192xf32> to vector<2x128xf32>
    %26 = arith.addf %24, %25 : vector<2x128xf32>
    %27 = arith.negf %26 : vector<2x128xf32>
    %28 = math.exp %27 : vector<2x128xf32>
    %cst_12 = arith.constant 1.000000e+00 : f32
    %29 = vector.broadcast %cst_12 : f32 to vector<2x128xf32>
    %30 = arith.addf %29, %28 : vector<2x128xf32>
    %31 = arith.divf %29, %30 : vector<2x128xf32>
    %32 = vector.extract_strided_slice %31 {offsets = [0, 0], sizes = [2, 64], strides = [1, 1]} : vector<2x128xf32> to vector<2x64xf32>
    %33 = vector.extract_strided_slice %31 {offsets = [0, 64], sizes = [2, 64], strides = [1, 1]} : vector<2x128xf32> to vector<2x64xf32>
    %34 = vector.extract_strided_slice %22 {offsets = [0, 128], sizes = [2, 64], strides = [1, 1]} : vector<2x192xf32> to vector<2x64xf32>
    %35 = vector.extract_strided_slice %23 {offsets = [0, 128], sizes = [2, 64], strides = [1, 1]} : vector<2x192xf32> to vector<2x64xf32>
    %36 = arith.addf %35, %20 : vector<2x64xf32>
    %37 = arith.mulf %32, %36 : vector<2x64xf32>
    %38 = arith.addf %34, %37 : vector<2x64xf32>
    %39 = math.tanh %38 : vector<2x64xf32>
    %cst_13 = arith.constant 1.000000e+00 : f32
    %40 = vector.broadcast %cst_13 : f32 to vector<2x64xf32>
    %41 = arith.subf %40, %33 : vector<2x64xf32>
    %42 = arith.mulf %41, %39 : vector<2x64xf32>
    %43 = arith.mulf %33, %21 : vector<2x64xf32>
    %44 = arith.addf %42, %43 : vector<2x64xf32>
    %45 = vector.extract_strided_slice %18 {offsets = [2, 0], sizes = [2, 192], strides = [1, 1]} : vector<16x192xf32> to vector<2x192xf32>
    %cst_14 = arith.constant dense<0.000000e+00> : vector<2x192xf32>
    %46 = tpu.matmul %44, %13, %cst_14 {dimension_numbers = #tpu.dot_dimension_numbers<[1], [0], [0], [1], [0, 0, 1, 1], [], []>} : vector<2x64xf32>, vector<64x192xf32>, vector<2x192xf32> -> vector<2x192xf32>
    %47 = vector.extract_strided_slice %45 {offsets = [0, 0], sizes = [2, 128], strides = [1, 1]} : vector<2x192xf32> to vector<2x128xf32>
    %48 = vector.extract_strided_slice %46 {offsets = [0, 0], sizes = [2, 128], strides = [1, 1]} : vector<2x192xf32> to vector<2x128xf32>
    %49 = arith.addf %47, %48 : vector<2x128xf32>
    %50 = arith.negf %49 : vector<2x128xf32>
    %51 = math.exp %50 : vector<2x128xf32>
    %cst_15 = arith.constant 1.000000e+00 : f32
    %52 = vector.broadcast %cst_15 : f32 to vector<2x128xf32>
    %53 = arith.addf %52, %51 : vector<2x128xf32>
    %54 = arith.divf %52, %53 : vector<2x128xf32>
    %55 = vector.extract_strided_slice %54 {offsets = [0, 0], sizes = [2, 64], strides = [1, 1]} : vector<2x128xf32> to vector<2x64xf32>
    %56 = vector.extract_strided_slice %54 {offsets = [0, 64], sizes = [2, 64], strides = [1, 1]} : vector<2x128xf32> to vector<2x64xf32>
    %57 = vector.extract_strided_slice %45 {offsets = [0, 128], sizes = [2, 64], strides = [1, 1]} : vector<2x192xf32> to vector<2x64xf32>
    %58 = vector.extract_strided_slice %46 {offsets = [0, 128], sizes = [2, 64], strides = [1, 1]} : vector<2x192xf32> to vector<2x64xf32>
    %59 = arith.addf %58, %20 : vector<2x64xf32>
    %60 = arith.mulf %55, %59 : vector<2x64xf32>
    %61 = arith.addf %57, %60 : vector<2x64xf32>
    %62 = math.tanh %61 : vector<2x64xf32>
    %cst_16 = arith.constant 1.000000e+00 : f32
    %63 = vector.broadcast %cst_16 : f32 to vector<2x64xf32>
    %64 = arith.subf %63, %56 : vector<2x64xf32>
    %65 = arith.mulf %64, %62 : vector<2x64xf32>
    %66 = arith.mulf %56, %44 : vector<2x64xf32>
    %67 = arith.addf %65, %66 : vector<2x64xf32>
    %68 = vector.extract_strided_slice %18 {offsets = [4, 0], sizes = [2, 192], strides = [1, 1]} : vector<16x192xf32> to vector<2x192xf32>
    %cst_17 = arith.constant dense<0.000000e+00> : vector<2x192xf32>
    %69 = tpu.matmul %67, %13, %cst_17 {dimension_numbers = #tpu.dot_dimension_numbers<[1], [0], [0], [1], [0, 0, 1, 1], [], []>} : vector<2x64xf32>, vector<64x192xf32>, vector<2x192xf32> -> vector<2x192xf32>
    %70 = vector.extract_strided_slice %68 {offsets = [0, 0], sizes = [2, 128], strides = [1, 1]} : vector<2x192xf32> to vector<2x128xf32>
    %71 = vector.extract_strided_slice %69 {offsets = [0, 0], sizes = [2, 128], strides = [1, 1]} : vector<2x192xf32> to vector<2x128xf32>
    %72 = arith.addf %70, %71 : vector<2x128xf32>
    %73 = arith.negf %72 : vector<2x128xf32>
    %74 = math.exp %73 : vector<2x128xf32>
    %cst_18 = arith.constant 1.000000e+00 : f32
    %75 = vector.broadcast %cst_18 : f32 to vector<2x128xf32>
    %76 = arith.addf %75, %74 : vector<2x128xf32>
    %77 = arith.divf %75, %76 : vector<2x128xf32>
    %78 = vector.extract_strided_slice %77 {offsets = [0, 0], sizes = [2, 64], strides = [1, 1]} : vector<2x128xf32> to vector<2x64xf32>
    %79 = vector.extract_strided_slice %77 {offsets = [0, 64], sizes = [2, 64], strides = [1, 1]} : vector<2x128xf32> to vector<2x64xf32>
    %80 = vector.extract_strided_slice %68 {offsets = [0, 128], sizes = [2, 64], strides = [1, 1]} : vector<2x192xf32> to vector<2x64xf32>
    %81 = vector.extract_strided_slice %69 {offsets = [0, 128], sizes = [2, 64], strides = [1, 1]} : vector<2x192xf32> to vector<2x64xf32>
    %82 = arith.addf %81, %20 : vector<2x64xf32>
    %83 = arith.mulf %78, %82 : vector<2x64xf32>
    %84 = arith.addf %80, %83 : vector<2x64xf32>
    %85 = math.tanh %84 : vector<2x64xf32>
    %cst_19 = arith.constant 1.000000e+00 : f32
    %86 = vector.broadcast %cst_19 : f32 to vector<2x64xf32>
    %87 = arith.subf %86, %79 : vector<2x64xf32>
    %88 = arith.mulf %87, %85 : vector<2x64xf32>
    %89 = arith.mulf %79, %67 : vector<2x64xf32>
    %90 = arith.addf %88, %89 : vector<2x64xf32>
    %91 = vector.extract_strided_slice %18 {offsets = [6, 0], sizes = [2, 192], strides = [1, 1]} : vector<16x192xf32> to vector<2x192xf32>
    %cst_20 = arith.constant dense<0.000000e+00> : vector<2x192xf32>
    %92 = tpu.matmul %90, %13, %cst_20 {dimension_numbers = #tpu.dot_dimension_numbers<[1], [0], [0], [1], [0, 0, 1, 1], [], []>} : vector<2x64xf32>, vector<64x192xf32>, vector<2x192xf32> -> vector<2x192xf32>
    %93 = vector.extract_strided_slice %91 {offsets = [0, 0], sizes = [2, 128], strides = [1, 1]} : vector<2x192xf32> to vector<2x128xf32>
    %94 = vector.extract_strided_slice %92 {offsets = [0, 0], sizes = [2, 128], strides = [1, 1]} : vector<2x192xf32> to vector<2x128xf32>
    %95 = arith.addf %93, %94 : vector<2x128xf32>
    %96 = arith.negf %95 : vector<2x128xf32>
    %97 = math.exp %96 : vector<2x128xf32>
    %cst_21 = arith.constant 1.000000e+00 : f32
    %98 = vector.broadcast %cst_21 : f32 to vector<2x128xf32>
    %99 = arith.addf %98, %97 : vector<2x128xf32>
    %100 = arith.divf %98, %99 : vector<2x128xf32>
    %101 = vector.extract_strided_slice %100 {offsets = [0, 0], sizes = [2, 64], strides = [1, 1]} : vector<2x128xf32> to vector<2x64xf32>
    %102 = vector.extract_strided_slice %100 {offsets = [0, 64], sizes = [2, 64], strides = [1, 1]} : vector<2x128xf32> to vector<2x64xf32>
    %103 = vector.extract_strided_slice %91 {offsets = [0, 128], sizes = [2, 64], strides = [1, 1]} : vector<2x192xf32> to vector<2x64xf32>
    %104 = vector.extract_strided_slice %92 {offsets = [0, 128], sizes = [2, 64], strides = [1, 1]} : vector<2x192xf32> to vector<2x64xf32>
    %105 = arith.addf %104, %20 : vector<2x64xf32>
    %106 = arith.mulf %101, %105 : vector<2x64xf32>
    %107 = arith.addf %103, %106 : vector<2x64xf32>
    %108 = math.tanh %107 : vector<2x64xf32>
    %cst_22 = arith.constant 1.000000e+00 : f32
    %109 = vector.broadcast %cst_22 : f32 to vector<2x64xf32>
    %110 = arith.subf %109, %102 : vector<2x64xf32>
    %111 = arith.mulf %110, %108 : vector<2x64xf32>
    %112 = arith.mulf %102, %90 : vector<2x64xf32>
    %113 = arith.addf %111, %112 : vector<2x64xf32>
    %114 = vector.extract_strided_slice %18 {offsets = [8, 0], sizes = [2, 192], strides = [1, 1]} : vector<16x192xf32> to vector<2x192xf32>
    %cst_23 = arith.constant dense<0.000000e+00> : vector<2x192xf32>
    %115 = tpu.matmul %113, %13, %cst_23 {dimension_numbers = #tpu.dot_dimension_numbers<[1], [0], [0], [1], [0, 0, 1, 1], [], []>} : vector<2x64xf32>, vector<64x192xf32>, vector<2x192xf32> -> vector<2x192xf32>
    %116 = vector.extract_strided_slice %114 {offsets = [0, 0], sizes = [2, 128], strides = [1, 1]} : vector<2x192xf32> to vector<2x128xf32>
    %117 = vector.extract_strided_slice %115 {offsets = [0, 0], sizes = [2, 128], strides = [1, 1]} : vector<2x192xf32> to vector<2x128xf32>
    %118 = arith.addf %116, %117 : vector<2x128xf32>
    %119 = arith.negf %118 : vector<2x128xf32>
    %120 = math.exp %119 : vector<2x128xf32>
    %cst_24 = arith.constant 1.000000e+00 : f32
    %121 = vector.broadcast %cst_24 : f32 to vector<2x128xf32>
    %122 = arith.addf %121, %120 : vector<2x128xf32>
    %123 = arith.divf %121, %122 : vector<2x128xf32>
    %124 = vector.extract_strided_slice %123 {offsets = [0, 0], sizes = [2, 64], strides = [1, 1]} : vector<2x128xf32> to vector<2x64xf32>
    %125 = vector.extract_strided_slice %123 {offsets = [0, 64], sizes = [2, 64], strides = [1, 1]} : vector<2x128xf32> to vector<2x64xf32>
    %126 = vector.extract_strided_slice %114 {offsets = [0, 128], sizes = [2, 64], strides = [1, 1]} : vector<2x192xf32> to vector<2x64xf32>
    %127 = vector.extract_strided_slice %115 {offsets = [0, 128], sizes = [2, 64], strides = [1, 1]} : vector<2x192xf32> to vector<2x64xf32>
    %128 = arith.addf %127, %20 : vector<2x64xf32>
    %129 = arith.mulf %124, %128 : vector<2x64xf32>
    %130 = arith.addf %126, %129 : vector<2x64xf32>
    %131 = math.tanh %130 : vector<2x64xf32>
    %cst_25 = arith.constant 1.000000e+00 : f32
    %132 = vector.broadcast %cst_25 : f32 to vector<2x64xf32>
    %133 = arith.subf %132, %125 : vector<2x64xf32>
    %134 = arith.mulf %133, %131 : vector<2x64xf32>
    %135 = arith.mulf %125, %113 : vector<2x64xf32>
    %136 = arith.addf %134, %135 : vector<2x64xf32>
    %137 = vector.extract_strided_slice %18 {offsets = [10, 0], sizes = [2, 192], strides = [1, 1]} : vector<16x192xf32> to vector<2x192xf32>
    %cst_26 = arith.constant dense<0.000000e+00> : vector<2x192xf32>
    %138 = tpu.matmul %136, %13, %cst_26 {dimension_numbers = #tpu.dot_dimension_numbers<[1], [0], [0], [1], [0, 0, 1, 1], [], []>} : vector<2x64xf32>, vector<64x192xf32>, vector<2x192xf32> -> vector<2x192xf32>
    %139 = vector.extract_strided_slice %137 {offsets = [0, 0], sizes = [2, 128], strides = [1, 1]} : vector<2x192xf32> to vector<2x128xf32>
    %140 = vector.extract_strided_slice %138 {offsets = [0, 0], sizes = [2, 128], strides = [1, 1]} : vector<2x192xf32> to vector<2x128xf32>
    %141 = arith.addf %139, %140 : vector<2x128xf32>
    %142 = arith.negf %141 : vector<2x128xf32>
    %143 = math.exp %142 : vector<2x128xf32>
    %cst_27 = arith.constant 1.000000e+00 : f32
    %144 = vector.broadcast %cst_27 : f32 to vector<2x128xf32>
    %145 = arith.addf %144, %143 : vector<2x128xf32>
    %146 = arith.divf %144, %145 : vector<2x128xf32>
    %147 = vector.extract_strided_slice %146 {offsets = [0, 0], sizes = [2, 64], strides = [1, 1]} : vector<2x128xf32> to vector<2x64xf32>
    %148 = vector.extract_strided_slice %146 {offsets = [0, 64], sizes = [2, 64], strides = [1, 1]} : vector<2x128xf32> to vector<2x64xf32>
    %149 = vector.extract_strided_slice %137 {offsets = [0, 128], sizes = [2, 64], strides = [1, 1]} : vector<2x192xf32> to vector<2x64xf32>
    %150 = vector.extract_strided_slice %138 {offsets = [0, 128], sizes = [2, 64], strides = [1, 1]} : vector<2x192xf32> to vector<2x64xf32>
    %151 = arith.addf %150, %20 : vector<2x64xf32>
    %152 = arith.mulf %147, %151 : vector<2x64xf32>
    %153 = arith.addf %149, %152 : vector<2x64xf32>
    %154 = math.tanh %153 : vector<2x64xf32>
    %cst_28 = arith.constant 1.000000e+00 : f32
    %155 = vector.broadcast %cst_28 : f32 to vector<2x64xf32>
    %156 = arith.subf %155, %148 : vector<2x64xf32>
    %157 = arith.mulf %156, %154 : vector<2x64xf32>
    %158 = arith.mulf %148, %136 : vector<2x64xf32>
    %159 = arith.addf %157, %158 : vector<2x64xf32>
    %160 = vector.extract_strided_slice %18 {offsets = [12, 0], sizes = [2, 192], strides = [1, 1]} : vector<16x192xf32> to vector<2x192xf32>
    %cst_29 = arith.constant dense<0.000000e+00> : vector<2x192xf32>
    %161 = tpu.matmul %159, %13, %cst_29 {dimension_numbers = #tpu.dot_dimension_numbers<[1], [0], [0], [1], [0, 0, 1, 1], [], []>} : vector<2x64xf32>, vector<64x192xf32>, vector<2x192xf32> -> vector<2x192xf32>
    %162 = vector.extract_strided_slice %160 {offsets = [0, 0], sizes = [2, 128], strides = [1, 1]} : vector<2x192xf32> to vector<2x128xf32>
    %163 = vector.extract_strided_slice %161 {offsets = [0, 0], sizes = [2, 128], strides = [1, 1]} : vector<2x192xf32> to vector<2x128xf32>
    %164 = arith.addf %162, %163 : vector<2x128xf32>
    %165 = arith.negf %164 : vector<2x128xf32>
    %166 = math.exp %165 : vector<2x128xf32>
    %cst_30 = arith.constant 1.000000e+00 : f32
    %167 = vector.broadcast %cst_30 : f32 to vector<2x128xf32>
    %168 = arith.addf %167, %166 : vector<2x128xf32>
    %169 = arith.divf %167, %168 : vector<2x128xf32>
    %170 = vector.extract_strided_slice %169 {offsets = [0, 0], sizes = [2, 64], strides = [1, 1]} : vector<2x128xf32> to vector<2x64xf32>
    %171 = vector.extract_strided_slice %169 {offsets = [0, 64], sizes = [2, 64], strides = [1, 1]} : vector<2x128xf32> to vector<2x64xf32>
    %172 = vector.extract_strided_slice %160 {offsets = [0, 128], sizes = [2, 64], strides = [1, 1]} : vector<2x192xf32> to vector<2x64xf32>
    %173 = vector.extract_strided_slice %161 {offsets = [0, 128], sizes = [2, 64], strides = [1, 1]} : vector<2x192xf32> to vector<2x64xf32>
    %174 = arith.addf %173, %20 : vector<2x64xf32>
    %175 = arith.mulf %170, %174 : vector<2x64xf32>
    %176 = arith.addf %172, %175 : vector<2x64xf32>
    %177 = math.tanh %176 : vector<2x64xf32>
    %cst_31 = arith.constant 1.000000e+00 : f32
    %178 = vector.broadcast %cst_31 : f32 to vector<2x64xf32>
    %179 = arith.subf %178, %171 : vector<2x64xf32>
    %180 = arith.mulf %179, %177 : vector<2x64xf32>
    %181 = arith.mulf %171, %159 : vector<2x64xf32>
    %182 = arith.addf %180, %181 : vector<2x64xf32>
    %183 = vector.extract_strided_slice %18 {offsets = [14, 0], sizes = [2, 192], strides = [1, 1]} : vector<16x192xf32> to vector<2x192xf32>
    %cst_32 = arith.constant dense<0.000000e+00> : vector<2x192xf32>
    %184 = tpu.matmul %182, %13, %cst_32 {dimension_numbers = #tpu.dot_dimension_numbers<[1], [0], [0], [1], [0, 0, 1, 1], [], []>} : vector<2x64xf32>, vector<64x192xf32>, vector<2x192xf32> -> vector<2x192xf32>
    %185 = vector.extract_strided_slice %183 {offsets = [0, 0], sizes = [2, 128], strides = [1, 1]} : vector<2x192xf32> to vector<2x128xf32>
    %186 = vector.extract_strided_slice %184 {offsets = [0, 0], sizes = [2, 128], strides = [1, 1]} : vector<2x192xf32> to vector<2x128xf32>
    %187 = arith.addf %185, %186 : vector<2x128xf32>
    %188 = arith.negf %187 : vector<2x128xf32>
    %189 = math.exp %188 : vector<2x128xf32>
    %cst_33 = arith.constant 1.000000e+00 : f32
    %190 = vector.broadcast %cst_33 : f32 to vector<2x128xf32>
    %191 = arith.addf %190, %189 : vector<2x128xf32>
    %192 = arith.divf %190, %191 : vector<2x128xf32>
    %193 = vector.extract_strided_slice %192 {offsets = [0, 0], sizes = [2, 64], strides = [1, 1]} : vector<2x128xf32> to vector<2x64xf32>
    %194 = vector.extract_strided_slice %192 {offsets = [0, 64], sizes = [2, 64], strides = [1, 1]} : vector<2x128xf32> to vector<2x64xf32>
    %195 = vector.extract_strided_slice %183 {offsets = [0, 128], sizes = [2, 64], strides = [1, 1]} : vector<2x192xf32> to vector<2x64xf32>
    %196 = vector.extract_strided_slice %184 {offsets = [0, 128], sizes = [2, 64], strides = [1, 1]} : vector<2x192xf32> to vector<2x64xf32>
    %197 = arith.addf %196, %20 : vector<2x64xf32>
    %198 = arith.mulf %193, %197 : vector<2x64xf32>
    %199 = arith.addf %195, %198 : vector<2x64xf32>
    %200 = math.tanh %199 : vector<2x64xf32>
    %cst_34 = arith.constant 1.000000e+00 : f32
    %201 = vector.broadcast %cst_34 : f32 to vector<2x64xf32>
    %202 = arith.subf %201, %194 : vector<2x64xf32>
    %203 = arith.mulf %202, %200 : vector<2x64xf32>
    %204 = arith.mulf %194, %182 : vector<2x64xf32>
    %205 = arith.addf %203, %204 : vector<2x64xf32>
    %206 = tpu.concatenate %44, %67, %90, %113, %136, %159, %182, %205 in 0 : vector<2x64xf32>, vector<2x64xf32>, vector<2x64xf32>, vector<2x64xf32>, vector<2x64xf32>, vector<2x64xf32>, vector<2x64xf32>, vector<2x64xf32> -> vector<16x64xf32>
    %cst_35 = arith.constant dense<0.000000e+00> : vector<16x64xf32>
    %207 = tpu.matmul %11, %206, %cst_35 {dimension_numbers = #tpu.dot_dimension_numbers<[1], [0], [0], [1], [0, 0, 1, 1], [], []>} : vector<16x16xf32>, vector<16x64xf32>, vector<16x64xf32> -> vector<16x64xf32>
    %208 = vector.extract_strided_slice %206 {offsets = [0, 0], sizes = [16, 32], strides = [1, 1]} : vector<16x64xf32> to vector<16x32xf32>
    %209 = vector.extract_strided_slice %207 {offsets = [0, 32], sizes = [16, 32], strides = [1, 1]} : vector<16x64xf32> to vector<16x32xf32>
    %210 = vector.extract_strided_slice %207 {offsets = [0, 0], sizes = [16, 32], strides = [1, 1]} : vector<16x64xf32> to vector<16x32xf32>
    %211 = vector.extract_strided_slice %206 {offsets = [0, 32], sizes = [16, 32], strides = [1, 1]} : vector<16x64xf32> to vector<16x32xf32>
    %212 = tpu.concatenate %208, %209, %210, %211 in 1 : vector<16x32xf32>, vector<16x32xf32>, vector<16x32xf32>, vector<16x32xf32> -> vector<16x128xf32>
    %c128 = arith.constant 128 : index
    %c0_36 = arith.constant 0 : index
    %213 = vector.load %arg2[%c128, %c0_36] : memref<324x192xf32, #tpu.memory_space<vmem>>, vector<128x192xf32>
    %c256 = arith.constant 256 : index
    %c0_37 = arith.constant 0 : index
    %214 = vector.load %arg2[%c256, %c0_37] : memref<324x192xf32, #tpu.memory_space<vmem>>, vector<64x192xf32>
    %c321 = arith.constant 321 : index
    %c0_38 = arith.constant 0 : index
    %215 = vector.load %arg2[%c321, %c0_38] : memref<324x192xf32, #tpu.memory_space<vmem>>, vector<1x192xf32>
    %c323 = arith.constant 323 : index
    %c0_39 = arith.constant 0 : index
    %216 = vector.load %arg2[%c323, %c0_39] : memref<324x192xf32, #tpu.memory_space<vmem>>, vector<1x64xf32>
    %cst_40 = arith.constant dense<0.000000e+00> : vector<16x192xf32>
    %217 = tpu.matmul %212, %213, %cst_40 {dimension_numbers = #tpu.dot_dimension_numbers<[1], [0], [0], [1], [0, 0, 1, 1], [], []>} : vector<16x128xf32>, vector<128x192xf32>, vector<16x192xf32> -> vector<16x192xf32>
    %218 = vector.broadcast %215 : vector<1x192xf32> to vector<16x192xf32>
    %219 = arith.addf %217, %218 : vector<16x192xf32>
    %220 = vector.shape_cast %216 : vector<1x64xf32> to vector<1x64xf32>
    %221 = vector.broadcast %220 : vector<1x64xf32> to vector<2x64xf32>
    %cst_41 = arith.constant 0.000000e+00 : f32
    %222 = vector.broadcast %cst_41 : f32 to vector<2x64xf32>
    %223 = vector.extract_strided_slice %219 {offsets = [0, 0], sizes = [2, 192], strides = [1, 1]} : vector<16x192xf32> to vector<2x192xf32>
    %cst_42 = arith.constant dense<0.000000e+00> : vector<2x192xf32>
    %224 = tpu.matmul %222, %214, %cst_42 {dimension_numbers = #tpu.dot_dimension_numbers<[1], [0], [0], [1], [0, 0, 1, 1], [], []>} : vector<2x64xf32>, vector<64x192xf32>, vector<2x192xf32> -> vector<2x192xf32>
    %225 = vector.extract_strided_slice %223 {offsets = [0, 0], sizes = [2, 128], strides = [1, 1]} : vector<2x192xf32> to vector<2x128xf32>
    %226 = vector.extract_strided_slice %224 {offsets = [0, 0], sizes = [2, 128], strides = [1, 1]} : vector<2x192xf32> to vector<2x128xf32>
    %227 = arith.addf %225, %226 : vector<2x128xf32>
    %228 = arith.negf %227 : vector<2x128xf32>
    %229 = math.exp %228 : vector<2x128xf32>
    %cst_43 = arith.constant 1.000000e+00 : f32
    %230 = vector.broadcast %cst_43 : f32 to vector<2x128xf32>
    %231 = arith.addf %230, %229 : vector<2x128xf32>
    %232 = arith.divf %230, %231 : vector<2x128xf32>
    %233 = vector.extract_strided_slice %232 {offsets = [0, 0], sizes = [2, 64], strides = [1, 1]} : vector<2x128xf32> to vector<2x64xf32>
    %234 = vector.extract_strided_slice %232 {offsets = [0, 64], sizes = [2, 64], strides = [1, 1]} : vector<2x128xf32> to vector<2x64xf32>
    %235 = vector.extract_strided_slice %223 {offsets = [0, 128], sizes = [2, 64], strides = [1, 1]} : vector<2x192xf32> to vector<2x64xf32>
    %236 = vector.extract_strided_slice %224 {offsets = [0, 128], sizes = [2, 64], strides = [1, 1]} : vector<2x192xf32> to vector<2x64xf32>
    %237 = arith.addf %236, %221 : vector<2x64xf32>
    %238 = arith.mulf %233, %237 : vector<2x64xf32>
    %239 = arith.addf %235, %238 : vector<2x64xf32>
    %240 = math.tanh %239 : vector<2x64xf32>
    %cst_44 = arith.constant 1.000000e+00 : f32
    %241 = vector.broadcast %cst_44 : f32 to vector<2x64xf32>
    %242 = arith.subf %241, %234 : vector<2x64xf32>
    %243 = arith.mulf %242, %240 : vector<2x64xf32>
    %244 = arith.mulf %234, %222 : vector<2x64xf32>
    %245 = arith.addf %243, %244 : vector<2x64xf32>
    %246 = vector.extract_strided_slice %219 {offsets = [2, 0], sizes = [2, 192], strides = [1, 1]} : vector<16x192xf32> to vector<2x192xf32>
    %cst_45 = arith.constant dense<0.000000e+00> : vector<2x192xf32>
    %247 = tpu.matmul %245, %214, %cst_45 {dimension_numbers = #tpu.dot_dimension_numbers<[1], [0], [0], [1], [0, 0, 1, 1], [], []>} : vector<2x64xf32>, vector<64x192xf32>, vector<2x192xf32> -> vector<2x192xf32>
    %248 = vector.extract_strided_slice %246 {offsets = [0, 0], sizes = [2, 128], strides = [1, 1]} : vector<2x192xf32> to vector<2x128xf32>
    %249 = vector.extract_strided_slice %247 {offsets = [0, 0], sizes = [2, 128], strides = [1, 1]} : vector<2x192xf32> to vector<2x128xf32>
    %250 = arith.addf %248, %249 : vector<2x128xf32>
    %251 = arith.negf %250 : vector<2x128xf32>
    %252 = math.exp %251 : vector<2x128xf32>
    %cst_46 = arith.constant 1.000000e+00 : f32
    %253 = vector.broadcast %cst_46 : f32 to vector<2x128xf32>
    %254 = arith.addf %253, %252 : vector<2x128xf32>
    %255 = arith.divf %253, %254 : vector<2x128xf32>
    %256 = vector.extract_strided_slice %255 {offsets = [0, 0], sizes = [2, 64], strides = [1, 1]} : vector<2x128xf32> to vector<2x64xf32>
    %257 = vector.extract_strided_slice %255 {offsets = [0, 64], sizes = [2, 64], strides = [1, 1]} : vector<2x128xf32> to vector<2x64xf32>
    %258 = vector.extract_strided_slice %246 {offsets = [0, 128], sizes = [2, 64], strides = [1, 1]} : vector<2x192xf32> to vector<2x64xf32>
    %259 = vector.extract_strided_slice %247 {offsets = [0, 128], sizes = [2, 64], strides = [1, 1]} : vector<2x192xf32> to vector<2x64xf32>
    %260 = arith.addf %259, %221 : vector<2x64xf32>
    %261 = arith.mulf %256, %260 : vector<2x64xf32>
    %262 = arith.addf %258, %261 : vector<2x64xf32>
    %263 = math.tanh %262 : vector<2x64xf32>
    %cst_47 = arith.constant 1.000000e+00 : f32
    %264 = vector.broadcast %cst_47 : f32 to vector<2x64xf32>
    %265 = arith.subf %264, %257 : vector<2x64xf32>
    %266 = arith.mulf %265, %263 : vector<2x64xf32>
    %267 = arith.mulf %257, %245 : vector<2x64xf32>
    %268 = arith.addf %266, %267 : vector<2x64xf32>
    %269 = vector.extract_strided_slice %219 {offsets = [4, 0], sizes = [2, 192], strides = [1, 1]} : vector<16x192xf32> to vector<2x192xf32>
    %cst_48 = arith.constant dense<0.000000e+00> : vector<2x192xf32>
    %270 = tpu.matmul %268, %214, %cst_48 {dimension_numbers = #tpu.dot_dimension_numbers<[1], [0], [0], [1], [0, 0, 1, 1], [], []>} : vector<2x64xf32>, vector<64x192xf32>, vector<2x192xf32> -> vector<2x192xf32>
    %271 = vector.extract_strided_slice %269 {offsets = [0, 0], sizes = [2, 128], strides = [1, 1]} : vector<2x192xf32> to vector<2x128xf32>
    %272 = vector.extract_strided_slice %270 {offsets = [0, 0], sizes = [2, 128], strides = [1, 1]} : vector<2x192xf32> to vector<2x128xf32>
    %273 = arith.addf %271, %272 : vector<2x128xf32>
    %274 = arith.negf %273 : vector<2x128xf32>
    %275 = math.exp %274 : vector<2x128xf32>
    %cst_49 = arith.constant 1.000000e+00 : f32
    %276 = vector.broadcast %cst_49 : f32 to vector<2x128xf32>
    %277 = arith.addf %276, %275 : vector<2x128xf32>
    %278 = arith.divf %276, %277 : vector<2x128xf32>
    %279 = vector.extract_strided_slice %278 {offsets = [0, 0], sizes = [2, 64], strides = [1, 1]} : vector<2x128xf32> to vector<2x64xf32>
    %280 = vector.extract_strided_slice %278 {offsets = [0, 64], sizes = [2, 64], strides = [1, 1]} : vector<2x128xf32> to vector<2x64xf32>
    %281 = vector.extract_strided_slice %269 {offsets = [0, 128], sizes = [2, 64], strides = [1, 1]} : vector<2x192xf32> to vector<2x64xf32>
    %282 = vector.extract_strided_slice %270 {offsets = [0, 128], sizes = [2, 64], strides = [1, 1]} : vector<2x192xf32> to vector<2x64xf32>
    %283 = arith.addf %282, %221 : vector<2x64xf32>
    %284 = arith.mulf %279, %283 : vector<2x64xf32>
    %285 = arith.addf %281, %284 : vector<2x64xf32>
    %286 = math.tanh %285 : vector<2x64xf32>
    %cst_50 = arith.constant 1.000000e+00 : f32
    %287 = vector.broadcast %cst_50 : f32 to vector<2x64xf32>
    %288 = arith.subf %287, %280 : vector<2x64xf32>
    %289 = arith.mulf %288, %286 : vector<2x64xf32>
    %290 = arith.mulf %280, %268 : vector<2x64xf32>
    %291 = arith.addf %289, %290 : vector<2x64xf32>
    %292 = vector.extract_strided_slice %219 {offsets = [6, 0], sizes = [2, 192], strides = [1, 1]} : vector<16x192xf32> to vector<2x192xf32>
    %cst_51 = arith.constant dense<0.000000e+00> : vector<2x192xf32>
    %293 = tpu.matmul %291, %214, %cst_51 {dimension_numbers = #tpu.dot_dimension_numbers<[1], [0], [0], [1], [0, 0, 1, 1], [], []>} : vector<2x64xf32>, vector<64x192xf32>, vector<2x192xf32> -> vector<2x192xf32>
    %294 = vector.extract_strided_slice %292 {offsets = [0, 0], sizes = [2, 128], strides = [1, 1]} : vector<2x192xf32> to vector<2x128xf32>
    %295 = vector.extract_strided_slice %293 {offsets = [0, 0], sizes = [2, 128], strides = [1, 1]} : vector<2x192xf32> to vector<2x128xf32>
    %296 = arith.addf %294, %295 : vector<2x128xf32>
    %297 = arith.negf %296 : vector<2x128xf32>
    %298 = math.exp %297 : vector<2x128xf32>
    %cst_52 = arith.constant 1.000000e+00 : f32
    %299 = vector.broadcast %cst_52 : f32 to vector<2x128xf32>
    %300 = arith.addf %299, %298 : vector<2x128xf32>
    %301 = arith.divf %299, %300 : vector<2x128xf32>
    %302 = vector.extract_strided_slice %301 {offsets = [0, 0], sizes = [2, 64], strides = [1, 1]} : vector<2x128xf32> to vector<2x64xf32>
    %303 = vector.extract_strided_slice %301 {offsets = [0, 64], sizes = [2, 64], strides = [1, 1]} : vector<2x128xf32> to vector<2x64xf32>
    %304 = vector.extract_strided_slice %292 {offsets = [0, 128], sizes = [2, 64], strides = [1, 1]} : vector<2x192xf32> to vector<2x64xf32>
    %305 = vector.extract_strided_slice %293 {offsets = [0, 128], sizes = [2, 64], strides = [1, 1]} : vector<2x192xf32> to vector<2x64xf32>
    %306 = arith.addf %305, %221 : vector<2x64xf32>
    %307 = arith.mulf %302, %306 : vector<2x64xf32>
    %308 = arith.addf %304, %307 : vector<2x64xf32>
    %309 = math.tanh %308 : vector<2x64xf32>
    %cst_53 = arith.constant 1.000000e+00 : f32
    %310 = vector.broadcast %cst_53 : f32 to vector<2x64xf32>
    %311 = arith.subf %310, %303 : vector<2x64xf32>
    %312 = arith.mulf %311, %309 : vector<2x64xf32>
    %313 = arith.mulf %303, %291 : vector<2x64xf32>
    %314 = arith.addf %312, %313 : vector<2x64xf32>
    %315 = vector.extract_strided_slice %219 {offsets = [8, 0], sizes = [2, 192], strides = [1, 1]} : vector<16x192xf32> to vector<2x192xf32>
    %cst_54 = arith.constant dense<0.000000e+00> : vector<2x192xf32>
    %316 = tpu.matmul %314, %214, %cst_54 {dimension_numbers = #tpu.dot_dimension_numbers<[1], [0], [0], [1], [0, 0, 1, 1], [], []>} : vector<2x64xf32>, vector<64x192xf32>, vector<2x192xf32> -> vector<2x192xf32>
    %317 = vector.extract_strided_slice %315 {offsets = [0, 0], sizes = [2, 128], strides = [1, 1]} : vector<2x192xf32> to vector<2x128xf32>
    %318 = vector.extract_strided_slice %316 {offsets = [0, 0], sizes = [2, 128], strides = [1, 1]} : vector<2x192xf32> to vector<2x128xf32>
    %319 = arith.addf %317, %318 : vector<2x128xf32>
    %320 = arith.negf %319 : vector<2x128xf32>
    %321 = math.exp %320 : vector<2x128xf32>
    %cst_55 = arith.constant 1.000000e+00 : f32
    %322 = vector.broadcast %cst_55 : f32 to vector<2x128xf32>
    %323 = arith.addf %322, %321 : vector<2x128xf32>
    %324 = arith.divf %322, %323 : vector<2x128xf32>
    %325 = vector.extract_strided_slice %324 {offsets = [0, 0], sizes = [2, 64], strides = [1, 1]} : vector<2x128xf32> to vector<2x64xf32>
    %326 = vector.extract_strided_slice %324 {offsets = [0, 64], sizes = [2, 64], strides = [1, 1]} : vector<2x128xf32> to vector<2x64xf32>
    %327 = vector.extract_strided_slice %315 {offsets = [0, 128], sizes = [2, 64], strides = [1, 1]} : vector<2x192xf32> to vector<2x64xf32>
    %328 = vector.extract_strided_slice %316 {offsets = [0, 128], sizes = [2, 64], strides = [1, 1]} : vector<2x192xf32> to vector<2x64xf32>
    %329 = arith.addf %328, %221 : vector<2x64xf32>
    %330 = arith.mulf %325, %329 : vector<2x64xf32>
    %331 = arith.addf %327, %330 : vector<2x64xf32>
    %332 = math.tanh %331 : vector<2x64xf32>
    %cst_56 = arith.constant 1.000000e+00 : f32
    %333 = vector.broadcast %cst_56 : f32 to vector<2x64xf32>
    %334 = arith.subf %333, %326 : vector<2x64xf32>
    %335 = arith.mulf %334, %332 : vector<2x64xf32>
    %336 = arith.mulf %326, %314 : vector<2x64xf32>
    %337 = arith.addf %335, %336 : vector<2x64xf32>
    %338 = vector.extract_strided_slice %219 {offsets = [10, 0], sizes = [2, 192], strides = [1, 1]} : vector<16x192xf32> to vector<2x192xf32>
    %cst_57 = arith.constant dense<0.000000e+00> : vector<2x192xf32>
    %339 = tpu.matmul %337, %214, %cst_57 {dimension_numbers = #tpu.dot_dimension_numbers<[1], [0], [0], [1], [0, 0, 1, 1], [], []>} : vector<2x64xf32>, vector<64x192xf32>, vector<2x192xf32> -> vector<2x192xf32>
    %340 = vector.extract_strided_slice %338 {offsets = [0, 0], sizes = [2, 128], strides = [1, 1]} : vector<2x192xf32> to vector<2x128xf32>
    %341 = vector.extract_strided_slice %339 {offsets = [0, 0], sizes = [2, 128], strides = [1, 1]} : vector<2x192xf32> to vector<2x128xf32>
    %342 = arith.addf %340, %341 : vector<2x128xf32>
    %343 = arith.negf %342 : vector<2x128xf32>
    %344 = math.exp %343 : vector<2x128xf32>
    %cst_58 = arith.constant 1.000000e+00 : f32
    %345 = vector.broadcast %cst_58 : f32 to vector<2x128xf32>
    %346 = arith.addf %345, %344 : vector<2x128xf32>
    %347 = arith.divf %345, %346 : vector<2x128xf32>
    %348 = vector.extract_strided_slice %347 {offsets = [0, 0], sizes = [2, 64], strides = [1, 1]} : vector<2x128xf32> to vector<2x64xf32>
    %349 = vector.extract_strided_slice %347 {offsets = [0, 64], sizes = [2, 64], strides = [1, 1]} : vector<2x128xf32> to vector<2x64xf32>
    %350 = vector.extract_strided_slice %338 {offsets = [0, 128], sizes = [2, 64], strides = [1, 1]} : vector<2x192xf32> to vector<2x64xf32>
    %351 = vector.extract_strided_slice %339 {offsets = [0, 128], sizes = [2, 64], strides = [1, 1]} : vector<2x192xf32> to vector<2x64xf32>
    %352 = arith.addf %351, %221 : vector<2x64xf32>
    %353 = arith.mulf %348, %352 : vector<2x64xf32>
    %354 = arith.addf %350, %353 : vector<2x64xf32>
    %355 = math.tanh %354 : vector<2x64xf32>
    %cst_59 = arith.constant 1.000000e+00 : f32
    %356 = vector.broadcast %cst_59 : f32 to vector<2x64xf32>
    %357 = arith.subf %356, %349 : vector<2x64xf32>
    %358 = arith.mulf %357, %355 : vector<2x64xf32>
    %359 = arith.mulf %349, %337 : vector<2x64xf32>
    %360 = arith.addf %358, %359 : vector<2x64xf32>
    %361 = vector.extract_strided_slice %219 {offsets = [12, 0], sizes = [2, 192], strides = [1, 1]} : vector<16x192xf32> to vector<2x192xf32>
    %cst_60 = arith.constant dense<0.000000e+00> : vector<2x192xf32>
    %362 = tpu.matmul %360, %214, %cst_60 {dimension_numbers = #tpu.dot_dimension_numbers<[1], [0], [0], [1], [0, 0, 1, 1], [], []>} : vector<2x64xf32>, vector<64x192xf32>, vector<2x192xf32> -> vector<2x192xf32>
    %363 = vector.extract_strided_slice %361 {offsets = [0, 0], sizes = [2, 128], strides = [1, 1]} : vector<2x192xf32> to vector<2x128xf32>
    %364 = vector.extract_strided_slice %362 {offsets = [0, 0], sizes = [2, 128], strides = [1, 1]} : vector<2x192xf32> to vector<2x128xf32>
    %365 = arith.addf %363, %364 : vector<2x128xf32>
    %366 = arith.negf %365 : vector<2x128xf32>
    %367 = math.exp %366 : vector<2x128xf32>
    %cst_61 = arith.constant 1.000000e+00 : f32
    %368 = vector.broadcast %cst_61 : f32 to vector<2x128xf32>
    %369 = arith.addf %368, %367 : vector<2x128xf32>
    %370 = arith.divf %368, %369 : vector<2x128xf32>
    %371 = vector.extract_strided_slice %370 {offsets = [0, 0], sizes = [2, 64], strides = [1, 1]} : vector<2x128xf32> to vector<2x64xf32>
    %372 = vector.extract_strided_slice %370 {offsets = [0, 64], sizes = [2, 64], strides = [1, 1]} : vector<2x128xf32> to vector<2x64xf32>
    %373 = vector.extract_strided_slice %361 {offsets = [0, 128], sizes = [2, 64], strides = [1, 1]} : vector<2x192xf32> to vector<2x64xf32>
    %374 = vector.extract_strided_slice %362 {offsets = [0, 128], sizes = [2, 64], strides = [1, 1]} : vector<2x192xf32> to vector<2x64xf32>
    %375 = arith.addf %374, %221 : vector<2x64xf32>
    %376 = arith.mulf %371, %375 : vector<2x64xf32>
    %377 = arith.addf %373, %376 : vector<2x64xf32>
    %378 = math.tanh %377 : vector<2x64xf32>
    %cst_62 = arith.constant 1.000000e+00 : f32
    %379 = vector.broadcast %cst_62 : f32 to vector<2x64xf32>
    %380 = arith.subf %379, %372 : vector<2x64xf32>
    %381 = arith.mulf %380, %378 : vector<2x64xf32>
    %382 = arith.mulf %372, %360 : vector<2x64xf32>
    %383 = arith.addf %381, %382 : vector<2x64xf32>
    %384 = vector.extract_strided_slice %219 {offsets = [14, 0], sizes = [2, 192], strides = [1, 1]} : vector<16x192xf32> to vector<2x192xf32>
    %cst_63 = arith.constant dense<0.000000e+00> : vector<2x192xf32>
    %385 = tpu.matmul %383, %214, %cst_63 {dimension_numbers = #tpu.dot_dimension_numbers<[1], [0], [0], [1], [0, 0, 1, 1], [], []>} : vector<2x64xf32>, vector<64x192xf32>, vector<2x192xf32> -> vector<2x192xf32>
    %386 = vector.extract_strided_slice %384 {offsets = [0, 0], sizes = [2, 128], strides = [1, 1]} : vector<2x192xf32> to vector<2x128xf32>
    %387 = vector.extract_strided_slice %385 {offsets = [0, 0], sizes = [2, 128], strides = [1, 1]} : vector<2x192xf32> to vector<2x128xf32>
    %388 = arith.addf %386, %387 : vector<2x128xf32>
    %389 = arith.negf %388 : vector<2x128xf32>
    %390 = math.exp %389 : vector<2x128xf32>
    %cst_64 = arith.constant 1.000000e+00 : f32
    %391 = vector.broadcast %cst_64 : f32 to vector<2x128xf32>
    %392 = arith.addf %391, %390 : vector<2x128xf32>
    %393 = arith.divf %391, %392 : vector<2x128xf32>
    %394 = vector.extract_strided_slice %393 {offsets = [0, 0], sizes = [2, 64], strides = [1, 1]} : vector<2x128xf32> to vector<2x64xf32>
    %395 = vector.extract_strided_slice %393 {offsets = [0, 64], sizes = [2, 64], strides = [1, 1]} : vector<2x128xf32> to vector<2x64xf32>
    %396 = vector.extract_strided_slice %384 {offsets = [0, 128], sizes = [2, 64], strides = [1, 1]} : vector<2x192xf32> to vector<2x64xf32>
    %397 = vector.extract_strided_slice %385 {offsets = [0, 128], sizes = [2, 64], strides = [1, 1]} : vector<2x192xf32> to vector<2x64xf32>
    %398 = arith.addf %397, %221 : vector<2x64xf32>
    %399 = arith.mulf %394, %398 : vector<2x64xf32>
    %400 = arith.addf %396, %399 : vector<2x64xf32>
    %401 = math.tanh %400 : vector<2x64xf32>
    %cst_65 = arith.constant 1.000000e+00 : f32
    %402 = vector.broadcast %cst_65 : f32 to vector<2x64xf32>
    %403 = arith.subf %402, %395 : vector<2x64xf32>
    %404 = arith.mulf %403, %401 : vector<2x64xf32>
    %405 = arith.mulf %395, %383 : vector<2x64xf32>
    %406 = arith.addf %404, %405 : vector<2x64xf32>
    %407 = tpu.concatenate %245, %268, %291, %314, %337, %360, %383, %406 in 0 : vector<2x64xf32>, vector<2x64xf32>, vector<2x64xf32>, vector<2x64xf32>, vector<2x64xf32>, vector<2x64xf32>, vector<2x64xf32>, vector<2x64xf32> -> vector<16x64xf32>
    %cst_66 = arith.constant dense<0.000000e+00> : vector<16x64xf32>
    %408 = tpu.matmul %11, %407, %cst_66 {dimension_numbers = #tpu.dot_dimension_numbers<[1], [0], [0], [1], [0, 0, 1, 1], [], []>} : vector<16x16xf32>, vector<16x64xf32>, vector<16x64xf32> -> vector<16x64xf32>
    %409 = vector.extract_strided_slice %407 {offsets = [0, 0], sizes = [16, 32], strides = [1, 1]} : vector<16x64xf32> to vector<16x32xf32>
    %410 = vector.extract_strided_slice %408 {offsets = [0, 32], sizes = [16, 32], strides = [1, 1]} : vector<16x64xf32> to vector<16x32xf32>
    %411 = tpu.concatenate %409, %410 in 1 : vector<16x32xf32>, vector<16x32xf32> -> vector<16x64xf32>
    %c88 = arith.constant 88 : index
    %c0_67 = arith.constant 0 : index
    %412 = vector.load %arg3[%c88, %c0_67] : memref<172x32xf32, #tpu.memory_space<vmem>>, vector<64x1xf32>
    %c171 = arith.constant 171 : index
    %c0_68 = arith.constant 0 : index
    %413 = vector.load %arg3[%c171, %c0_68] : memref<172x32xf32, #tpu.memory_space<vmem>>, vector<1x1xf32>
    %c24 = arith.constant 24 : index
    %c0_69 = arith.constant 0 : index
    %414 = vector.load %arg3[%c24, %c0_69] : memref<172x32xf32, #tpu.memory_space<vmem>>, vector<64x32xf32>
    %c170 = arith.constant 170 : index
    %c0_70 = arith.constant 0 : index
    %415 = vector.load %arg3[%c170, %c0_70] : memref<172x32xf32, #tpu.memory_space<vmem>>, vector<1x32xf32>
    %c168 = arith.constant 168 : index
    %c0_71 = arith.constant 0 : index
    %416 = vector.load %arg3[%c168, %c0_71] : memref<172x32xf32, #tpu.memory_space<vmem>>, vector<2x16xf32>
    %cst_72 = arith.constant dense<0.000000e+00> : vector<16x1xf32>
    %417 = tpu.matmul %411, %412, %cst_72 {dimension_numbers = #tpu.dot_dimension_numbers<[1], [0], [0], [1], [0, 0, 1, 1], [], []>} : vector<16x64xf32>, vector<64x1xf32>, vector<16x1xf32> -> vector<16x1xf32>
    %418 = vector.broadcast %413 : vector<1x1xf32> to vector<16x1xf32>
    %419 = arith.addf %417, %418 : vector<16x1xf32>
    %cst_73 = arith.constant dense<0xFF800000> : vector<1xf32>
    %420 = vector.multi_reduction <maximumf>, %419, %cst_73 [0] : vector<16x1xf32> to vector<1xf32>
    %421 = vector.shape_cast %420 : vector<1xf32> to vector<1x1xf32>
    %422 = vector.broadcast %421 : vector<1x1xf32> to vector<16x1xf32>
    %423 = arith.subf %419, %422 : vector<16x1xf32>
    %424 = math.exp %423 : vector<16x1xf32>
    %425 = vector.broadcast %424 : vector<16x1xf32> to vector<16x64xf32>
    %426 = arith.mulf %425, %411 : vector<16x64xf32>
    %427 = tpu.concatenate %424, %426 in 1 : vector<16x1xf32>, vector<16x64xf32> -> vector<16x65xf32>
    %cst_74 = arith.constant dense<0.000000e+00> : vector<2x65xf32>
    %428 = tpu.matmul %416, %427, %cst_74 {dimension_numbers = #tpu.dot_dimension_numbers<[1], [0], [0], [1], [0, 0, 1, 1], [], []>} : vector<2x16xf32>, vector<16x65xf32>, vector<2x65xf32> -> vector<2x65xf32>
    %429 = vector.extract_strided_slice %428 {offsets = [0, 1], sizes = [2, 64], strides = [1, 1]} : vector<2x65xf32> to vector<2x64xf32>
    %430 = vector.extract_strided_slice %428 {offsets = [0, 0], sizes = [2, 1], strides = [1, 1]} : vector<2x65xf32> to vector<2x1xf32>
    %431 = vector.broadcast %430 : vector<2x1xf32> to vector<2x64xf32>
    %432 = arith.divf %429, %431 : vector<2x64xf32>
    %cst_75 = arith.constant dense<0.000000e+00> : vector<2x32xf32>
    %433 = tpu.matmul %432, %414, %cst_75 {dimension_numbers = #tpu.dot_dimension_numbers<[1], [0], [0], [1], [0, 0, 1, 1], [], []>} : vector<2x64xf32>, vector<64x32xf32>, vector<2x32xf32> -> vector<2x32xf32>
    %434 = vector.broadcast %415 : vector<1x32xf32> to vector<2x32xf32>
    %435 = arith.addf %433, %434 : vector<2x32xf32>
    %c0_76 = arith.constant 0 : index
    %c0_77 = arith.constant 0 : index
    %436 = vector.load %arg4[%c0_76, %c0_77] : memref<2x32xf32, #tpu.memory_space<vmem>>, vector<2x32xf32>
    tpu.vector_store %arg4[%c0_76, %c0_77], %435 {strides = array<i32>} : memref<2x32xf32, #tpu.memory_space<vmem>>, vector<2x32xf32>,
    return
  }
  func.func @transform_0(%arg0: i32) -> (i32, i32) {
    %c0_i32 = arith.constant 0 : i32
    %c0_i32_0 = arith.constant 0 : i32
    %c0_i32_1 = arith.constant 0 : i32
    return %c0_i32, %c0_i32_0 : i32, i32
  }
  func.func @transform_1(%arg0: i32) -> (i32, i32) {
    %c0_i32 = arith.constant 0 : i32
    %c0_i32_0 = arith.constant 0 : i32
    %c0_i32_1 = arith.constant 0 : i32
    return %c0_i32, %c0_i32_0 : i32, i32
  }
  func.func @transform_2(%arg0: i32) -> (i32, i32) {
    %c0_i32 = arith.constant 0 : i32
    %c0_i32_0 = arith.constant 0 : i32
    %c0_i32_1 = arith.constant 0 : i32
    return %c0_i32, %c0_i32_0 : i32, i32
  }
  func.func @transform_3(%arg0: i32) -> (i32, i32) {
    %c0_i32 = arith.constant 0 : i32
    %c0_i32_0 = arith.constant 0 : i32
    %c0_i32_1 = arith.constant 0 : i32
    return %c0_i32, %c0_i32_0 : i32, i32
  }
}

</mosaic_0001>

<llo_original>
// kernel: tpu_custom_call.1
$region0: #{tpu_custom_call.1}
  #allocation0 [shape = 'u32[]', space=smem, size = 0x4, offset = 0x4, fixed_abs, tag = 'smem constant byte address 0x4 - core index']
  #allocation1 [shape = 'u32[144,128]{1,0:T(1,128)}', space=vmem, size = 0x12000, scoped, tag = 'internal scratch']
  %s0 = inlined_call_operand.vmem [shape: s32[32,1], index: 0, kind: input, shape index: {}]
  %s1 = inlined_call_operand.vmem [shape: f32[324,192], index: 1, kind: input, shape index: {}]
  %s2 = inlined_call_operand.vmem [shape: f32[172,32], index: 2, kind: input, shape index: {}]
  %s3 = inlined_call_operand.hbm [shape: f32[2,32], index: 3, kind: output, shape index: {}]
  %s4 = sld [smem:[#allocation0]]
  $region22: #{tpu_custom_call.1} parent=0
    _
  %s6 = ssub.s32 1, %s4
  %s7 = scalar_select 0, %s6, %s4
  $region1: #{tpu_custom_call.1} parent=0
    #allocation2 [shape = 'u8[1024]{0}', space=vmem, size = 0x400, scoped, tag = 'output window, operand 0, single buffered']
    #allocation3 [shape = 's32[1]{0}', space=sflag, size = 0x4, scoped, tag = 'scoped memory for tpu_custom_call.1']
    %8 = vsyncpa [#allocation3], 0
    // Predicated region
    $region2: #{tpu_custom_call.1} parent=1 // pred_check
      _
    $region3: #{tpu_custom_call.1} parent=1 // pred_check_branch
      %10 = sbr.rel (0) target = $region5
    $region4: #{tpu_custom_call.1} parent=1 // pred_region
      _
    $region5: #{tpu_custom_call.1} parent=1 // pred_fallthru
      _
    // Predicated region
    $region6: #{tpu_custom_call.1} parent=1 // pred_check
      _
    $region7: #{tpu_custom_call.1} parent=1 // pred_check_branch
      %12 = sbr.rel (0) target = $region9
    $region8: #{tpu_custom_call.1} parent=1 // pred_region
      _
    $region9: #{tpu_custom_call.1} parent=1 // pred_fallthru
      _
    // Predicated region
    $region10: #{tpu_custom_call.1} parent=1 // pred_check
      _
    $region11: #{tpu_custom_call.1} parent=1 // pred_check_branch
      %14 = sbr.rel (0) target = $region13
    $region12: #{tpu_custom_call.1} parent=1 // pred_region
      _
    $region13: #{tpu_custom_call.1} parent=1 // pred_fallthru
      _
    %v15 = vld [vmem:[%s0] sm:$0xff]
    %v16 = vld [vmem:[%s0 + $0x8] sm:$0xff]
    %v17 = vld [vmem:[%s0 + $0x10] sm:$0xff]
    %v18 = vld [vmem:[%s0 + $0x18] sm:$0xff]
    %v19 = vlaneseq
    %v20 = vand.u32 %v19, 127
    %21 = vset.pattern.permute.xlu0 0
    %22 = vperm.xlu0 %21, %v15
    %v23 = vpop.permute.xlu0 %22
    %24 = vset.pattern.permute.xlu0 0
    %25 = vperm.xlu0 %24, %v16
    %v26 = vpop.permute.xlu0 %25
    %27 = vset.pattern.permute.xlu0 0
    %28 = vperm.xlu0 %27, %v17
    %v29 = vpop.permute.xlu0 %28
    %30 = vset.pattern.permute.xlu0 0
    %31 = vperm.xlu0 %30, %v18
    %v32 = vpop.permute.xlu0 %31
    %vm33 = vcmp.eq.s32.totalorder %v20, %v23
    %vm34 = vcmp.eq.s32.totalorder %v20, %v26
    %vm35 = vcmp.eq.s32.totalorder %v20, %v29
    %vm36 = vcmp.eq.s32.totalorder %v20, %v32
    %v37 = vsel %vm33, 1, 0
    %v38 = vsel %vm34, 1, 0
    %v39 = vsel %vm35, 1, 0
    %v40 = vsel %vm36, 1, 0
    %v41 = vcvt.s32.f32 %v37
    %v42 = vcvt.s32.f32 %v38
    %v43 = vcvt.s32.f32 %v39
    %v44 = vcvt.s32.f32 %v40
    %v45 = vld [vmem:[%s2] sm:$0xff]
    %v46 = vld [vmem:[%s2 + $0x8] sm:$0xff]
    %v47 = vld [vmem:[%s2 + $0x10] sm:$0x1f]
    %vm48 = vcmask 171008
    %v50 = vsel %vm48, %v41, 0
    %v53 = vsel %vm48, %v42, 0
    %v56 = vsel %vm48, %v43, 0
    %v59 = vsel %vm48, %v44, 0
    %vm61 = vcmask 1044480
    %v63 = vsel %vm61, %v47, 0
    %65 = vmatprep.subr.mxu0 0.0
    %66 = vmatpush1.msra.mxu0 0.0
    %67 = vmatprep.subr.mxu0 0.0
    %68 = vmatpush1.msra.mxu0 0.0
    %69 = vmatprep.subr.mxu0 0.0
    %70 = vmatpush1.msra.mxu0 0.0
    %71 = vmatprep.subr.mxu0 0.0
    %72 = vmatpush1.msra.mxu0 0.0
    %73 = vmatprep.subr.mxu0 0.0
    %74 = vmatpush1.msra.mxu0 0.0
    %75 = vmatprep.subr.mxu0 0.0
    %76 = vmatpush1.msra.mxu0 0.0
    %77 = vmatprep.subr.mxu0 0.0
    %78 = vmatpush1.msra.mxu0 0.0
    %79 = vmatprep.subr.mxu0 0.0
    %80 = vmatpush1.msra.mxu0 0.0
    %81 = vmatprep.subr.mxu0 0.0
    %82 = vmatpush1.msra.mxu0 0.0
    %83 = vmatprep.subr.mxu0 0.0
    %84 = vmatpush1.msra.mxu0 0.0
    %85 = vmatprep.subr.mxu0 0.0
    %86 = vmatpush1.msra.mxu0 0.0
    %87 = vmatprep.subr.mxu0 0.0
    %88 = vmatpush1.msra.mxu0 0.0
    %89 = vmatprep.subr.mxu0 0.0
    %90 = vmatpush1.msra.mxu0 0.0
    %91 = vmatprep.subr.mxu0 0.0
    %92 = vmatpush1.msra.mxu0 %v63
    %93 = vmatprep.subr.mxu0 0.0
    %94 = vmatpush1.msra.mxu0 %v46
    %95 = vmatprep.subr.mxu0 0.0
    %96 = vmatpush1.msra.mxu0 %v45
    %97 = vmatprep.subr.mxu0 0.0
    %98 = vmatpush2.msra.mxu0 0.0
    %99 = vmatprep.subr.mxu0 0.0
    %100 = vmatpush2.msra.mxu0 0.0
    %101 = vmatprep.subr.mxu0 0.0
    %102 = vmatpush2.msra.mxu0 0.0
    %103 = vmatprep.subr.mxu0 0.0
    %104 = vmatpush2.msra.mxu0 0.0
    %105 = vmatprep.subr.mxu0 0.0
    %106 = vmatpush2.msra.mxu0 0.0
    %107 = vmatprep.subr.mxu0 0.0
    %108 = vmatpush2.msra.mxu0 0.0
    %109 = vmatprep.subr.mxu0 0.0
    %110 = vmatpush2.msra.mxu0 0.0
    %111 = vmatprep.subr.mxu0 0.0
    %112 = vmatpush2.msra.mxu0 0.0
    %113 = vmatprep.subr.mxu0 0.0
    %114 = vmatpush2.msra.mxu0 0.0
    %115 = vmatprep.subr.mxu0 0.0
    %116 = vmatpush2.msra.mxu0 0.0
    %117 = vmatprep.subr.mxu0 0.0
    %118 = vmatpush2.msra.mxu0 0.0
    %119 = vmatprep.subr.mxu0 0.0
    %120 = vmatpush2.msra.mxu0 0.0
    %121 = vmatprep.subr.mxu0 0.0
    %122 = vmatpush2.msra.mxu0 0.0
    %123 = vmatprep.subr.mxu0 0.0
    %124 = vmatpush2.msra.mxu0 0.0
    %125 = vmatprep.subr.mxu0 0.0
    %126 = vmatpush2.msra.mxu0 0.0
    %127 = vmatprep.subr.mxu0 0.0
    %128 = vmatpush2.msra.mxu0 0.0
    %129 = vmatprep.mubr.f32.mxu0 0.0
    %130 = vmatmul.mubr.f32.gmra.mxu0 %v50
    %v131 = vpop.f32.mrf.mxu0
    %v132 = vadd.f32 0.0, %v131
    %v133 = vpop.f32.mrf.mxu0
    %134 = vmatprep.mubr.f32.mxu0 0.0
    %135 = vmatmul.mubr.f32.gmra.mxu0 %v53
    %v136 = vpop.f32.mrf.mxu0
    %v137 = vadd.f32 0.0, %v136
    %v138 = vpop.f32.mrf.mxu0
    %139 = vmatprep.mubr.f32.mxu0 0.0
    %140 = vmatmul.mubr.f32.gmra.mxu0 %v56
    %v141 = vpop.f32.mrf.mxu0
    %v142 = vadd.f32 0.0, %v141
    %v143 = vpop.f32.mrf.mxu0
    %144 = vmatprep.mubr.f32.mxu0 0.0
    %145 = vmatmul.mubr.f32.gmra.mxu0 %v59
    %v146 = vpop.f32.mrf.mxu0
    %v147 = vadd.f32 0.0, %v146
    %v148 = vpop.f32.mrf.mxu0
    %149 = vdwg.mxu0
    %152 = vrot.lane.b32.xlu0 %v142, 32
    %v153 = vpop.permute.xlu0 %152
    %154 = vrot.lane.b32.xlu0 %v147, 32
    %v155 = vpop.permute.xlu0 %154
    %vm158 = vcmask 261120
    %v159 = vsel %vm158, %v132, %v153
    %v160 = vsel %vm158, %v137, %v155
    %v161 = vld [vmem:[%s2 + $0x98] sm:$0xff]
    %v162 = vld [vmem:[%s2 + $0xa0] sm:$0xff]
    %v163 = vld [vmem:[%s1] sm:$0xff]
    %v164 = vld [vmem:[%s1 + $0x8] sm:$0xff]
    %v165 = vld [vmem:[%s1 + $0x10] sm:$0xff]
    %v166 = vld [vmem:[%s1 + $0x18] sm:$0xff]
    %v167 = vld [vmem:[%s1 + $0x20] sm:$0xff]
    %v168 = vld [vmem:[%s1 + $0x28] sm:$0xff]
    %v169 = vld [vmem:[%s1 + $0x30] sm:$0xff]
    %v170 = vld [vmem:[%s1 + $0x38] sm:$0xff]
    %v171 = vld [vmem:[%s1 + $0x40] sm:$0xff]
    %v172 = vld [vmem:[%s1 + $0x48] sm:$0xff]
    %v173 = vld [vmem:[%s1 + $0x50] sm:$0xff]
    %v174 = vld [vmem:[%s1 + $0x58] sm:$0xff]
    %v175 = vld [vmem:[%s1 + $0x60] sm:$0xff]
    %v176 = vld [vmem:[%s1 + $0x68] sm:$0xff]
    %v177 = vld [vmem:[%s1 + $0x70] sm:$0xff]
    %v178 = vld [vmem:[%s1 + $0x78] sm:$0xff]
    %v179 = vld [vmem:[%s1 + $0x80] sm:$0xff]
    %v180 = vld [vmem:[%s1 + $0x88] sm:$0xff]
    %v181 = vld [vmem:[%s1 + $0x90] sm:$0xff]
    %v182 = vld [vmem:[%s1 + $0x98] sm:$0xff]
    %v183 = vld [vmem:[%s1 + $0xa0] sm:$0xff]
    %v184 = vld [vmem:[%s1 + $0xa8] sm:$0xff]
    %v185 = vld [vmem:[%s1 + $0xb0] sm:$0xff]
    %v186 = vld [vmem:[%s1 + $0xb8] sm:$0xff]
    %v187 = vld [vmem:[%s1 + $0xc0] sm:$0xff]
    %v188 = vld [vmem:[%s1 + $0xc8] sm:$0xff]
    %v189 = vld [vmem:[%s1 + $0xd0] sm:$0xff]
    %v190 = vld [vmem:[%s1 + $0xd8] sm:$0xff]
    %v191 = vld [vmem:[%s1 + $0xe0] sm:$0xff]
    %v192 = vld [vmem:[%s1 + $0xe8] sm:$0xff]
    %v193 = vld [vmem:[%s1 + $0xf0] sm:$0xff]
    %v194 = vld [vmem:[%s1 + $0xf8] sm:$0xff]
    %s195 = scalar_lea.vmem %s1, 640
    %v196 = vld [vmem:[%s195] ss:$8 sm:$0x3]
    %v197 = vld [vmem:[%s1 + $0x282] ss:$0 sm:$0xff]
    %v199 = vlaneseq
    %v200 = vshrl.u32 %v199, 7
    %v201 = vsub.s32 0, %v200
    %v202 = vrot.slane %v196, %v201
    %v203 = vlaneseq
    %v204 = vshrl.u32 %v203, 7
    %v205 = vsub.s32 1, %v204
    %v206 = vrot.slane %v196, %v205
    %vm209 = vcmask 523264
    %v211 = vsel %vm209, %v159, 0
    %v214 = vsel %vm209, %v160, 0
    %216 = vmatprep.subr.mxu0 0.0
    %217 = vmatpush1.msra.mxu0 0.0
    %218 = vmatprep.subr.mxu0 0.0
    %219 = vmatpush1.msra.mxu0 0.0
    %220 = vmatprep.subr.mxu0 0.0
    %221 = vmatpush1.msra.mxu0 0.0
    %222 = vmatprep.subr.mxu0 0.0
    %223 = vmatpush1.msra.mxu0 0.0
    %224 = vmatprep.subr.mxu0 0.0
    %225 = vmatpush1.msra.mxu0 0.0
    %226 = vmatprep.subr.mxu0 0.0
    %227 = vmatpush1.msra.mxu0 0.0
    %228 = vmatprep.subr.mxu0 0.0
    %229 = vmatpush1.msra.mxu0 0.0
    %230 = vmatprep.subr.mxu0 0.0
    %231 = vmatpush1.msra.mxu0 0.0
    %232 = vmatprep.subr.mxu0 %v178
    %233 = vmatpush1.msra.mxu0 %v177
    %234 = vmatprep.subr.mxu0 %v176
    %235 = vmatpush1.msra.mxu0 %v175
    %236 = vmatprep.subr.mxu0 %v174
    %237 = vmatpush1.msra.mxu0 %v173
    %238 = vmatprep.subr.mxu0 %v172
    %239 = vmatpush1.msra.mxu0 %v171
    %240 = vmatprep.subr.mxu0 %v170
    %241 = vmatpush1.msra.mxu0 %v169
    %242 = vmatprep.subr.mxu0 %v168
    %243 = vmatpush1.msra.mxu0 %v167
    %244 = vmatprep.subr.mxu0 %v166
    %245 = vmatpush1.msra.mxu0 %v165
    %246 = vmatprep.subr.mxu0 %v164
    %247 = vmatpush1.msra.mxu0 %v163
    %248 = vmatprep.subr.mxu0 0.0
    %249 = vmatpush2.msra.mxu0 0.0
    %250 = vmatprep.subr.mxu0 0.0
    %251 = vmatpush2.msra.mxu0 0.0
    %252 = vmatprep.subr.mxu0 0.0
    %253 = vmatpush2.msra.mxu0 0.0
    %254 = vmatprep.subr.mxu0 0.0
    %255 = vmatpush2.msra.mxu0 0.0
    %256 = vmatprep.subr.mxu0 0.0
    %257 = vmatpush2.msra.mxu0 0.0
    %258 = vmatprep.subr.mxu0 0.0
    %259 = vmatpush2.msra.mxu0 0.0
    %260 = vmatprep.subr.mxu0 0.0
    %261 = vmatpush2.msra.mxu0 0.0
    %262 = vmatprep.subr.mxu0 0.0
    %263 = vmatpush2.msra.mxu0 0.0
    %264 = vmatprep.subr.mxu0 0.0
    %265 = vmatpush2.msra.mxu0 0.0
    %266 = vmatprep.subr.mxu0 0.0
    %267 = vmatpush2.msra.mxu0 0.0
    %268 = vmatprep.subr.mxu0 0.0
    %269 = vmatpush2.msra.mxu0 0.0
    %270 = vmatprep.subr.mxu0 0.0
    %271 = vmatpush2.msra.mxu0 0.0
    %272 = vmatprep.subr.mxu0 0.0
    %273 = vmatpush2.msra.mxu0 0.0
    %274 = vmatprep.subr.mxu0 0.0
    %275 = vmatpush2.msra.mxu0 0.0
    %276 = vmatprep.subr.mxu0 0.0
    %277 = vmatpush2.msra.mxu0 0.0
    %278 = vmatprep.subr.mxu0 0.0
    %279 = vmatpush2.msra.mxu0 0.0
    %280 = vmatprep.mubr.f32.mxu0 0.0
    %281 = vmatmul.mubr.f32.gmra.mxu0 %v211
    %v282 = vpop.f32.mrf.mxu0
    %v283 = vadd.f32 %v202, %v282
    %v284 = vpop.f32.mrf.mxu0
    %v285 = vadd.f32 %v206, %v284
    %286 = vmatprep.mubr.f32.mxu0 0.0
    %287 = vmatmul.mubr.f32.gmra.mxu0 %v214
    %v288 = vpop.f32.mrf.mxu0
    %v289 = vadd.f32 %v202, %v288
    %v290 = vpop.f32.mrf.mxu0
    %v291 = vadd.f32 %v206, %v290
    %292 = vdwg.mxu0
    %v294 = vsel %vm209, 0.0, 0
    %296 = vmatprep.subr.mxu0 0.0
    %297 = vmatpush1.msra.mxu0 0.0
    %298 = vmatprep.subr.mxu0 0.0
    %299 = vmatpush1.msra.mxu0 0.0
    %300 = vmatprep.subr.mxu0 0.0
    %301 = vmatpush1.msra.mxu0 0.0
    %302 = vmatprep.subr.mxu0 0.0
    %303 = vmatpush1.msra.mxu0 0.0
    %304 = vmatprep.subr.mxu0 0.0
    %305 = vmatpush1.msra.mxu0 0.0
    %306 = vmatprep.subr.mxu0 0.0
    %307 = vmatpush1.msra.mxu0 0.0
    %308 = vmatprep.subr.mxu0 0.0
    %309 = vmatpush1.msra.mxu0 0.0
    %310 = vmatprep.subr.mxu0 0.0
    %311 = vmatpush1.msra.mxu0 0.0
    %312 = vmatprep.subr.mxu0 %v194
    %313 = vmatpush1.msra.mxu0 %v193
    %314 = vmatprep.subr.mxu0 %v192
    %315 = vmatpush1.msra.mxu0 %v191
    %316 = vmatprep.subr.mxu0 %v190
    %317 = vmatpush1.msra.mxu0 %v189
    %318 = vmatprep.subr.mxu0 %v188
    %319 = vmatpush1.msra.mxu0 %v187
    %320 = vmatprep.subr.mxu0 %v186
    %321 = vmatpush1.msra.mxu0 %v185
    %322 = vmatprep.subr.mxu0 %v184
    %323 = vmatpush1.msra.mxu0 %v183
    %324 = vmatprep.subr.mxu0 %v182
    %325 = vmatpush1.msra.mxu0 %v181
    %326 = vmatprep.subr.mxu0 %v180
    %327 = vmatpush1.msra.mxu0 %v179
    %328 = vmatprep.subr.mxu0 0.0
    %329 = vmatpush2.msra.mxu0 0.0
    %330 = vmatprep.subr.mxu0 0.0
    %331 = vmatpush2.msra.mxu0 0.0
    %332 = vmatprep.subr.mxu0 0.0
    %333 = vmatpush2.msra.mxu0 0.0
    %334 = vmatprep.subr.mxu0 0.0
    %335 = vmatpush2.msra.mxu0 0.0
    %336 = vmatprep.subr.mxu0 0.0
    %337 = vmatpush2.msra.mxu0 0.0
    %338 = vmatprep.subr.mxu0 0.0
    %339 = vmatpush2.msra.mxu0 0.0
    %340 = vmatprep.subr.mxu0 0.0
    %341 = vmatpush2.msra.mxu0 0.0
    %342 = vmatprep.subr.mxu0 0.0
    %343 = vmatpush2.msra.mxu0 0.0
    %344 = vmatprep.subr.mxu0 0.0
    %345 = vmatpush2.msra.mxu0 0.0
    %346 = vmatprep.subr.mxu0 0.0
    %347 = vmatpush2.msra.mxu0 0.0
    %348 = vmatprep.subr.mxu0 0.0
    %349 = vmatpush2.msra.mxu0 0.0
    %350 = vmatprep.subr.mxu0 0.0
    %351 = vmatpush2.msra.mxu0 0.0
    %352 = vmatprep.subr.mxu0 0.0
    %353 = vmatpush2.msra.mxu0 0.0
    %354 = vmatprep.subr.mxu0 0.0
    %355 = vmatpush2.msra.mxu0 0.0
    %356 = vmatprep.subr.mxu0 0.0
    %357 = vmatpush2.msra.mxu0 0.0
    %358 = vmatprep.subr.mxu0 0.0
    %359 = vmatpush2.msra.mxu0 0.0
    %360 = vmatprep.mubr.f32.mxu0 0.0
    %361 = vmatmul.mubr.f32.gmra.mxu0 %v294
    %v362 = vpop.f32.mrf.mxu0
    %v363 = vadd.f32 0.0, %v362
    %v364 = vpop.f32.mrf.mxu0
    %v365 = vadd.f32 0.0, %v364
    %366 = vdwg.mxu0
    %v367 = vadd.f32 %v283, %v363
    %v368 = vxor.u32 %v367, 2147483648
    %v369 = vmul.f32 %v368, 1.442695
    %v370 = vpow.pop %v369
    %v371 = vadd.f32 %v370, 1.0
    %v372 = vrcp.pop %v371
    %v373 = vmul.f32 1.0, %v372
    %v374 = vadd.f32 %v365, %v197
    %v375 = vmul.f32 %v373, %v374
    %v376 = vadd.f32 %v285, %v375
    %v377 = vtanh.pop %v376
    %v378 = vsub.f32 1.0, %v373
    %380 = vrot.lane.b32.xlu0 %v377, 64
    %v381 = vpop.permute.xlu0 %380
    %v383 = vmul.f32 %v378, %v381
    %v384 = vmul.f32 %v373, 0.0
    %v385 = vadd.f32 %v383, %v384
    %387 = vrot.lane.b32.xlu0 %v385, 64
    %v388 = vpop.permute.xlu0 %387
    %v389 = vsel %vm209, %v388, 0
    %391 = vmatprep.subr.mxu0 0.0
    %392 = vmatpush1.msra.mxu0 0.0
    %393 = vmatprep.subr.mxu0 0.0
    %394 = vmatpush1.msra.mxu0 0.0
    %395 = vmatprep.subr.mxu0 0.0
    %396 = vmatpush1.msra.mxu0 0.0
    %397 = vmatprep.subr.mxu0 0.0
    %398 = vmatpush1.msra.mxu0 0.0
    %399 = vmatprep.subr.mxu0 0.0
    %400 = vmatpush1.msra.mxu0 0.0
    %401 = vmatprep.subr.mxu0 0.0
    %402 = vmatpush1.msra.mxu0 0.0
    %403 = vmatprep.subr.mxu0 0.0
    %404 = vmatpush1.msra.mxu0 0.0
    %405 = vmatprep.subr.mxu0 0.0
    %406 = vmatpush1.msra.mxu0 0.0
    %407 = vmatprep.subr.mxu0 %v194
    %408 = vmatpush1.msra.mxu0 %v193
    %409 = vmatprep.subr.mxu0 %v192
    %410 = vmatpush1.msra.mxu0 %v191
    %411 = vmatprep.subr.mxu0 %v190
    %412 = vmatpush1.msra.mxu0 %v189
    %413 = vmatprep.subr.mxu0 %v188
    %414 = vmatpush1.msra.mxu0 %v187
    %415 = vmatprep.subr.mxu0 %v186
    %416 = vmatpush1.msra.mxu0 %v185
    %417 = vmatprep.subr.mxu0 %v184
    %418 = vmatpush1.msra.mxu0 %v183
    %419 = vmatprep.subr.mxu0 %v182
    %420 = vmatpush1.msra.mxu0 %v181
    %421 = vmatprep.subr.mxu0 %v180
    %422 = vmatpush1.msra.mxu0 %v179
    %423 = vmatprep.subr.mxu0 0.0
    %424 = vmatpush2.msra.mxu0 0.0
    %425 = vmatprep.subr.mxu0 0.0
    %426 = vmatpush2.msra.mxu0 0.0
    %427 = vmatprep.subr.mxu0 0.0
    %428 = vmatpush2.msra.mxu0 0.0
    %429 = vmatprep.subr.mxu0 0.0
    %430 = vmatpush2.msra.mxu0 0.0
    %431 = vmatprep.subr.mxu0 0.0
    %432 = vmatpush2.msra.mxu0 0.0
    %433 = vmatprep.subr.mxu0 0.0
    %434 = vmatpush2.msra.mxu0 0.0
    %435 = vmatprep.subr.mxu0 0.0
    %436 = vmatpush2.msra.mxu0 0.0
    %437 = vmatprep.subr.mxu0 0.0
    %438 = vmatpush2.msra.mxu0 0.0
    %439 = vmatprep.subr.mxu0 0.0
    %440 = vmatpush2.msra.mxu0 0.0
    %441 = vmatprep.subr.mxu0 0.0
    %442 = vmatpush2.msra.mxu0 0.0
    %443 = vmatprep.subr.mxu0 0.0
    %444 = vmatpush2.msra.mxu0 0.0
    %445 = vmatprep.subr.mxu0 0.0
    %446 = vmatpush2.msra.mxu0 0.0
    %447 = vmatprep.subr.mxu0 0.0
    %448 = vmatpush2.msra.mxu0 0.0
    %449 = vmatprep.subr.mxu0 0.0
    %450 = vmatpush2.msra.mxu0 0.0
    %451 = vmatprep.subr.mxu0 0.0
    %452 = vmatpush2.msra.mxu0 0.0
    %453 = vmatprep.subr.mxu0 0.0
    %454 = vmatpush2.msra.mxu0 0.0
    %455 = vmatprep.mubr.f32.mxu0 0.0
    %456 = vmatmul.mubr.f32.gmra.mxu0 %v389
    %v457 = vpop.f32.mrf.mxu0
    %v458 = vadd.f32 0.0, %v457
    %v459 = vpop.f32.mrf.mxu0
    %v460 = vadd.f32 0.0, %v459
    %461 = vdwg.mxu0
    %v463 = vrot.slane %v458, 6
    %v465 = vadd.f32 %v283, %v463
    %v466 = vxor.u32 %v465, 2147483648
    %v467 = vmul.f32 %v466, 1.442695
    %v468 = vpow.pop %v467
    %v469 = vadd.f32 %v468, 1.0
    %v470 = vrcp.pop %v469
    %v471 = vmul.f32 1.0, %v470
    %v472 = vadd.f32 %v460, %v197
    %v474 = vrot.slane %v472, 6
    %v476 = vmul.f32 %v471, %v474
    %v477 = vadd.f32 %v285, %v476
    %v478 = vtanh.pop %v477
    %v479 = vsub.f32 1.0, %v471
    %481 = vrot.lane.b32.xlu0 %v478, 64
    %v482 = vpop.permute.xlu0 %481
    %v484 = vmul.f32 %v479, %v482
    %v485 = vrot.slane %v385, 6
    %v487 = vmul.f32 %v471, %v485
    %v488 = vadd.f32 %v484, %v487
    %v490 = vrot.slane %v488, 2
    %491 = vrot.lane.b32.xlu0 %v490, 64
    %v492 = vpop.permute.xlu0 %491
    %v493 = vsel %vm209, %v492, 0
    %495 = vmatprep.subr.mxu0 0.0
    %496 = vmatpush1.msra.mxu0 0.0
    %497 = vmatprep.subr.mxu0 0.0
    %498 = vmatpush1.msra.mxu0 0.0
    %499 = vmatprep.subr.mxu0 0.0
    %500 = vmatpush1.msra.mxu0 0.0
    %501 = vmatprep.subr.mxu0 0.0
    %502 = vmatpush1.msra.mxu0 0.0
    %503 = vmatprep.subr.mxu0 0.0
    %504 = vmatpush1.msra.mxu0 0.0
    %505 = vmatprep.subr.mxu0 0.0
    %506 = vmatpush1.msra.mxu0 0.0
    %507 = vmatprep.subr.mxu0 0.0
    %508 = vmatpush1.msra.mxu0 0.0
    %509 = vmatprep.subr.mxu0 0.0
    %510 = vmatpush1.msra.mxu0 0.0
    %511 = vmatprep.subr.mxu0 %v194
    %512 = vmatpush1.msra.mxu0 %v193
    %513 = vmatprep.subr.mxu0 %v192
    %514 = vmatpush1.msra.mxu0 %v191
    %515 = vmatprep.subr.mxu0 %v190
    %516 = vmatpush1.msra.mxu0 %v189
    %517 = vmatprep.subr.mxu0 %v188
    %518 = vmatpush1.msra.mxu0 %v187
    %519 = vmatprep.subr.mxu0 %v186
    %520 = vmatpush1.msra.mxu0 %v185
    %521 = vmatprep.subr.mxu0 %v184
    %522 = vmatpush1.msra.mxu0 %v183
    %523 = vmatprep.subr.mxu0 %v182
    %524 = vmatpush1.msra.mxu0 %v181
    %525 = vmatprep.subr.mxu0 %v180
    %526 = vmatpush1.msra.mxu0 %v179
    %527 = vmatprep.subr.mxu0 0.0
    %528 = vmatpush2.msra.mxu0 0.0
    %529 = vmatprep.subr.mxu0 0.0
    %530 = vmatpush2.msra.mxu0 0.0
    %531 = vmatprep.subr.mxu0 0.0
    %532 = vmatpush2.msra.mxu0 0.0
    %533 = vmatprep.subr.mxu0 0.0
    %534 = vmatpush2.msra.mxu0 0.0
    %535 = vmatprep.subr.mxu0 0.0
    %536 = vmatpush2.msra.mxu0 0.0
    %537 = vmatprep.subr.mxu0 0.0
    %538 = vmatpush2.msra.mxu0 0.0
    %539 = vmatprep.subr.mxu0 0.0
    %540 = vmatpush2.msra.mxu0 0.0
    %541 = vmatprep.subr.mxu0 0.0
    %542 = vmatpush2.msra.mxu0 0.0
    %543 = vmatprep.subr.mxu0 0.0
    %544 = vmatpush2.msra.mxu0 0.0
    %545 = vmatprep.subr.mxu0 0.0
    %546 = vmatpush2.msra.mxu0 0.0
    %547 = vmatprep.subr.mxu0 0.0
    %548 = vmatpush2.msra.mxu0 0.0
    %549 = vmatprep.subr.mxu0 0.0
    %550 = vmatpush2.msra.mxu0 0.0
    %551 = vmatprep.subr.mxu0 0.0
    %552 = vmatpush2.msra.mxu0 0.0
    %553 = vmatprep.subr.mxu0 0.0
    %554 = vmatpush2.msra.mxu0 0.0
    %555 = vmatprep.subr.mxu0 0.0
    %556 = vmatpush2.msra.mxu0 0.0
    %557 = vmatprep.subr.mxu0 0.0
    %558 = vmatpush2.msra.mxu0 0.0
    %559 = vmatprep.mubr.f32.mxu0 0.0
    %560 = vmatmul.mubr.f32.gmra.mxu0 %v493
    %v561 = vpop.f32.mrf.mxu0
    %v562 = vadd.f32 0.0, %v561
    %v563 = vpop.f32.mrf.mxu0
    %v564 = vadd.f32 0.0, %v563
    %565 = vdwg.mxu0
    %v567 = vrot.slane %v562, 4
    %v569 = vadd.f32 %v283, %v567
    %v570 = vxor.u32 %v569, 2147483648
    %v571 = vmul.f32 %v570, 1.442695
    %v572 = vpow.pop %v571
    %v573 = vadd.f32 %v572, 1.0
    %v574 = vrcp.pop %v573
    %v575 = vmul.f32 1.0, %v574
    %v576 = vadd.f32 %v564, %v197
    %v578 = vrot.slane %v576, 4
    %v580 = vmul.f32 %v575, %v578
    %v581 = vadd.f32 %v285, %v580
    %v582 = vtanh.pop %v581
    %v583 = vsub.f32 1.0, %v575
    %585 = vrot.lane.b32.xlu0 %v582, 64
    %v586 = vpop.permute.xlu0 %585
    %v588 = vmul.f32 %v583, %v586
    %v589 = vrot.slane %v488, 6
    %v591 = vmul.f32 %v575, %v589
    %v592 = vadd.f32 %v588, %v591
    %v594 = vrot.slane %v592, 4
    %595 = vrot.lane.b32.xlu0 %v594, 64
    %v596 = vpop.permute.xlu0 %595
    %v597 = vsel %vm209, %v596, 0
    %599 = vmatprep.subr.mxu0 0.0
    %600 = vmatpush1.msra.mxu0 0.0
    %601 = vmatprep.subr.mxu0 0.0
    %602 = vmatpush1.msra.mxu0 0.0
    %603 = vmatprep.subr.mxu0 0.0
    %604 = vmatpush1.msra.mxu0 0.0
    %605 = vmatprep.subr.mxu0 0.0
    %606 = vmatpush1.msra.mxu0 0.0
    %607 = vmatprep.subr.mxu0 0.0
    %608 = vmatpush1.msra.mxu0 0.0
    %609 = vmatprep.subr.mxu0 0.0
    %610 = vmatpush1.msra.mxu0 0.0
    %611 = vmatprep.subr.mxu0 0.0
    %612 = vmatpush1.msra.mxu0 0.0
    %613 = vmatprep.subr.mxu0 0.0
    %614 = vmatpush1.msra.mxu0 0.0
    %615 = vmatprep.subr.mxu0 %v194
    %616 = vmatpush1.msra.mxu0 %v193
    %617 = vmatprep.subr.mxu0 %v192
    %618 = vmatpush1.msra.mxu0 %v191
    %619 = vmatprep.subr.mxu0 %v190
    %620 = vmatpush1.msra.mxu0 %v189
    %621 = vmatprep.subr.mxu0 %v188
    %622 = vmatpush1.msra.mxu0 %v187
    %623 = vmatprep.subr.mxu0 %v186
    %624 = vmatpush1.msra.mxu0 %v185
    %625 = vmatprep.subr.mxu0 %v184
    %626 = vmatpush1.msra.mxu0 %v183
    %627 = vmatprep.subr.mxu0 %v182
    %628 = vmatpush1.msra.mxu0 %v181
    %629 = vmatprep.subr.mxu0 %v180
    %630 = vmatpush1.msra.mxu0 %v179
    %631 = vmatprep.subr.mxu0 0.0
    %632 = vmatpush2.msra.mxu0 0.0
    %633 = vmatprep.subr.mxu0 0.0
    %634 = vmatpush2.msra.mxu0 0.0
    %635 = vmatprep.subr.mxu0 0.0
    %636 = vmatpush2.msra.mxu0 0.0
    %637 = vmatprep.subr.mxu0 0.0
    %638 = vmatpush2.msra.mxu0 0.0
    %639 = vmatprep.subr.mxu0 0.0
    %640 = vmatpush2.msra.mxu0 0.0
    %641 = vmatprep.subr.mxu0 0.0
    %642 = vmatpush2.msra.mxu0 0.0
    %643 = vmatprep.subr.mxu0 0.0
    %644 = vmatpush2.msra.mxu0 0.0
    %645 = vmatprep.subr.mxu0 0.0
    %646 = vmatpush2.msra.mxu0 0.0
    %647 = vmatprep.subr.mxu0 0.0
    %648 = vmatpush2.msra.mxu0 0.0
    %649 = vmatprep.subr.mxu0 0.0
    %650 = vmatpush2.msra.mxu0 0.0
    %651 = vmatprep.subr.mxu0 0.0
    %652 = vmatpush2.msra.mxu0 0.0
    %653 = vmatprep.subr.mxu0 0.0
    %654 = vmatpush2.msra.mxu0 0.0
    %655 = vmatprep.subr.mxu0 0.0
    %656 = vmatpush2.msra.mxu0 0.0
    %657 = vmatprep.subr.mxu0 0.0
    %658 = vmatpush2.msra.mxu0 0.0
    %659 = vmatprep.subr.mxu0 0.0
    %660 = vmatpush2.msra.mxu0 0.0
    %661 = vmatprep.subr.mxu0 0.0
    %662 = vmatpush2.msra.mxu0 0.0
    %663 = vmatprep.mubr.f32.mxu0 0.0
    %664 = vmatmul.mubr.f32.gmra.mxu0 %v597
    %v665 = vpop.f32.mrf.mxu0
    %v666 = vadd.f32 0.0, %v665
    %v667 = vpop.f32.mrf.mxu0
    %v668 = vadd.f32 0.0, %v667
    %669 = vdwg.mxu0
    %v671 = vrot.slane %v666, 2
    %v673 = vadd.f32 %v283, %v671
    %v674 = vxor.u32 %v673, 2147483648
    %v675 = vmul.f32 %v674, 1.442695
    %v676 = vpow.pop %v675
    %v677 = vadd.f32 %v676, 1.0
    %v678 = vrcp.pop %v677
    %v679 = vmul.f32 1.0, %v678
    %v680 = vadd.f32 %v668, %v197
    %v682 = vrot.slane %v680, 2
    %v684 = vmul.f32 %v679, %v682
    %v685 = vadd.f32 %v285, %v684
    %v686 = vtanh.pop %v685
    %v687 = vsub.f32 1.0, %v679
    %689 = vrot.lane.b32.xlu0 %v686, 64
    %v690 = vpop.permute.xlu0 %689
    %v692 = vmul.f32 %v687, %v690
    %v693 = vrot.slane %v592, 6
    %v695 = vmul.f32 %v679, %v693
    %v696 = vadd.f32 %v692, %v695
    %v698 = vrot.slane %v696, 6
    %699 = vrot.lane.b32.xlu0 %v698, 64
    %v700 = vpop.permute.xlu0 %699
    %v701 = vsel %vm209, %v700, 0
    %703 = vmatprep.subr.mxu0 0.0
    %704 = vmatpush1.msra.mxu0 0.0
    %705 = vmatprep.subr.mxu0 0.0
    %706 = vmatpush1.msra.mxu0 0.0
    %707 = vmatprep.subr.mxu0 0.0
    %708 = vmatpush1.msra.mxu0 0.0
    %709 = vmatprep.subr.mxu0 0.0
    %710 = vmatpush1.msra.mxu0 0.0
    %711 = vmatprep.subr.mxu0 0.0
    %712 = vmatpush1.msra.mxu0 0.0
    %713 = vmatprep.subr.mxu0 0.0
    %714 = vmatpush1.msra.mxu0 0.0
    %715 = vmatprep.subr.mxu0 0.0
    %716 = vmatpush1.msra.mxu0 0.0
    %717 = vmatprep.subr.mxu0 0.0
    %718 = vmatpush1.msra.mxu0 0.0
    %719 = vmatprep.subr.mxu0 %v194
    %720 = vmatpush1.msra.mxu0 %v193
    %721 = vmatprep.subr.mxu0 %v192
    %722 = vmatpush1.msra.mxu0 %v191
    %723 = vmatprep.subr.mxu0 %v190
    %724 = vmatpush1.msra.mxu0 %v189
    %725 = vmatprep.subr.mxu0 %v188
    %726 = vmatpush1.msra.mxu0 %v187
    %727 = vmatprep.subr.mxu0 %v186
    %728 = vmatpush1.msra.mxu0 %v185
    %729 = vmatprep.subr.mxu0 %v184
    %730 = vmatpush1.msra.mxu0 %v183
    %731 = vmatprep.subr.mxu0 %v182
    %732 = vmatpush1.msra.mxu0 %v181
    %733 = vmatprep.subr.mxu0 %v180
    %734 = vmatpush1.msra.mxu0 %v179
    %735 = vmatprep.subr.mxu0 0.0
    %736 = vmatpush2.msra.mxu0 0.0
    %737 = vmatprep.subr.mxu0 0.0
    %738 = vmatpush2.msra.mxu0 0.0
    %739 = vmatprep.subr.mxu0 0.0
    %740 = vmatpush2.msra.mxu0 0.0
    %741 = vmatprep.subr.mxu0 0.0
    %742 = vmatpush2.msra.mxu0 0.0
    %743 = vmatprep.subr.mxu0 0.0
    %744 = vmatpush2.msra.mxu0 0.0
    %745 = vmatprep.subr.mxu0 0.0
    %746 = vmatpush2.msra.mxu0 0.0
    %747 = vmatprep.subr.mxu0 0.0
    %748 = vmatpush2.msra.mxu0 0.0
    %749 = vmatprep.subr.mxu0 0.0
    %750 = vmatpush2.msra.mxu0 0.0
    %751 = vmatprep.subr.mxu0 0.0
    %752 = vmatpush2.msra.mxu0 0.0
    %753 = vmatprep.subr.mxu0 0.0
    %754 = vmatpush2.msra.mxu0 0.0
    %755 = vmatprep.subr.mxu0 0.0
    %756 = vmatpush2.msra.mxu0 0.0
    %757 = vmatprep.subr.mxu0 0.0
    %758 = vmatpush2.msra.mxu0 0.0
    %759 = vmatprep.subr.mxu0 0.0
    %760 = vmatpush2.msra.mxu0 0.0
    %761 = vmatprep.subr.mxu0 0.0
    %762 = vmatpush2.msra.mxu0 0.0
    %763 = vmatprep.subr.mxu0 0.0
    %764 = vmatpush2.msra.mxu0 0.0
    %765 = vmatprep.subr.mxu0 0.0
    %766 = vmatpush2.msra.mxu0 0.0
    %767 = vmatprep.mubr.f32.mxu0 0.0
    %768 = vmatmul.mubr.f32.gmra.mxu0 %v701
    %v769 = vpop.f32.mrf.mxu0
    %v770 = vadd.f32 0.0, %v769
    %v771 = vpop.f32.mrf.mxu0
    %v772 = vadd.f32 0.0, %v771
    %773 = vdwg.mxu0
    %v774 = vadd.f32 %v289, %v770
    %v775 = vxor.u32 %v774, 2147483648
    %v776 = vmul.f32 %v775, 1.442695
    %v777 = vpow.pop %v776
    %v778 = vadd.f32 %v777, 1.0
    %v779 = vrcp.pop %v778
    %v780 = vmul.f32 1.0, %v779
    %v781 = vadd.f32 %v772, %v197
    %v782 = vmul.f32 %v780, %v781
    %v783 = vadd.f32 %v291, %v782
    %v784 = vtanh.pop %v783
    %v785 = vsub.f32 1.0, %v780
    %787 = vrot.lane.b32.xlu0 %v784, 64
    %v788 = vpop.permute.xlu0 %787
    %v790 = vmul.f32 %v785, %v788
    %v792 = vmul.f32 %v780, %v698
    %v793 = vadd.f32 %v790, %v792
    %795 = vrot.lane.b32.xlu0 %v793, 64
    %v796 = vpop.permute.xlu0 %795
    %v797 = vsel %vm209, %v796, 0
    %799 = vmatprep.subr.mxu0 0.0
    %800 = vmatpush1.msra.mxu0 0.0
    %801 = vmatprep.subr.mxu0 0.0
    %802 = vmatpush1.msra.mxu0 0.0
    %803 = vmatprep.subr.mxu0 0.0
    %804 = vmatpush1.msra.mxu0 0.0
    %805 = vmatprep.subr.mxu0 0.0
    %806 = vmatpush1.msra.mxu0 0.0
    %807 = vmatprep.subr.mxu0 0.0
    %808 = vmatpush1.msra.mxu0 0.0
    %809 = vmatprep.subr.mxu0 0.0
    %810 = vmatpush1.msra.mxu0 0.0
    %811 = vmatprep.subr.mxu0 0.0
    %812 = vmatpush1.msra.mxu0 0.0
    %813 = vmatprep.subr.mxu0 0.0
    %814 = vmatpush1.msra.mxu0 0.0
    %815 = vmatprep.subr.mxu0 %v194
    %816 = vmatpush1.msra.mxu0 %v193
    %817 = vmatprep.subr.mxu0 %v192
    %818 = vmatpush1.msra.mxu0 %v191
    %819 = vmatprep.subr.mxu0 %v190
    %820 = vmatpush1.msra.mxu0 %v189
    %821 = vmatprep.subr.mxu0 %v188
    %822 = vmatpush1.msra.mxu0 %v187
    %823 = vmatprep.subr.mxu0 %v186
    %824 = vmatpush1.msra.mxu0 %v185
    %825 = vmatprep.subr.mxu0 %v184
    %826 = vmatpush1.msra.mxu0 %v183
    %827 = vmatprep.subr.mxu0 %v182
    %828 = vmatpush1.msra.mxu0 %v181
    %829 = vmatprep.subr.mxu0 %v180
    %830 = vmatpush1.msra.mxu0 %v179
    %831 = vmatprep.subr.mxu0 0.0
    %832 = vmatpush2.msra.mxu0 0.0
    %833 = vmatprep.subr.mxu0 0.0
    %834 = vmatpush2.msra.mxu0 0.0
    %835 = vmatprep.subr.mxu0 0.0
    %836 = vmatpush2.msra.mxu0 0.0
    %837 = vmatprep.subr.mxu0 0.0
    %838 = vmatpush2.msra.mxu0 0.0
    %839 = vmatprep.subr.mxu0 0.0
    %840 = vmatpush2.msra.mxu0 0.0
    %841 = vmatprep.subr.mxu0 0.0
    %842 = vmatpush2.msra.mxu0 0.0
    %843 = vmatprep.subr.mxu0 0.0
    %844 = vmatpush2.msra.mxu0 0.0
    %845 = vmatprep.subr.mxu0 0.0
    %846 = vmatpush2.msra.mxu0 0.0
    %847 = vmatprep.subr.mxu0 0.0
    %848 = vmatpush2.msra.mxu0 0.0
    %849 = vmatprep.subr.mxu0 0.0
    %850 = vmatpush2.msra.mxu0 0.0
    %851 = vmatprep.subr.mxu0 0.0
    %852 = vmatpush2.msra.mxu0 0.0
    %853 = vmatprep.subr.mxu0 0.0
    %854 = vmatpush2.msra.mxu0 0.0
    %855 = vmatprep.subr.mxu0 0.0
    %856 = vmatpush2.msra.mxu0 0.0
    %857 = vmatprep.subr.mxu0 0.0
    %858 = vmatpush2.msra.mxu0 0.0
    %859 = vmatprep.subr.mxu0 0.0
    %860 = vmatpush2.msra.mxu0 0.0
    %861 = vmatprep.subr.mxu0 0.0
    %862 = vmatpush2.msra.mxu0 0.0
    %863 = vmatprep.mubr.f32.mxu0 0.0
    %864 = vmatmul.mubr.f32.gmra.mxu0 %v797
    %v865 = vpop.f32.mrf.mxu0
    %v866 = vadd.f32 0.0, %v865
    %v867 = vpop.f32.mrf.mxu0
    %v868 = vadd.f32 0.0, %v867
    %869 = vdwg.mxu0
    %v871 = vrot.slane %v866, 6
    %v873 = vadd.f32 %v289, %v871
    %v874 = vxor.u32 %v873, 2147483648
    %v875 = vmul.f32 %v874, 1.442695
    %v876 = vpow.pop %v875
    %v877 = vadd.f32 %v876, 1.0
    %v878 = vrcp.pop %v877
    %v879 = vmul.f32 1.0, %v878
    %v880 = vadd.f32 %v868, %v197
    %v882 = vrot.slane %v880, 6
    %v884 = vmul.f32 %v879, %v882
    %v885 = vadd.f32 %v291, %v884
    %v886 = vtanh.pop %v885
    %v887 = vsub.f32 1.0, %v879
    %889 = vrot.lane.b32.xlu0 %v886, 64
    %v890 = vpop.permute.xlu0 %889
    %v892 = vmul.f32 %v887, %v890
    %v893 = vrot.slane %v793, 6
    %v895 = vmul.f32 %v879, %v893
    %v896 = vadd.f32 %v892, %v895
    %v898 = vrot.slane %v896, 2
    %899 = vrot.lane.b32.xlu0 %v898, 64
    %v900 = vpop.permute.xlu0 %899
    %v901 = vsel %vm209, %v900, 0
    %903 = vmatprep.subr.mxu0 0.0
    %904 = vmatpush1.msra.mxu0 0.0
    %905 = vmatprep.subr.mxu0 0.0
    %906 = vmatpush1.msra.mxu0 0.0
    %907 = vmatprep.subr.mxu0 0.0
    %908 = vmatpush1.msra.mxu0 0.0
    %909 = vmatprep.subr.mxu0 0.0
    %910 = vmatpush1.msra.mxu0 0.0
    %911 = vmatprep.subr.mxu0 0.0
    %912 = vmatpush1.msra.mxu0 0.0
    %913 = vmatprep.subr.mxu0 0.0
    %914 = vmatpush1.msra.mxu0 0.0
    %915 = vmatprep.subr.mxu0 0.0
    %916 = vmatpush1.msra.mxu0 0.0
    %917 = vmatprep.subr.mxu0 0.0
    %918 = vmatpush1.msra.mxu0 0.0
    %919 = vmatprep.subr.mxu0 %v194
    %920 = vmatpush1.msra.mxu0 %v193
    %921 = vmatprep.subr.mxu0 %v192
    %922 = vmatpush1.msra.mxu0 %v191
    %923 = vmatprep.subr.mxu0 %v190
    %924 = vmatpush1.msra.mxu0 %v189
    %925 = vmatprep.subr.mxu0 %v188
    %926 = vmatpush1.msra.mxu0 %v187
    %927 = vmatprep.subr.mxu0 %v186
    %928 = vmatpush1.msra.mxu0 %v185
    %929 = vmatprep.subr.mxu0 %v184
    %930 = vmatpush1.msra.mxu0 %v183
    %931 = vmatprep.subr.mxu0 %v182
    %932 = vmatpush1.msra.mxu0 %v181
    %933 = vmatprep.subr.mxu0 %v180
    %934 = vmatpush1.msra.mxu0 %v179
    %935 = vmatprep.subr.mxu0 0.0
    %936 = vmatpush2.msra.mxu0 0.0
    %937 = vmatprep.subr.mxu0 0.0
    %938 = vmatpush2.msra.mxu0 0.0
    %939 = vmatprep.subr.mxu0 0.0
    %940 = vmatpush2.msra.mxu0 0.0
    %941 = vmatprep.subr.mxu0 0.0
    %942 = vmatpush2.msra.mxu0 0.0
    %943 = vmatprep.subr.mxu0 0.0
    %944 = vmatpush2.msra.mxu0 0.0
    %945 = vmatprep.subr.mxu0 0.0
    %946 = vmatpush2.msra.mxu0 0.0
    %947 = vmatprep.subr.mxu0 0.0
    %948 = vmatpush2.msra.mxu0 0.0
    %949 = vmatprep.subr.mxu0 0.0
    %950 = vmatpush2.msra.mxu0 0.0
    %951 = vmatprep.subr.mxu0 0.0
    %952 = vmatpush2.msra.mxu0 0.0
    %953 = vmatprep.subr.mxu0 0.0
    %954 = vmatpush2.msra.mxu0 0.0
    %955 = vmatprep.subr.mxu0 0.0
    %956 = vmatpush2.msra.mxu0 0.0
    %957 = vmatprep.subr.mxu0 0.0
    %958 = vmatpush2.msra.mxu0 0.0
    %959 = vmatprep.subr.mxu0 0.0
    %960 = vmatpush2.msra.mxu0 0.0
    %961 = vmatprep.subr.mxu0 0.0
    %962 = vmatpush2.msra.mxu0 0.0
    %963 = vmatprep.subr.mxu0 0.0
    %964 = vmatpush2.msra.mxu0 0.0
    %965 = vmatprep.subr.mxu0 0.0
    %966 = vmatpush2.msra.mxu0 0.0
    %967 = vmatprep.mubr.f32.mxu0 0.0
    %968 = vmatmul.mubr.f32.gmra.mxu0 %v901
    %v969 = vpop.f32.mrf.mxu0
    %v970 = vadd.f32 0.0, %v969
    %v971 = vpop.f32.mrf.mxu0
    %v972 = vadd.f32 0.0, %v971
    %973 = vdwg.mxu0
    %v975 = vrot.slane %v970, 4
    %v977 = vadd.f32 %v289, %v975
    %v978 = vxor.u32 %v977, 2147483648
    %v979 = vmul.f32 %v978, 1.442695
    %v980 = vpow.pop %v979
    %v981 = vadd.f32 %v980, 1.0
    %v982 = vrcp.pop %v981
    %v983 = vmul.f32 1.0, %v982
    %v984 = vadd.f32 %v972, %v197
    %v986 = vrot.slane %v984, 4
    %v988 = vmul.f32 %v983, %v986
    %v989 = vadd.f32 %v291, %v988
    %v990 = vtanh.pop %v989
    %v991 = vsub.f32 1.0, %v983
    %993 = vrot.lane.b32.xlu0 %v990, 64
    %v994 = vpop.permute.xlu0 %993
    %v996 = vmul.f32 %v991, %v994
    %v997 = vrot.slane %v896, 6
    %v999 = vmul.f32 %v983, %v997
    %v1000 = vadd.f32 %v996, %v999
    %v1002 = vrot.slane %v1000, 4
    %1003 = vrot.lane.b32.xlu0 %v1002, 64
    %v1004 = vpop.permute.xlu0 %1003
    %v1005 = vsel %vm209, %v1004, 0
    %1007 = vmatprep.subr.mxu0 0.0
    %1008 = vmatpush1.msra.mxu0 0.0
    %1009 = vmatprep.subr.mxu0 0.0
    %1010 = vmatpush1.msra.mxu0 0.0
    %1011 = vmatprep.subr.mxu0 0.0
    %1012 = vmatpush1.msra.mxu0 0.0
    %1013 = vmatprep.subr.mxu0 0.0
    %1014 = vmatpush1.msra.mxu0 0.0
    %1015 = vmatprep.subr.mxu0 0.0
    %1016 = vmatpush1.msra.mxu0 0.0
    %1017 = vmatprep.subr.mxu0 0.0
    %1018 = vmatpush1.msra.mxu0 0.0
    %1019 = vmatprep.subr.mxu0 0.0
    %1020 = vmatpush1.msra.mxu0 0.0
    %1021 = vmatprep.subr.mxu0 0.0
    %1022 = vmatpush1.msra.mxu0 0.0
    %1023 = vmatprep.subr.mxu0 %v194
    %1024 = vmatpush1.msra.mxu0 %v193
    %1025 = vmatprep.subr.mxu0 %v192
    %1026 = vmatpush1.msra.mxu0 %v191
    %1027 = vmatprep.subr.mxu0 %v190
    %1028 = vmatpush1.msra.mxu0 %v189
    %1029 = vmatprep.subr.mxu0 %v188
    %1030 = vmatpush1.msra.mxu0 %v187
    %1031 = vmatprep.subr.mxu0 %v186
    %1032 = vmatpush1.msra.mxu0 %v185
    %1033 = vmatprep.subr.mxu0 %v184
    %1034 = vmatpush1.msra.mxu0 %v183
    %1035 = vmatprep.subr.mxu0 %v182
    %1036 = vmatpush1.msra.mxu0 %v181
    %1037 = vmatprep.subr.mxu0 %v180
    %1038 = vmatpush1.msra.mxu0 %v179
    %1039 = vmatprep.subr.mxu0 0.0
    %1040 = vmatpush2.msra.mxu0 0.0
    %1041 = vmatprep.subr.mxu0 0.0
    %1042 = vmatpush2.msra.mxu0 0.0
    %1043 = vmatprep.subr.mxu0 0.0
    %1044 = vmatpush2.msra.mxu0 0.0
    %1045 = vmatprep.subr.mxu0 0.0
    %1046 = vmatpush2.msra.mxu0 0.0
    %1047 = vmatprep.subr.mxu0 0.0
    %1048 = vmatpush2.msra.mxu0 0.0
    %1049 = vmatprep.subr.mxu0 0.0
    %1050 = vmatpush2.msra.mxu0 0.0
    %1051 = vmatprep.subr.mxu0 0.0
    %1052 = vmatpush2.msra.mxu0 0.0
    %1053 = vmatprep.subr.mxu0 0.0
    %1054 = vmatpush2.msra.mxu0 0.0
    %1055 = vmatprep.subr.mxu0 0.0
    %1056 = vmatpush2.msra.mxu0 0.0
    %1057 = vmatprep.subr.mxu0 0.0
    %1058 = vmatpush2.msra.mxu0 0.0
    %1059 = vmatprep.subr.mxu0 0.0
    %1060 = vmatpush2.msra.mxu0 0.0
    %1061 = vmatprep.subr.mxu0 0.0
    %1062 = vmatpush2.msra.mxu0 0.0
    %1063 = vmatprep.subr.mxu0 0.0
    %1064 = vmatpush2.msra.mxu0 0.0
    %1065 = vmatprep.subr.mxu0 0.0
    %1066 = vmatpush2.msra.mxu0 0.0
    %1067 = vmatprep.subr.mxu0 0.0
    %1068 = vmatpush2.msra.mxu0 0.0
    %1069 = vmatprep.subr.mxu0 0.0
    %1070 = vmatpush2.msra.mxu0 0.0
    %1071 = vmatprep.mubr.f32.mxu0 0.0
    %1072 = vmatmul.mubr.f32.gmra.mxu0 %v1005
    %v1073 = vpop.f32.mrf.mxu0
    %v1074 = vadd.f32 0.0, %v1073
    %v1075 = vpop.f32.mrf.mxu0
    %v1076 = vadd.f32 0.0, %v1075
    %1077 = vdwg.mxu0
    %v1079 = vrot.slane %v1074, 2
    %v1081 = vadd.f32 %v289, %v1079
    %v1082 = vxor.u32 %v1081, 2147483648
    %v1083 = vmul.f32 %v1082, 1.442695
    %v1084 = vpow.pop %v1083
    %v1085 = vadd.f32 %v1084, 1.0
    %v1086 = vrcp.pop %v1085
    %v1087 = vmul.f32 1.0, %v1086
    %v1088 = vadd.f32 %v1076, %v197
    %v1090 = vrot.slane %v1088, 2
    %v1092 = vmul.f32 %v1087, %v1090
    %v1093 = vadd.f32 %v291, %v1092
    %v1094 = vtanh.pop %v1093
    %v1095 = vsub.f32 1.0, %v1087
    %1097 = vrot.lane.b32.xlu0 %v1094, 64
    %v1098 = vpop.permute.xlu0 %1097
    %v1100 = vmul.f32 %v1095, %v1098
    %v1101 = vrot.slane %v1000, 6
    %v1103 = vmul.f32 %v1087, %v1101
    %v1104 = vadd.f32 %v1100, %v1103
    %vm1105 = vcmask 1041408
    %v1106 = vsel %vm1105, %v385, %v488
    %vm1107 = vcmask 1043456
    %v1108 = vsel %vm1107, %v1106, %v592
    %vm1109 = vcmask 1045504
    %v1110 = vsel %vm1109, %v1108, %v696
    %v1111 = vsel %vm1105, %v793, %v896
    %v1112 = vsel %vm1107, %v1111, %v1000
    %v1113 = vsel %vm1109, %v1112, %v1104
    %1116 = vrot.lane.b32.xlu0 %v1110, 64
    %v1117 = vpop.permute.xlu0 %1116
    %1118 = vrot.lane.b32.xlu0 %v1113, 64
    %v1119 = vpop.permute.xlu0 %1118
    %vm1122 = vcmask 130048
    %v1124 = vsel %vm1122, %v161, 0
    %v1127 = vsel %vm1122, %v162, 0
    %1129 = vmatprep.subr.mxu0 0.0
    %1130 = vmatpush1.msra.mxu0 0.0
    %1131 = vmatprep.subr.mxu0 0.0
    %1132 = vmatpush1.msra.mxu0 0.0
    %1133 = vmatprep.subr.mxu0 0.0
    %1134 = vmatpush1.msra.mxu0 0.0
    %1135 = vmatprep.subr.mxu0 0.0
    %1136 = vmatpush1.msra.mxu0 0.0
    %1137 = vmatprep.subr.mxu0 0.0
    %1138 = vmatpush1.msra.mxu0 0.0
    %1139 = vmatprep.subr.mxu0 0.0
    %1140 = vmatpush1.msra.mxu0 0.0
    %1141 = vmatprep.subr.mxu0 0.0
    %1142 = vmatpush1.msra.mxu0 0.0
    %1143 = vmatprep.subr.mxu0 0.0
    %1144 = vmatpush1.msra.mxu0 0.0
    %1145 = vmatprep.subr.mxu0 0.0
    %1146 = vmatpush1.msra.mxu0 0.0
    %1147 = vmatprep.subr.mxu0 0.0
    %1148 = vmatpush1.msra.mxu0 0.0
    %1149 = vmatprep.subr.mxu0 0.0
    %1150 = vmatpush1.msra.mxu0 0.0
    %1151 = vmatprep.subr.mxu0 0.0
    %1152 = vmatpush1.msra.mxu0 0.0
    %1153 = vmatprep.subr.mxu0 0.0
    %1154 = vmatpush1.msra.mxu0 0.0
    %1155 = vmatprep.subr.mxu0 0.0
    %1156 = vmatpush1.msra.mxu0 0.0
    %1157 = vmatprep.subr.mxu0 0.0
    %1158 = vmatpush1.msra.mxu0 %v1119
    %1159 = vmatprep.subr.mxu0 0.0
    %1160 = vmatpush1.msra.mxu0 %v1117
    %1161 = vmatprep.subr.mxu0 0.0
    %1162 = vmatpush2.msra.mxu0 0.0
    %1163 = vmatprep.subr.mxu0 0.0
    %1164 = vmatpush2.msra.mxu0 0.0
    %1165 = vmatprep.subr.mxu0 0.0
    %1166 = vmatpush2.msra.mxu0 0.0
    %1167 = vmatprep.subr.mxu0 0.0
    %1168 = vmatpush2.msra.mxu0 0.0
    %1169 = vmatprep.subr.mxu0 0.0
    %1170 = vmatpush2.msra.mxu0 0.0
    %1171 = vmatprep.subr.mxu0 0.0
    %1172 = vmatpush2.msra.mxu0 0.0
    %1173 = vmatprep.subr.mxu0 0.0
    %1174 = vmatpush2.msra.mxu0 0.0
    %1175 = vmatprep.subr.mxu0 0.0
    %1176 = vmatpush2.msra.mxu0 0.0
    %1177 = vmatprep.subr.mxu0 0.0
    %1178 = vmatpush2.msra.mxu0 0.0
    %1179 = vmatprep.subr.mxu0 0.0
    %1180 = vmatpush2.msra.mxu0 0.0
    %1181 = vmatprep.subr.mxu0 0.0
    %1182 = vmatpush2.msra.mxu0 0.0
    %1183 = vmatprep.subr.mxu0 0.0
    %1184 = vmatpush2.msra.mxu0 0.0
    %1185 = vmatprep.subr.mxu0 0.0
    %1186 = vmatpush2.msra.mxu0 0.0
    %1187 = vmatprep.subr.mxu0 0.0
    %1188 = vmatpush2.msra.mxu0 0.0
    %1189 = vmatprep.subr.mxu0 0.0
    %1190 = vmatpush2.msra.mxu0 0.0
    %1191 = vmatprep.subr.mxu0 0.0
    %1192 = vmatpush2.msra.mxu0 0.0
    %1193 = vmatprep.mubr.f32.mxu0 0.0
    %1194 = vmatmul.mubr.f32.gmra.mxu0 %v1124
    %v1195 = vpop.f32.mrf.mxu0
    %v1196 = vadd.f32 0.0, %v1195
    %v1197 = vpop.f32.mrf.mxu0
    %1198 = vmatprep.mubr.f32.mxu0 0.0
    %1199 = vmatmul.mubr.f32.gmra.mxu0 %v1127
    %v1200 = vpop.f32.mrf.mxu0
    %v1201 = vadd.f32 0.0, %v1200
    %v1202 = vpop.f32.mrf.mxu0
    %1203 = vdwg.mxu0
    %1206 = vrot.lane.b32.xlu0 %v1196, 64
    %v1207 = vpop.permute.xlu0 %1206
    %1208 = vrot.lane.b32.xlu0 %v1201, 64
    %v1209 = vpop.permute.xlu0 %1208
    %v1212 = vsel %vm158, %v1117, %v1196
    %v1213 = vsel %vm158, %v1119, %v1201
    %v1214 = vsel %vm209, %v1212, %v1207
    %v1215 = vsel %vm209, %v1213, %v1209
    %vm1216 = vcmask 785408
    %v1217 = vsel %vm1216, %v1214, %v1110
    %v1218 = vsel %vm1216, %v1215, %v1113
    %v1219 = vld [vmem:[%s1 + $0x100] sm:$0xff]
    %v1220 = vld [vmem:[%s1 + $0x108] sm:$0xff]
    %v1221 = vld [vmem:[%s1 + $0x110] sm:$0xff]
    %v1222 = vld [vmem:[%s1 + $0x118] sm:$0xff]
    %v1223 = vld [vmem:[%s1 + $0x120] sm:$0xff]
    %v1224 = vld [vmem:[%s1 + $0x128] sm:$0xff]
    %v1225 = vld [vmem:[%s1 + $0x130] sm:$0xff]
    %v1226 = vld [vmem:[%s1 + $0x138] sm:$0xff]
    %v1227 = vld [vmem:[%s1 + $0x140] sm:$0xff]
    %v1228 = vld [vmem:[%s1 + $0x148] sm:$0xff]
    %v1229 = vld [vmem:[%s1 + $0x150] sm:$0xff]
    %v1230 = vld [vmem:[%s1 + $0x158] sm:$0xff]
    %v1231 = vld [vmem:[%s1 + $0x160] sm:$0xff]
    %v1232 = vld [vmem:[%s1 + $0x168] sm:$0xff]
    %v1233 = vld [vmem:[%s1 + $0x170] sm:$0xff]
    %v1234 = vld [vmem:[%s1 + $0x178] sm:$0xff]
    %v1235 = vld [vmem:[%s1 + $0x180] sm:$0xff]
    %v1236 = vld [vmem:[%s1 + $0x188] sm:$0xff]
    %v1237 = vld [vmem:[%s1 + $0x190] sm:$0xff]
    %v1238 = vld [vmem:[%s1 + $0x198] sm:$0xff]
    %v1239 = vld [vmem:[%s1 + $0x1a0] sm:$0xff]
    %v1240 = vld [vmem:[%s1 + $0x1a8] sm:$0xff]
    %v1241 = vld [vmem:[%s1 + $0x1b0] sm:$0xff]
    %v1242 = vld [vmem:[%s1 + $0x1b8] sm:$0xff]
    %v1243 = vld [vmem:[%s1 + $0x1c0] sm:$0xff]
    %v1244 = vld [vmem:[%s1 + $0x1c8] sm:$0xff]
    %v1245 = vld [vmem:[%s1 + $0x1d0] sm:$0xff]
    %v1246 = vld [vmem:[%s1 + $0x1d8] sm:$0xff]
    %v1247 = vld [vmem:[%s1 + $0x1e0] sm:$0xff]
    %v1248 = vld [vmem:[%s1 + $0x1e8] sm:$0xff]
    %v1249 = vld [vmem:[%s1 + $0x1f0] sm:$0xff]
    %v1250 = vld [vmem:[%s1 + $0x1f8] sm:$0xff]
    %v1251 = vld [vmem:[%s1 + $0x200] sm:$0xff]
    %v1252 = vld [vmem:[%s1 + $0x208] sm:$0xff]
    %v1253 = vld [vmem:[%s1 + $0x210] sm:$0xff]
    %v1254 = vld [vmem:[%s1 + $0x218] sm:$0xff]
    %v1255 = vld [vmem:[%s1 + $0x220] sm:$0xff]
    %v1256 = vld [vmem:[%s1 + $0x228] sm:$0xff]
    %v1257 = vld [vmem:[%s1 + $0x230] sm:$0xff]
    %v1258 = vld [vmem:[%s1 + $0x238] sm:$0xff]
    %v1259 = vld [vmem:[%s1 + $0x240] sm:$0xff]
    %v1260 = vld [vmem:[%s1 + $0x248] sm:$0xff]
    %v1261 = vld [vmem:[%s1 + $0x250] sm:$0xff]
    %v1262 = vld [vmem:[%s1 + $0x258] sm:$0xff]
    %v1263 = vld [vmem:[%s1 + $0x260] sm:$0xff]
    %v1264 = vld [vmem:[%s1 + $0x268] sm:$0xff]
    %v1265 = vld [vmem:[%s1 + $0x270] sm:$0xff]
    %v1266 = vld [vmem:[%s1 + $0x278] sm:$0xff]
    %s1267 = scalar_lea.vmem %s1, 641
    %v1268 = vld [vmem:[%s1267] ss:$8 sm:$0x3]
    %v1269 = vld [vmem:[%s1 + $0x283] ss:$0 sm:$0xff]
    %v1271 = vlaneseq
    %v1272 = vshrl.u32 %v1271, 7
    %v1273 = vsub.s32 0, %v1272
    %v1274 = vrot.slane %v1268, %v1273
    %v1275 = vlaneseq
    %v1276 = vshrl.u32 %v1275, 7
    %v1277 = vsub.s32 1, %v1276
    %v1278 = vrot.slane %v1268, %v1277
    %1281 = vmatprep.subr.mxu0 %v1250
    %1282 = vmatpush1.msra.mxu0 %v1249
    %1283 = vmatprep.subr.mxu0 %v1248
    %1284 = vmatpush1.msra.mxu0 %v1247
    %1285 = vmatprep.subr.mxu0 %v1246
    %1286 = vmatpush1.msra.mxu0 %v1245
    %1287 = vmatprep.subr.mxu0 %v1244
    %1288 = vmatpush1.msra.mxu0 %v1243
    %1289 = vmatprep.subr.mxu0 %v1242
    %1290 = vmatpush1.msra.mxu0 %v1241
    %1291 = vmatprep.subr.mxu0 %v1240
    %1292 = vmatpush1.msra.mxu0 %v1239
    %1293 = vmatprep.subr.mxu0 %v1238
    %1294 = vmatpush1.msra.mxu0 %v1237
    %1295 = vmatprep.subr.mxu0 %v1236
    %1296 = vmatpush1.msra.mxu0 %v1235
    %1297 = vmatprep.subr.mxu0 %v1234
    %1298 = vmatpush1.msra.mxu0 %v1233
    %1299 = vmatprep.subr.mxu0 %v1232
    %1300 = vmatpush1.msra.mxu0 %v1231
    %1301 = vmatprep.subr.mxu0 %v1230
    %1302 = vmatpush1.msra.mxu0 %v1229
    %1303 = vmatprep.subr.mxu0 %v1228
    %1304 = vmatpush1.msra.mxu0 %v1227
    %1305 = vmatprep.subr.mxu0 %v1226
    %1306 = vmatpush1.msra.mxu0 %v1225
    %1307 = vmatprep.subr.mxu0 %v1224
    %1308 = vmatpush1.msra.mxu0 %v1223
    %1309 = vmatprep.subr.mxu0 %v1222
    %1310 = vmatpush1.msra.mxu0 %v1221
    %1311 = vmatprep.subr.mxu0 %v1220
    %1312 = vmatpush1.msra.mxu0 %v1219
    %1313 = vmatprep.subr.mxu0 0.0
    %1314 = vmatpush2.msra.mxu0 0.0
    %1315 = vmatprep.subr.mxu0 0.0
    %1316 = vmatpush2.msra.mxu0 0.0
    %1317 = vmatprep.subr.mxu0 0.0
    %1318 = vmatpush2.msra.mxu0 0.0
    %1319 = vmatprep.subr.mxu0 0.0
    %1320 = vmatpush2.msra.mxu0 0.0
    %1321 = vmatprep.subr.mxu0 0.0
    %1322 = vmatpush2.msra.mxu0 0.0
    %1323 = vmatprep.subr.mxu0 0.0
    %1324 = vmatpush2.msra.mxu0 0.0
    %1325 = vmatprep.subr.mxu0 0.0
    %1326 = vmatpush2.msra.mxu0 0.0
    %1327 = vmatprep.subr.mxu0 0.0
    %1328 = vmatpush2.msra.mxu0 0.0
    %1329 = vmatprep.subr.mxu0 0.0
    %1330 = vmatpush2.msra.mxu0 0.0
    %1331 = vmatprep.subr.mxu0 0.0
    %1332 = vmatpush2.msra.mxu0 0.0
    %1333 = vmatprep.subr.mxu0 0.0
    %1334 = vmatpush2.msra.mxu0 0.0
    %1335 = vmatprep.subr.mxu0 0.0
    %1336 = vmatpush2.msra.mxu0 0.0
    %1337 = vmatprep.subr.mxu0 0.0
    %1338 = vmatpush2.msra.mxu0 0.0
    %1339 = vmatprep.subr.mxu0 0.0
    %1340 = vmatpush2.msra.mxu0 0.0
    %1341 = vmatprep.subr.mxu0 0.0
    %1342 = vmatpush2.msra.mxu0 0.0
    %1343 = vmatprep.subr.mxu0 0.0
    %1344 = vmatpush2.msra.mxu0 0.0
    %1345 = vmatprep.mubr.f32.mxu0 0.0
    %1346 = vmatmul.mubr.f32.gmra.mxu0 %v1217
    %v1347 = vpop.f32.mrf.mxu0
    %v1348 = vadd.f32 %v1274, %v1347
    %v1349 = vpop.f32.mrf.mxu0
    %v1350 = vadd.f32 %v1278, %v1349
    %1351 = vmatprep.mubr.f32.mxu0 0.0
    %1352 = vmatmul.mubr.f32.gmra.mxu0 %v1218
    %v1353 = vpop.f32.mrf.mxu0
    %v1354 = vadd.f32 %v1274, %v1353
    %v1355 = vpop.f32.mrf.mxu0
    %v1356 = vadd.f32 %v1278, %v1355
    %1357 = vdwg.mxu0
    %1358 = vmatprep.subr.mxu0 0.0
    %1359 = vmatpush1.msra.mxu0 0.0
    %1360 = vmatprep.subr.mxu0 0.0
    %1361 = vmatpush1.msra.mxu0 0.0
    %1362 = vmatprep.subr.mxu0 0.0
    %1363 = vmatpush1.msra.mxu0 0.0
    %1364 = vmatprep.subr.mxu0 0.0
    %1365 = vmatpush1.msra.mxu0 0.0
    %1366 = vmatprep.subr.mxu0 0.0
    %1367 = vmatpush1.msra.mxu0 0.0
    %1368 = vmatprep.subr.mxu0 0.0
    %1369 = vmatpush1.msra.mxu0 0.0
    %1370 = vmatprep.subr.mxu0 0.0
    %1371 = vmatpush1.msra.mxu0 0.0
    %1372 = vmatprep.subr.mxu0 0.0
    %1373 = vmatpush1.msra.mxu0 0.0
    %1374 = vmatprep.subr.mxu0 %v1266
    %1375 = vmatpush1.msra.mxu0 %v1265
    %1376 = vmatprep.subr.mxu0 %v1264
    %1377 = vmatpush1.msra.mxu0 %v1263
    %1378 = vmatprep.subr.mxu0 %v1262
    %1379 = vmatpush1.msra.mxu0 %v1261
    %1380 = vmatprep.subr.mxu0 %v1260
    %1381 = vmatpush1.msra.mxu0 %v1259
    %1382 = vmatprep.subr.mxu0 %v1258
    %1383 = vmatpush1.msra.mxu0 %v1257
    %1384 = vmatprep.subr.mxu0 %v1256
    %1385 = vmatpush1.msra.mxu0 %v1255
    %1386 = vmatprep.subr.mxu0 %v1254
    %1387 = vmatpush1.msra.mxu0 %v1253
    %1388 = vmatprep.subr.mxu0 %v1252
    %1389 = vmatpush1.msra.mxu0 %v1251
    %1390 = vmatprep.subr.mxu0 0.0
    %1391 = vmatpush2.msra.mxu0 0.0
    %1392 = vmatprep.subr.mxu0 0.0
    %1393 = vmatpush2.msra.mxu0 0.0
    %1394 = vmatprep.subr.mxu0 0.0
    %1395 = vmatpush2.msra.mxu0 0.0
    %1396 = vmatprep.subr.mxu0 0.0
    %1397 = vmatpush2.msra.mxu0 0.0
    %1398 = vmatprep.subr.mxu0 0.0
    %1399 = vmatpush2.msra.mxu0 0.0
    %1400 = vmatprep.subr.mxu0 0.0
    %1401 = vmatpush2.msra.mxu0 0.0
    %1402 = vmatprep.subr.mxu0 0.0
    %1403 = vmatpush2.msra.mxu0 0.0
    %1404 = vmatprep.subr.mxu0 0.0
    %1405 = vmatpush2.msra.mxu0 0.0
    %1406 = vmatprep.subr.mxu0 0.0
    %1407 = vmatpush2.msra.mxu0 0.0
    %1408 = vmatprep.subr.mxu0 0.0
    %1409 = vmatpush2.msra.mxu0 0.0
    %1410 = vmatprep.subr.mxu0 0.0
    %1411 = vmatpush2.msra.mxu0 0.0
    %1412 = vmatprep.subr.mxu0 0.0
    %1413 = vmatpush2.msra.mxu0 0.0
    %1414 = vmatprep.subr.mxu0 0.0
    %1415 = vmatpush2.msra.mxu0 0.0
    %1416 = vmatprep.subr.mxu0 0.0
    %1417 = vmatpush2.msra.mxu0 0.0
    %1418 = vmatprep.subr.mxu0 0.0
    %1419 = vmatpush2.msra.mxu0 0.0
    %1420 = vmatprep.subr.mxu0 0.0
    %1421 = vmatpush2.msra.mxu0 0.0
    %1422 = vmatprep.mubr.f32.mxu0 0.0
    %1423 = vmatmul.mubr.f32.gmra.mxu0 %v294
    %v1424 = vpop.f32.mrf.mxu0
    %v1425 = vadd.f32 0.0, %v1424
    %v1426 = vpop.f32.mrf.mxu0
    %v1427 = vadd.f32 0.0, %v1426
    %1428 = vdwg.mxu0
    %v1429 = vadd.f32 %v1348, %v1425
    %v1430 = vxor.u32 %v1429, 2147483648
    %v1431 = vmul.f32 %v1430, 1.442695
    %v1432 = vpow.pop %v1431
    %v1433 = vadd.f32 %v1432, 1.0
    %v1434 = vrcp.pop %v1433
    %v1435 = vmul.f32 1.0, %v1434
    %v1436 = vadd.f32 %v1427, %v1269
    %v1437 = vmul.f32 %v1435, %v1436
    %v1438 = vadd.f32 %v1350, %v1437
    %v1439 = vtanh.pop %v1438
    %v1440 = vsub.f32 1.0, %v1435
    %1442 = vrot.lane.b32.xlu0 %v1439, 64
    %v1443 = vpop.permute.xlu0 %1442
    %v1445 = vmul.f32 %v1440, %v1443
    %v1446 = vmul.f32 %v1435, 0.0
    %v1447 = vadd.f32 %v1445, %v1446
    %1449 = vrot.lane.b32.xlu0 %v1447, 64
    %v1450 = vpop.permute.xlu0 %1449
    %v1451 = vsel %vm209, %v1450, 0
    %1453 = vmatprep.subr.mxu0 0.0
    %1454 = vmatpush1.msra.mxu0 0.0
    %1455 = vmatprep.subr.mxu0 0.0
    %1456 = vmatpush1.msra.mxu0 0.0
    %1457 = vmatprep.subr.mxu0 0.0
    %1458 = vmatpush1.msra.mxu0 0.0
    %1459 = vmatprep.subr.mxu0 0.0
    %1460 = vmatpush1.msra.mxu0 0.0
    %1461 = vmatprep.subr.mxu0 0.0
    %1462 = vmatpush1.msra.mxu0 0.0
    %1463 = vmatprep.subr.mxu0 0.0
    %1464 = vmatpush1.msra.mxu0 0.0
    %1465 = vmatprep.subr.mxu0 0.0
    %1466 = vmatpush1.msra.mxu0 0.0
    %1467 = vmatprep.subr.mxu0 0.0
    %1468 = vmatpush1.msra.mxu0 0.0
    %1469 = vmatprep.subr.mxu0 %v1266
    %1470 = vmatpush1.msra.mxu0 %v1265
    %1471 = vmatprep.subr.mxu0 %v1264
    %1472 = vmatpush1.msra.mxu0 %v1263
    %1473 = vmatprep.subr.mxu0 %v1262
    %1474 = vmatpush1.msra.mxu0 %v1261
    %1475 = vmatprep.subr.mxu0 %v1260
    %1476 = vmatpush1.msra.mxu0 %v1259
    %1477 = vmatprep.subr.mxu0 %v1258
    %1478 = vmatpush1.msra.mxu0 %v1257
    %1479 = vmatprep.subr.mxu0 %v1256
    %1480 = vmatpush1.msra.mxu0 %v1255
    %1481 = vmatprep.subr.mxu0 %v1254
    %1482 = vmatpush1.msra.mxu0 %v1253
    %1483 = vmatprep.subr.mxu0 %v1252
    %1484 = vmatpush1.msra.mxu0 %v1251
    %1485 = vmatprep.subr.mxu0 0.0
    %1486 = vmatpush2.msra.mxu0 0.0
    %1487 = vmatprep.subr.mxu0 0.0
    %1488 = vmatpush2.msra.mxu0 0.0
    %1489 = vmatprep.subr.mxu0 0.0
    %1490 = vmatpush2.msra.mxu0 0.0
    %1491 = vmatprep.subr.mxu0 0.0
    %1492 = vmatpush2.msra.mxu0 0.0
    %1493 = vmatprep.subr.mxu0 0.0
    %1494 = vmatpush2.msra.mxu0 0.0
    %1495 = vmatprep.subr.mxu0 0.0
    %1496 = vmatpush2.msra.mxu0 0.0
    %1497 = vmatprep.subr.mxu0 0.0
    %1498 = vmatpush2.msra.mxu0 0.0
    %1499 = vmatprep.subr.mxu0 0.0
    %1500 = vmatpush2.msra.mxu0 0.0
    %1501 = vmatprep.subr.mxu0 0.0
    %1502 = vmatpush2.msra.mxu0 0.0
    %1503 = vmatprep.subr.mxu0 0.0
    %1504 = vmatpush2.msra.mxu0 0.0
    %1505 = vmatprep.subr.mxu0 0.0
    %1506 = vmatpush2.msra.mxu0 0.0
    %1507 = vmatprep.subr.mxu0 0.0
    %1508 = vmatpush2.msra.mxu0 0.0
    %1509 = vmatprep.subr.mxu0 0.0
    %1510 = vmatpush2.msra.mxu0 0.0
    %1511 = vmatprep.subr.mxu0 0.0
    %1512 = vmatpush2.msra.mxu0 0.0
    %1513 = vmatprep.subr.mxu0 0.0
    %1514 = vmatpush2.msra.mxu0 0.0
    %1515 = vmatprep.subr.mxu0 0.0
    %1516 = vmatpush2.msra.mxu0 0.0
    %1517 = vmatprep.mubr.f32.mxu0 0.0
    %1518 = vmatmul.mubr.f32.gmra.mxu0 %v1451
    %v1519 = vpop.f32.mrf.mxu0
    %v1520 = vadd.f32 0.0, %v1519
    %v1521 = vpop.f32.mrf.mxu0
    %v1522 = vadd.f32 0.0, %v1521
    %1523 = vdwg.mxu0
    %v1525 = vrot.slane %v1520, 6
    %v1527 = vadd.f32 %v1348, %v1525
    %v1528 = vxor.u32 %v1527, 2147483648
    %v1529 = vmul.f32 %v1528, 1.442695
    %v1530 = vpow.pop %v1529
    %v1531 = vadd.f32 %v1530, 1.0
    %v1532 = vrcp.pop %v1531
    %v1533 = vmul.f32 1.0, %v1532
    %v1534 = vadd.f32 %v1522, %v1269
    %v1536 = vrot.slane %v1534, 6
    %v1538 = vmul.f32 %v1533, %v1536
    %v1539 = vadd.f32 %v1350, %v1538
    %v1540 = vtanh.pop %v1539
    %v1541 = vsub.f32 1.0, %v1533
    %1543 = vrot.lane.b32.xlu0 %v1540, 64
    %v1544 = vpop.permute.xlu0 %1543
    %v1546 = vmul.f32 %v1541, %v1544
    %v1547 = vrot.slane %v1447, 6
    %v1549 = vmul.f32 %v1533, %v1547
    %v1550 = vadd.f32 %v1546, %v1549
    %v1552 = vrot.slane %v1550, 2
    %1553 = vrot.lane.b32.xlu0 %v1552, 64
    %v1554 = vpop.permute.xlu0 %1553
    %v1555 = vsel %vm209, %v1554, 0
    %1557 = vmatprep.subr.mxu0 0.0
    %1558 = vmatpush1.msra.mxu0 0.0
    %1559 = vmatprep.subr.mxu0 0.0
    %1560 = vmatpush1.msra.mxu0 0.0
    %1561 = vmatprep.subr.mxu0 0.0
    %1562 = vmatpush1.msra.mxu0 0.0
    %1563 = vmatprep.subr.mxu0 0.0
    %1564 = vmatpush1.msra.mxu0 0.0
    %1565 = vmatprep.subr.mxu0 0.0
    %1566 = vmatpush1.msra.mxu0 0.0
    %1567 = vmatprep.subr.mxu0 0.0
    %1568 = vmatpush1.msra.mxu0 0.0
    %1569 = vmatprep.subr.mxu0 0.0
    %1570 = vmatpush1.msra.mxu0 0.0
    %1571 = vmatprep.subr.mxu0 0.0
    %1572 = vmatpush1.msra.mxu0 0.0
    %1573 = vmatprep.subr.mxu0 %v1266
    %1574 = vmatpush1.msra.mxu0 %v1265
    %1575 = vmatprep.subr.mxu0 %v1264
    %1576 = vmatpush1.msra.mxu0 %v1263
    %1577 = vmatprep.subr.mxu0 %v1262
    %1578 = vmatpush1.msra.mxu0 %v1261
    %1579 = vmatprep.subr.mxu0 %v1260
    %1580 = vmatpush1.msra.mxu0 %v1259
    %1581 = vmatprep.subr.mxu0 %v1258
    %1582 = vmatpush1.msra.mxu0 %v1257
    %1583 = vmatprep.subr.mxu0 %v1256
    %1584 = vmatpush1.msra.mxu0 %v1255
    %1585 = vmatprep.subr.mxu0 %v1254
    %1586 = vmatpush1.msra.mxu0 %v1253
    %1587 = vmatprep.subr.mxu0 %v1252
    %1588 = vmatpush1.msra.mxu0 %v1251
    %1589 = vmatprep.subr.mxu0 0.0
    %1590 = vmatpush2.msra.mxu0 0.0
    %1591 = vmatprep.subr.mxu0 0.0
    %1592 = vmatpush2.msra.mxu0 0.0
    %1593 = vmatprep.subr.mxu0 0.0
    %1594 = vmatpush2.msra.mxu0 0.0
    %1595 = vmatprep.subr.mxu0 0.0
    %1596 = vmatpush2.msra.mxu0 0.0
    %1597 = vmatprep.subr.mxu0 0.0
    %1598 = vmatpush2.msra.mxu0 0.0
    %1599 = vmatprep.subr.mxu0 0.0
    %1600 = vmatpush2.msra.mxu0 0.0
    %1601 = vmatprep.subr.mxu0 0.0
    %1602 = vmatpush2.msra.mxu0 0.0
    %1603 = vmatprep.subr.mxu0 0.0
    %1604 = vmatpush2.msra.mxu0 0.0
    %1605 = vmatprep.subr.mxu0 0.0
    %1606 = vmatpush2.msra.mxu0 0.0
    %1607 = vmatprep.subr.mxu0 0.0
    %1608 = vmatpush2.msra.mxu0 0.0
    %1609 = vmatprep.subr.mxu0 0.0
    %1610 = vmatpush2.msra.mxu0 0.0
    %1611 = vmatprep.subr.mxu0 0.0
    %1612 = vmatpush2.msra.mxu0 0.0
    %1613 = vmatprep.subr.mxu0 0.0
    %1614 = vmatpush2.msra.mxu0 0.0
    %1615 = vmatprep.subr.mxu0 0.0
    %1616 = vmatpush2.msra.mxu0 0.0
    %1617 = vmatprep.subr.mxu0 0.0
    %1618 = vmatpush2.msra.mxu0 0.0
    %1619 = vmatprep.subr.mxu0 0.0
    %1620 = vmatpush2.msra.mxu0 0.0
    %1621 = vmatprep.mubr.f32.mxu0 0.0
    %1622 = vmatmul.mubr.f32.gmra.mxu0 %v1555
    %v1623 = vpop.f32.mrf.mxu0
    %v1624 = vadd.f32 0.0, %v1623
    %v1625 = vpop.f32.mrf.mxu0
    %v1626 = vadd.f32 0.0, %v1625
    %1627 = vdwg.mxu0
    %v1629 = vrot.slane %v1624, 4
    %v1631 = vadd.f32 %v1348, %v1629
    %v1632 = vxor.u32 %v1631, 2147483648
    %v1633 = vmul.f32 %v1632, 1.442695
    %v1634 = vpow.pop %v1633
    %v1635 = vadd.f32 %v1634, 1.0
    %v1636 = vrcp.pop %v1635
    %v1637 = vmul.f32 1.0, %v1636
    %v1638 = vadd.f32 %v1626, %v1269
    %v1640 = vrot.slane %v1638, 4
    %v1642 = vmul.f32 %v1637, %v1640
    %v1643 = vadd.f32 %v1350, %v1642
    %v1644 = vtanh.pop %v1643
    %v1645 = vsub.f32 1.0, %v1637
    %1647 = vrot.lane.b32.xlu0 %v1644, 64
    %v1648 = vpop.permute.xlu0 %1647
    %v1650 = vmul.f32 %v1645, %v1648
    %v1651 = vrot.slane %v1550, 6
    %v1653 = vmul.f32 %v1637, %v1651
    %v1654 = vadd.f32 %v1650, %v1653
    %v1656 = vrot.slane %v1654, 4
    %1657 = vrot.lane.b32.xlu0 %v1656, 64
    %v1658 = vpop.permute.xlu0 %1657
    %v1659 = vsel %vm209, %v1658, 0
    %1661 = vmatprep.subr.mxu0 0.0
    %1662 = vmatpush1.msra.mxu0 0.0
    %1663 = vmatprep.subr.mxu0 0.0
    %1664 = vmatpush1.msra.mxu0 0.0
    %1665 = vmatprep.subr.mxu0 0.0
    %1666 = vmatpush1.msra.mxu0 0.0
    %1667 = vmatprep.subr.mxu0 0.0
    %1668 = vmatpush1.msra.mxu0 0.0
    %1669 = vmatprep.subr.mxu0 0.0
    %1670 = vmatpush1.msra.mxu0 0.0
    %1671 = vmatprep.subr.mxu0 0.0
    %1672 = vmatpush1.msra.mxu0 0.0
    %1673 = vmatprep.subr.mxu0 0.0
    %1674 = vmatpush1.msra.mxu0 0.0
    %1675 = vmatprep.subr.mxu0 0.0
    %1676 = vmatpush1.msra.mxu0 0.0
    %1677 = vmatprep.subr.mxu0 %v1266
    %1678 = vmatpush1.msra.mxu0 %v1265
    %1679 = vmatprep.subr.mxu0 %v1264
    %1680 = vmatpush1.msra.mxu0 %v1263
    %1681 = vmatprep.subr.mxu0 %v1262
    %1682 = vmatpush1.msra.mxu0 %v1261
    %1683 = vmatprep.subr.mxu0 %v1260
    %1684 = vmatpush1.msra.mxu0 %v1259
    %1685 = vmatprep.subr.mxu0 %v1258
    %1686 = vmatpush1.msra.mxu0 %v1257
    %1687 = vmatprep.subr.mxu0 %v1256
    %1688 = vmatpush1.msra.mxu0 %v1255
    %1689 = vmatprep.subr.mxu0 %v1254
    %1690 = vmatpush1.msra.mxu0 %v1253
    %1691 = vmatprep.subr.mxu0 %v1252
    %1692 = vmatpush1.msra.mxu0 %v1251
    %1693 = vmatprep.subr.mxu0 0.0
    %1694 = vmatpush2.msra.mxu0 0.0
    %1695 = vmatprep.subr.mxu0 0.0
    %1696 = vmatpush2.msra.mxu0 0.0
    %1697 = vmatprep.subr.mxu0 0.0
    %1698 = vmatpush2.msra.mxu0 0.0
    %1699 = vmatprep.subr.mxu0 0.0
    %1700 = vmatpush2.msra.mxu0 0.0
    %1701 = vmatprep.subr.mxu0 0.0
    %1702 = vmatpush2.msra.mxu0 0.0
    %1703 = vmatprep.subr.mxu0 0.0
    %1704 = vmatpush2.msra.mxu0 0.0
    %1705 = vmatprep.subr.mxu0 0.0
    %1706 = vmatpush2.msra.mxu0 0.0
    %1707 = vmatprep.subr.mxu0 0.0
    %1708 = vmatpush2.msra.mxu0 0.0
    %1709 = vmatprep.subr.mxu0 0.0
    %1710 = vmatpush2.msra.mxu0 0.0
    %1711 = vmatprep.subr.mxu0 0.0
    %1712 = vmatpush2.msra.mxu0 0.0
    %1713 = vmatprep.subr.mxu0 0.0
    %1714 = vmatpush2.msra.mxu0 0.0
    %1715 = vmatprep.subr.mxu0 0.0
    %1716 = vmatpush2.msra.mxu0 0.0
    %1717 = vmatprep.subr.mxu0 0.0
    %1718 = vmatpush2.msra.mxu0 0.0
    %1719 = vmatprep.subr.mxu0 0.0
    %1720 = vmatpush2.msra.mxu0 0.0
    %1721 = vmatprep.subr.mxu0 0.0
    %1722 = vmatpush2.msra.mxu0 0.0
    %1723 = vmatprep.subr.mxu0 0.0
    %1724 = vmatpush2.msra.mxu0 0.0
    %1725 = vmatprep.mubr.f32.mxu0 0.0
    %1726 = vmatmul.mubr.f32.gmra.mxu0 %v1659
    %v1727 = vpop.f32.mrf.mxu0
    %v1728 = vadd.f32 0.0, %v1727
    %v1729 = vpop.f32.mrf.mxu0
    %v1730 = vadd.f32 0.0, %v1729
    %1731 = vdwg.mxu0
    %v1733 = vrot.slane %v1728, 2
    %v1735 = vadd.f32 %v1348, %v1733
    %v1736 = vxor.u32 %v1735, 2147483648
    %v1737 = vmul.f32 %v1736, 1.442695
    %v1738 = vpow.pop %v1737
    %v1739 = vadd.f32 %v1738, 1.0
    %v1740 = vrcp.pop %v1739
    %v1741 = vmul.f32 1.0, %v1740
    %v1742 = vadd.f32 %v1730, %v1269
    %v1744 = vrot.slane %v1742, 2
    %v1746 = vmul.f32 %v1741, %v1744
    %v1747 = vadd.f32 %v1350, %v1746
    %v1748 = vtanh.pop %v1747
    %v1749 = vsub.f32 1.0, %v1741
    %1751 = vrot.lane.b32.xlu0 %v1748, 64
    %v1752 = vpop.permute.xlu0 %1751
    %v1754 = vmul.f32 %v1749, %v1752
    %v1755 = vrot.slane %v1654, 6
    %v1757 = vmul.f32 %v1741, %v1755
    %v1758 = vadd.f32 %v1754, %v1757
    %v1760 = vrot.slane %v1758, 6
    %1761 = vrot.lane.b32.xlu0 %v1760, 64
    %v1762 = vpop.permute.xlu0 %1761
    %v1763 = vsel %vm209, %v1762, 0
    %1765 = vmatprep.subr.mxu0 0.0
    %1766 = vmatpush1.msra.mxu0 0.0
    %1767 = vmatprep.subr.mxu0 0.0
    %1768 = vmatpush1.msra.mxu0 0.0
    %1769 = vmatprep.subr.mxu0 0.0
    %1770 = vmatpush1.msra.mxu0 0.0
    %1771 = vmatprep.subr.mxu0 0.0
    %1772 = vmatpush1.msra.mxu0 0.0
    %1773 = vmatprep.subr.mxu0 0.0
    %1774 = vmatpush1.msra.mxu0 0.0
    %1775 = vmatprep.subr.mxu0 0.0
    %1776 = vmatpush1.msra.mxu0 0.0
    %1777 = vmatprep.subr.mxu0 0.0
    %1778 = vmatpush1.msra.mxu0 0.0
    %1779 = vmatprep.subr.mxu0 0.0
    %1780 = vmatpush1.msra.mxu0 0.0
    %1781 = vmatprep.subr.mxu0 %v1266
    %1782 = vmatpush1.msra.mxu0 %v1265
    %1783 = vmatprep.subr.mxu0 %v1264
    %1784 = vmatpush1.msra.mxu0 %v1263
    %1785 = vmatprep.subr.mxu0 %v1262
    %1786 = vmatpush1.msra.mxu0 %v1261
    %1787 = vmatprep.subr.mxu0 %v1260
    %1788 = vmatpush1.msra.mxu0 %v1259
    %1789 = vmatprep.subr.mxu0 %v1258
    %1790 = vmatpush1.msra.mxu0 %v1257
    %1791 = vmatprep.subr.mxu0 %v1256
    %1792 = vmatpush1.msra.mxu0 %v1255
    %1793 = vmatprep.subr.mxu0 %v1254
    %1794 = vmatpush1.msra.mxu0 %v1253
    %1795 = vmatprep.subr.mxu0 %v1252
    %1796 = vmatpush1.msra.mxu0 %v1251
    %1797 = vmatprep.subr.mxu0 0.0
    %1798 = vmatpush2.msra.mxu0 0.0
    %1799 = vmatprep.subr.mxu0 0.0
    %1800 = vmatpush2.msra.mxu0 0.0
    %1801 = vmatprep.subr.mxu0 0.0
    %1802 = vmatpush2.msra.mxu0 0.0
    %1803 = vmatprep.subr.mxu0 0.0
    %1804 = vmatpush2.msra.mxu0 0.0
    %1805 = vmatprep.subr.mxu0 0.0
    %1806 = vmatpush2.msra.mxu0 0.0
    %1807 = vmatprep.subr.mxu0 0.0
    %1808 = vmatpush2.msra.mxu0 0.0
    %1809 = vmatprep.subr.mxu0 0.0
    %1810 = vmatpush2.msra.mxu0 0.0
    %1811 = vmatprep.subr.mxu0 0.0
    %1812 = vmatpush2.msra.mxu0 0.0
    %1813 = vmatprep.subr.mxu0 0.0
    %1814 = vmatpush2.msra.mxu0 0.0
    %1815 = vmatprep.subr.mxu0 0.0
    %1816 = vmatpush2.msra.mxu0 0.0
    %1817 = vmatprep.subr.mxu0 0.0
    %1818 = vmatpush2.msra.mxu0 0.0
    %1819 = vmatprep.subr.mxu0 0.0
    %1820 = vmatpush2.msra.mxu0 0.0
    %1821 = vmatprep.subr.mxu0 0.0
    %1822 = vmatpush2.msra.mxu0 0.0
    %1823 = vmatprep.subr.mxu0 0.0
    %1824 = vmatpush2.msra.mxu0 0.0
    %1825 = vmatprep.subr.mxu0 0.0
    %1826 = vmatpush2.msra.mxu0 0.0
    %1827 = vmatprep.subr.mxu0 0.0
    %1828 = vmatpush2.msra.mxu0 0.0
    %1829 = vmatprep.mubr.f32.mxu0 0.0
    %1830 = vmatmul.mubr.f32.gmra.mxu0 %v1763
    %v1831 = vpop.f32.mrf.mxu0
    %v1832 = vadd.f32 0.0, %v1831
    %v1833 = vpop.f32.mrf.mxu0
    %v1834 = vadd.f32 0.0, %v1833
    %1835 = vdwg.mxu0
    %v1836 = vadd.f32 %v1354, %v1832
    %v1837 = vxor.u32 %v1836, 2147483648
    %v1838 = vmul.f32 %v1837, 1.442695
    %v1839 = vpow.pop %v1838
    %v1840 = vadd.f32 %v1839, 1.0
    %v1841 = vrcp.pop %v1840
    %v1842 = vmul.f32 1.0, %v1841
    %v1843 = vadd.f32 %v1834, %v1269
    %v1844 = vmul.f32 %v1842, %v1843
    %v1845 = vadd.f32 %v1356, %v1844
    %v1846 = vtanh.pop %v1845
    %v1847 = vsub.f32 1.0, %v1842
    %1849 = vrot.lane.b32.xlu0 %v1846, 64
    %v1850 = vpop.permute.xlu0 %1849
    %v1852 = vmul.f32 %v1847, %v1850
    %v1854 = vmul.f32 %v1842, %v1760
    %v1855 = vadd.f32 %v1852, %v1854
    %1857 = vrot.lane.b32.xlu0 %v1855, 64
    %v1858 = vpop.permute.xlu0 %1857
    %v1859 = vsel %vm209, %v1858, 0
    %1861 = vmatprep.subr.mxu0 0.0
    %1862 = vmatpush1.msra.mxu0 0.0
    %1863 = vmatprep.subr.mxu0 0.0
    %1864 = vmatpush1.msra.mxu0 0.0
    %1865 = vmatprep.subr.mxu0 0.0
    %1866 = vmatpush1.msra.mxu0 0.0
    %1867 = vmatprep.subr.mxu0 0.0
    %1868 = vmatpush1.msra.mxu0 0.0
    %1869 = vmatprep.subr.mxu0 0.0
    %1870 = vmatpush1.msra.mxu0 0.0
    %1871 = vmatprep.subr.mxu0 0.0
    %1872 = vmatpush1.msra.mxu0 0.0
    %1873 = vmatprep.subr.mxu0 0.0
    %1874 = vmatpush1.msra.mxu0 0.0
    %1875 = vmatprep.subr.mxu0 0.0
    %1876 = vmatpush1.msra.mxu0 0.0
    %1877 = vmatprep.subr.mxu0 %v1266
    %1878 = vmatpush1.msra.mxu0 %v1265
    %1879 = vmatprep.subr.mxu0 %v1264
    %1880 = vmatpush1.msra.mxu0 %v1263
    %1881 = vmatprep.subr.mxu0 %v1262
    %1882 = vmatpush1.msra.mxu0 %v1261
    %1883 = vmatprep.subr.mxu0 %v1260
    %1884 = vmatpush1.msra.mxu0 %v1259
    %1885 = vmatprep.subr.mxu0 %v1258
    %1886 = vmatpush1.msra.mxu0 %v1257
    %1887 = vmatprep.subr.mxu0 %v1256
    %1888 = vmatpush1.msra.mxu0 %v1255
    %1889 = vmatprep.subr.mxu0 %v1254
    %1890 = vmatpush1.msra.mxu0 %v1253
    %1891 = vmatprep.subr.mxu0 %v1252
    %1892 = vmatpush1.msra.mxu0 %v1251
    %1893 = vmatprep.subr.mxu0 0.0
    %1894 = vmatpush2.msra.mxu0 0.0
    %1895 = vmatprep.subr.mxu0 0.0
    %1896 = vmatpush2.msra.mxu0 0.0
    %1897 = vmatprep.subr.mxu0 0.0
    %1898 = vmatpush2.msra.mxu0 0.0
    %1899 = vmatprep.subr.mxu0 0.0
    %1900 = vmatpush2.msra.mxu0 0.0
    %1901 = vmatprep.subr.mxu0 0.0
    %1902 = vmatpush2.msra.mxu0 0.0
    %1903 = vmatprep.subr.mxu0 0.0
    %1904 = vmatpush2.msra.mxu0 0.0
    %1905 = vmatprep.subr.mxu0 0.0
    %1906 = vmatpush2.msra.mxu0 0.0
    %1907 = vmatprep.subr.mxu0 0.0
    %1908 = vmatpush2.msra.mxu0 0.0
    %1909 = vmatprep.subr.mxu0 0.0
    %1910 = vmatpush2.msra.mxu0 0.0
    %1911 = vmatprep.subr.mxu0 0.0
    %1912 = vmatpush2.msra.mxu0 0.0
    %1913 = vmatprep.subr.mxu0 0.0
    %1914 = vmatpush2.msra.mxu0 0.0
    %1915 = vmatprep.subr.mxu0 0.0
    %1916 = vmatpush2.msra.mxu0 0.0
    %1917 = vmatprep.subr.mxu0 0.0
    %1918 = vmatpush2.msra.mxu0 0.0
    %1919 = vmatprep.subr.mxu0 0.0
    %1920 = vmatpush2.msra.mxu0 0.0
    %1921 = vmatprep.subr.mxu0 0.0
    %1922 = vmatpush2.msra.mxu0 0.0
    %1923 = vmatprep.subr.mxu0 0.0
    %1924 = vmatpush2.msra.mxu0 0.0
    %1925 = vmatprep.mubr.f32.mxu0 0.0
    %1926 = vmatmul.mubr.f32.gmra.mxu0 %v1859
    %v1927 = vpop.f32.mrf.mxu0
    %v1928 = vadd.f32 0.0, %v1927
    %v1929 = vpop.f32.mrf.mxu0
    %v1930 = vadd.f32 0.0, %v1929
    %1931 = vdwg.mxu0
    %v1933 = vrot.slane %v1928, 6
    %v1935 = vadd.f32 %v1354, %v1933
    %v1936 = vxor.u32 %v1935, 2147483648
    %v1937 = vmul.f32 %v1936, 1.442695
    %v1938 = vpow.pop %v1937
    %v1939 = vadd.f32 %v1938, 1.0
    %v1940 = vrcp.pop %v1939
    %v1941 = vmul.f32 1.0, %v1940
    %v1942 = vadd.f32 %v1930, %v1269
    %v1944 = vrot.slane %v1942, 6
    %v1946 = vmul.f32 %v1941, %v1944
    %v1947 = vadd.f32 %v1356, %v1946
    %v1948 = vtanh.pop %v1947
    %v1949 = vsub.f32 1.0, %v1941
    %1951 = vrot.lane.b32.xlu0 %v1948, 64
    %v1952 = vpop.permute.xlu0 %1951
    %v1954 = vmul.f32 %v1949, %v1952
    %v1955 = vrot.slane %v1855, 6
    %v1957 = vmul.f32 %v1941, %v1955
    %v1958 = vadd.f32 %v1954, %v1957
    %v1960 = vrot.slane %v1958, 2
    %1961 = vrot.lane.b32.xlu0 %v1960, 64
    %v1962 = vpop.permute.xlu0 %1961
    %v1963 = vsel %vm209, %v1962, 0
    %1965 = vmatprep.subr.mxu0 0.0
    %1966 = vmatpush1.msra.mxu0 0.0
    %1967 = vmatprep.subr.mxu0 0.0
    %1968 = vmatpush1.msra.mxu0 0.0
    %1969 = vmatprep.subr.mxu0 0.0
    %1970 = vmatpush1.msra.mxu0 0.0
    %1971 = vmatprep.subr.mxu0 0.0
    %1972 = vmatpush1.msra.mxu0 0.0
    %1973 = vmatprep.subr.mxu0 0.0
    %1974 = vmatpush1.msra.mxu0 0.0
    %1975 = vmatprep.subr.mxu0 0.0
    %1976 = vmatpush1.msra.mxu0 0.0
    %1977 = vmatprep.subr.mxu0 0.0
    %1978 = vmatpush1.msra.mxu0 0.0
    %1979 = vmatprep.subr.mxu0 0.0
    %1980 = vmatpush1.msra.mxu0 0.0
    %1981 = vmatprep.subr.mxu0 %v1266
    %1982 = vmatpush1.msra.mxu0 %v1265
    %1983 = vmatprep.subr.mxu0 %v1264
    %1984 = vmatpush1.msra.mxu0 %v1263
    %1985 = vmatprep.subr.mxu0 %v1262
    %1986 = vmatpush1.msra.mxu0 %v1261
    %1987 = vmatprep.subr.mxu0 %v1260
    %1988 = vmatpush1.msra.mxu0 %v1259
    %1989 = vmatprep.subr.mxu0 %v1258
    %1990 = vmatpush1.msra.mxu0 %v1257
    %1991 = vmatprep.subr.mxu0 %v1256
    %1992 = vmatpush1.msra.mxu0 %v1255
    %1993 = vmatprep.subr.mxu0 %v1254
    %1994 = vmatpush1.msra.mxu0 %v1253
    %1995 = vmatprep.subr.mxu0 %v1252
    %1996 = vmatpush1.msra.mxu0 %v1251
    %1997 = vmatprep.subr.mxu0 0.0
    %1998 = vmatpush2.msra.mxu0 0.0
    %1999 = vmatprep.subr.mxu0 0.0
    %2000 = vmatpush2.msra.mxu0 0.0
    %2001 = vmatprep.subr.mxu0 0.0
    %2002 = vmatpush2.msra.mxu0 0.0
    %2003 = vmatprep.subr.mxu0 0.0
    %2004 = vmatpush2.msra.mxu0 0.0
    %2005 = vmatprep.subr.mxu0 0.0
    %2006 = vmatpush2.msra.mxu0 0.0
    %2007 = vmatprep.subr.mxu0 0.0
    %2008 = vmatpush2.msra.mxu0 0.0
    %2009 = vmatprep.subr.mxu0 0.0
    %2010 = vmatpush2.msra.mxu0 0.0
    %2011 = vmatprep.subr.mxu0 0.0
    %2012 = vmatpush2.msra.mxu0 0.0
    %2013 = vmatprep.subr.mxu0 0.0
    %2014 = vmatpush2.msra.mxu0 0.0
    %2015 = vmatprep.subr.mxu0 0.0
    %2016 = vmatpush2.msra.mxu0 0.0
    %2017 = vmatprep.subr.mxu0 0.0
    %2018 = vmatpush2.msra.mxu0 0.0
    %2019 = vmatprep.subr.mxu0 0.0
    %2020 = vmatpush2.msra.mxu0 0.0
    %2021 = vmatprep.subr.mxu0 0.0
    %2022 = vmatpush2.msra.mxu0 0.0
    %2023 = vmatprep.subr.mxu0 0.0
    %2024 = vmatpush2.msra.mxu0 0.0
    %2025 = vmatprep.subr.mxu0 0.0
    %2026 = vmatpush2.msra.mxu0 0.0
    %2027 = vmatprep.subr.mxu0 0.0
    %2028 = vmatpush2.msra.mxu0 0.0
    %2029 = vmatprep.mubr.f32.mxu0 0.0
    %2030 = vmatmul.mubr.f32.gmra.mxu0 %v1963
    %v2031 = vpop.f32.mrf.mxu0
    %v2032 = vadd.f32 0.0, %v2031
    %v2033 = vpop.f32.mrf.mxu0
    %v2034 = vadd.f32 0.0, %v2033
    %2035 = vdwg.mxu0
    %v2037 = vrot.slane %v2032, 4
    %v2039 = vadd.f32 %v1354, %v2037
    %v2040 = vxor.u32 %v2039, 2147483648
    %v2041 = vmul.f32 %v2040, 1.442695
    %v2042 = vpow.pop %v2041
    %v2043 = vadd.f32 %v2042, 1.0
    %v2044 = vrcp.pop %v2043
    %v2045 = vmul.f32 1.0, %v2044
    %v2046 = vadd.f32 %v2034, %v1269
    %v2048 = vrot.slane %v2046, 4
    %v2050 = vmul.f32 %v2045, %v2048
    %v2051 = vadd.f32 %v1356, %v2050
    %v2052 = vtanh.pop %v2051
    %v2053 = vsub.f32 1.0, %v2045
    %2055 = vrot.lane.b32.xlu0 %v2052, 64
    %v2056 = vpop.permute.xlu0 %2055
    %v2058 = vmul.f32 %v2053, %v2056
    %v2059 = vrot.slane %v1958, 6
    %v2061 = vmul.f32 %v2045, %v2059
    %v2062 = vadd.f32 %v2058, %v2061
    %v2064 = vrot.slane %v2062, 4
    %2065 = vrot.lane.b32.xlu0 %v2064, 64
    %v2066 = vpop.permute.xlu0 %2065
    %v2067 = vsel %vm209, %v2066, 0
    %2069 = vmatprep.subr.mxu0 0.0
    %2070 = vmatpush1.msra.mxu0 0.0
    %2071 = vmatprep.subr.mxu0 0.0
    %2072 = vmatpush1.msra.mxu0 0.0
    %2073 = vmatprep.subr.mxu0 0.0
    %2074 = vmatpush1.msra.mxu0 0.0
    %2075 = vmatprep.subr.mxu0 0.0
    %2076 = vmatpush1.msra.mxu0 0.0
    %2077 = vmatprep.subr.mxu0 0.0
    %2078 = vmatpush1.msra.mxu0 0.0
    %2079 = vmatprep.subr.mxu0 0.0
    %2080 = vmatpush1.msra.mxu0 0.0
    %2081 = vmatprep.subr.mxu0 0.0
    %2082 = vmatpush1.msra.mxu0 0.0
    %2083 = vmatprep.subr.mxu0 0.0
    %2084 = vmatpush1.msra.mxu0 0.0
    %2085 = vmatprep.subr.mxu0 %v1266
    %2086 = vmatpush1.msra.mxu0 %v1265
    %2087 = vmatprep.subr.mxu0 %v1264
    %2088 = vmatpush1.msra.mxu0 %v1263
    %2089 = vmatprep.subr.mxu0 %v1262
    %2090 = vmatpush1.msra.mxu0 %v1261
    %2091 = vmatprep.subr.mxu0 %v1260
    %2092 = vmatpush1.msra.mxu0 %v1259
    %2093 = vmatprep.subr.mxu0 %v1258
    %2094 = vmatpush1.msra.mxu0 %v1257
    %2095 = vmatprep.subr.mxu0 %v1256
    %2096 = vmatpush1.msra.mxu0 %v1255
    %2097 = vmatprep.subr.mxu0 %v1254
    %2098 = vmatpush1.msra.mxu0 %v1253
    %2099 = vmatprep.subr.mxu0 %v1252
    %2100 = vmatpush1.msra.mxu0 %v1251
    %2101 = vmatprep.subr.mxu0 0.0
    %2102 = vmatpush2.msra.mxu0 0.0
    %2103 = vmatprep.subr.mxu0 0.0
    %2104 = vmatpush2.msra.mxu0 0.0
    %2105 = vmatprep.subr.mxu0 0.0
    %2106 = vmatpush2.msra.mxu0 0.0
    %2107 = vmatprep.subr.mxu0 0.0
    %2108 = vmatpush2.msra.mxu0 0.0
    %2109 = vmatprep.subr.mxu0 0.0
    %2110 = vmatpush2.msra.mxu0 0.0
    %2111 = vmatprep.subr.mxu0 0.0
    %2112 = vmatpush2.msra.mxu0 0.0
    %2113 = vmatprep.subr.mxu0 0.0
    %2114 = vmatpush2.msra.mxu0 0.0
    %2115 = vmatprep.subr.mxu0 0.0
    %2116 = vmatpush2.msra.mxu0 0.0
    %2117 = vmatprep.subr.mxu0 0.0
    %2118 = vmatpush2.msra.mxu0 0.0
    %2119 = vmatprep.subr.mxu0 0.0
    %2120 = vmatpush2.msra.mxu0 0.0
    %2121 = vmatprep.subr.mxu0 0.0
    %2122 = vmatpush2.msra.mxu0 0.0
    %2123 = vmatprep.subr.mxu0 0.0
    %2124 = vmatpush2.msra.mxu0 0.0
    %2125 = vmatprep.subr.mxu0 0.0
    %2126 = vmatpush2.msra.mxu0 0.0
    %2127 = vmatprep.subr.mxu0 0.0
    %2128 = vmatpush2.msra.mxu0 0.0
    %2129 = vmatprep.subr.mxu0 0.0
    %2130 = vmatpush2.msra.mxu0 0.0
    %2131 = vmatprep.subr.mxu0 0.0
    %2132 = vmatpush2.msra.mxu0 0.0
    %2133 = vmatprep.mubr.f32.mxu0 0.0
    %2134 = vmatmul.mubr.f32.gmra.mxu0 %v2067
    %v2135 = vpop.f32.mrf.mxu0
    %v2136 = vadd.f32 0.0, %v2135
    %v2137 = vpop.f32.mrf.mxu0
    %v2138 = vadd.f32 0.0, %v2137
    %2139 = vdwg.mxu0
    %v2141 = vrot.slane %v2136, 2
    %v2143 = vadd.f32 %v1354, %v2141
    %v2144 = vxor.u32 %v2143, 2147483648
    %v2145 = vmul.f32 %v2144, 1.442695
    %v2146 = vpow.pop %v2145
    %v2147 = vadd.f32 %v2146, 1.0
    %v2148 = vrcp.pop %v2147
    %v2149 = vmul.f32 1.0, %v2148
    %v2150 = vadd.f32 %v2138, %v1269
    %v2152 = vrot.slane %v2150, 2
    %v2154 = vmul.f32 %v2149, %v2152
    %v2155 = vadd.f32 %v1356, %v2154
    %v2156 = vtanh.pop %v2155
    %v2157 = vsub.f32 1.0, %v2149
    %2159 = vrot.lane.b32.xlu0 %v2156, 64
    %v2160 = vpop.permute.xlu0 %2159
    %v2162 = vmul.f32 %v2157, %v2160
    %v2163 = vrot.slane %v2062, 6
    %v2165 = vmul.f32 %v2149, %v2163
    %v2166 = vadd.f32 %v2162, %v2165
    %v2167 = vsel %vm1105, %v1447, %v1550
    %v2168 = vsel %vm1107, %v2167, %v1654
    %v2169 = vsel %vm1109, %v2168, %v1758
    %v2170 = vsel %vm1105, %v1855, %v1958
    %v2171 = vsel %vm1107, %v2170, %v2062
    %v2172 = vsel %vm1109, %v2171, %v2166
    %2175 = vrot.lane.b32.xlu0 %v2169, 64
    %v2176 = vpop.permute.xlu0 %2175
    %2177 = vrot.lane.b32.xlu0 %v2172, 64
    %v2178 = vpop.permute.xlu0 %2177
    %2181 = vmatprep.subr.mxu0 0.0
    %2182 = vmatpush1.msra.mxu0 0.0
    %2183 = vmatprep.subr.mxu0 0.0
    %2184 = vmatpush1.msra.mxu0 0.0
    %2185 = vmatprep.subr.mxu0 0.0
    %2186 = vmatpush1.msra.mxu0 0.0
    %2187 = vmatprep.subr.mxu0 0.0
    %2188 = vmatpush1.msra.mxu0 0.0
    %2189 = vmatprep.subr.mxu0 0.0
    %2190 = vmatpush1.msra.mxu0 0.0
    %2191 = vmatprep.subr.mxu0 0.0
    %2192 = vmatpush1.msra.mxu0 0.0
    %2193 = vmatprep.subr.mxu0 0.0
    %2194 = vmatpush1.msra.mxu0 0.0
    %2195 = vmatprep.subr.mxu0 0.0
    %2196 = vmatpush1.msra.mxu0 0.0
    %2197 = vmatprep.subr.mxu0 0.0
    %2198 = vmatpush1.msra.mxu0 0.0
    %2199 = vmatprep.subr.mxu0 0.0
    %2200 = vmatpush1.msra.mxu0 0.0
    %2201 = vmatprep.subr.mxu0 0.0
    %2202 = vmatpush1.msra.mxu0 0.0
    %2203 = vmatprep.subr.mxu0 0.0
    %2204 = vmatpush1.msra.mxu0 0.0
    %2205 = vmatprep.subr.mxu0 0.0
    %2206 = vmatpush1.msra.mxu0 0.0
    %2207 = vmatprep.subr.mxu0 0.0
    %2208 = vmatpush1.msra.mxu0 0.0
    %2209 = vmatprep.subr.mxu0 0.0
    %2210 = vmatpush1.msra.mxu0 %v2178
    %2211 = vmatprep.subr.mxu0 0.0
    %2212 = vmatpush1.msra.mxu0 %v2176
    %2213 = vmatprep.subr.mxu0 0.0
    %2214 = vmatpush2.msra.mxu0 0.0
    %2215 = vmatprep.subr.mxu0 0.0
    %2216 = vmatpush2.msra.mxu0 0.0
    %2217 = vmatprep.subr.mxu0 0.0
    %2218 = vmatpush2.msra.mxu0 0.0
    %2219 = vmatprep.subr.mxu0 0.0
    %2220 = vmatpush2.msra.mxu0 0.0
    %2221 = vmatprep.subr.mxu0 0.0
    %2222 = vmatpush2.msra.mxu0 0.0
    %2223 = vmatprep.subr.mxu0 0.0
    %2224 = vmatpush2.msra.mxu0 0.0
    %2225 = vmatprep.subr.mxu0 0.0
    %2226 = vmatpush2.msra.mxu0 0.0
    %2227 = vmatprep.subr.mxu0 0.0
    %2228 = vmatpush2.msra.mxu0 0.0
    %2229 = vmatprep.subr.mxu0 0.0
    %2230 = vmatpush2.msra.mxu0 0.0
    %2231 = vmatprep.subr.mxu0 0.0
    %2232 = vmatpush2.msra.mxu0 0.0
    %2233 = vmatprep.subr.mxu0 0.0
    %2234 = vmatpush2.msra.mxu0 0.0
    %2235 = vmatprep.subr.mxu0 0.0
    %2236 = vmatpush2.msra.mxu0 0.0
    %2237 = vmatprep.subr.mxu0 0.0
    %2238 = vmatpush2.msra.mxu0 0.0
    %2239 = vmatprep.subr.mxu0 0.0
    %2240 = vmatpush2.msra.mxu0 0.0
    %2241 = vmatprep.subr.mxu0 0.0
    %2242 = vmatpush2.msra.mxu0 0.0
    %2243 = vmatprep.subr.mxu0 0.0
    %2244 = vmatpush2.msra.mxu0 0.0
    %2245 = vmatprep.mubr.f32.mxu0 0.0
    %2246 = vmatmul.mubr.f32.gmra.mxu0 %v1124
    %v2247 = vpop.f32.mrf.mxu0
    %v2248 = vadd.f32 0.0, %v2247
    %v2249 = vpop.f32.mrf.mxu0
    %2250 = vmatprep.mubr.f32.mxu0 0.0
    %2251 = vmatmul.mubr.f32.gmra.mxu0 %v1127
    %v2252 = vpop.f32.mrf.mxu0
    %v2253 = vadd.f32 0.0, %v2252
    %v2254 = vpop.f32.mrf.mxu0
    %2255 = vdwg.mxu0
    %v2256 = vsel %vm158, %v2176, %v2248
    %v2257 = vsel %vm158, %v2178, %v2253
    %v2258 = vld [vmem:[%s2 + $0x58] sm:$0xff]
    %v2259 = vld [vmem:[%s2 + $0x60] sm:$0xff]
    %v2260 = vld [vmem:[%s2 + $0x68] sm:$0xff]
    %v2261 = vld [vmem:[%s2 + $0x70] sm:$0xff]
    %v2262 = vld [vmem:[%s2 + $0x78] sm:$0xff]
    %v2263 = vld [vmem:[%s2 + $0x80] sm:$0xff]
    %v2264 = vld [vmem:[%s2 + $0x88] sm:$0xff]
    %v2265 = vld [vmem:[%s2 + $0x90] sm:$0xff]
    %v2266 = vld [vmem:[%s2 + $0xab] sm:$0x1]
    %v2267 = vld [vmem:[%s2 + $0x18] sm:$0xff]
    %v2268 = vld [vmem:[%s2 + $0x20] sm:$0xff]
    %v2269 = vld [vmem:[%s2 + $0x28] sm:$0xff]
    %v2270 = vld [vmem:[%s2 + $0x30] sm:$0xff]
    %v2271 = vld [vmem:[%s2 + $0x38] sm:$0xff]
    %v2272 = vld [vmem:[%s2 + $0x40] sm:$0xff]
    %v2273 = vld [vmem:[%s2 + $0x48] sm:$0xff]
    %v2274 = vld [vmem:[%s2 + $0x50] sm:$0xff]
    %v2275 = vld [vmem:[%s2 + $0xaa] sm:$0x1]
    %v2276 = vld [vmem:[%s2 + $0xa8] sm:$0x3]
    %v2277 = vlaneseq
    %v2278 = vshrl.u32 %v2277, 7
    %v2279 = vsub.s32 0, %v2278
    %v2280 = vrot.slane %v2266, %v2279
    %v2282 = vsel %vm209, %v2256, 0
    %v2285 = vsel %vm209, %v2257, 0
    %2287 = vmatprep.subr.mxu0 0.0
    %2288 = vmatpush1.msra.mxu0 0.0
    %2289 = vmatprep.subr.mxu0 0.0
    %2290 = vmatpush1.msra.mxu0 0.0
    %2291 = vmatprep.subr.mxu0 0.0
    %2292 = vmatpush1.msra.mxu0 0.0
    %2293 = vmatprep.subr.mxu0 0.0
    %2294 = vmatpush1.msra.mxu0 0.0
    %2295 = vmatprep.subr.mxu0 0.0
    %2296 = vmatpush1.msra.mxu0 0.0
    %2297 = vmatprep.subr.mxu0 0.0
    %2298 = vmatpush1.msra.mxu0 0.0
    %2299 = vmatprep.subr.mxu0 0.0
    %2300 = vmatpush1.msra.mxu0 0.0
    %2301 = vmatprep.subr.mxu0 0.0
    %2302 = vmatpush1.msra.mxu0 0.0
    %2303 = vmatprep.subr.mxu0 0.0
    %2304 = vmatpush1.msra.mxu0 %v2265
    %2305 = vmatprep.subr.mxu0 0.0
    %2306 = vmatpush1.msra.mxu0 %v2264
    %2307 = vmatprep.subr.mxu0 0.0
    %2308 = vmatpush1.msra.mxu0 %v2263
    %2309 = vmatprep.subr.mxu0 0.0
    %2310 = vmatpush1.msra.mxu0 %v2262
    %2311 = vmatprep.subr.mxu0 0.0
    %2312 = vmatpush1.msra.mxu0 %v2261
    %2313 = vmatprep.subr.mxu0 0.0
    %2314 = vmatpush1.msra.mxu0 %v2260
    %2315 = vmatprep.subr.mxu0 0.0
    %2316 = vmatpush1.msra.mxu0 %v2259
    %2317 = vmatprep.subr.mxu0 0.0
    %2318 = vmatpush1.msra.mxu0 %v2258
    %2319 = vmatprep.subr.mxu0 0.0
    %2320 = vmatpush2.msra.mxu0 0.0
    %2321 = vmatprep.subr.mxu0 0.0
    %2322 = vmatpush2.msra.mxu0 0.0
    %2323 = vmatprep.subr.mxu0 0.0
    %2324 = vmatpush2.msra.mxu0 0.0
    %2325 = vmatprep.subr.mxu0 0.0
    %2326 = vmatpush2.msra.mxu0 0.0
    %2327 = vmatprep.subr.mxu0 0.0
    %2328 = vmatpush2.msra.mxu0 0.0
    %2329 = vmatprep.subr.mxu0 0.0
    %2330 = vmatpush2.msra.mxu0 0.0
    %2331 = vmatprep.subr.mxu0 0.0
    %2332 = vmatpush2.msra.mxu0 0.0
    %2333 = vmatprep.subr.mxu0 0.0
    %2334 = vmatpush2.msra.mxu0 0.0
    %2335 = vmatprep.subr.mxu0 0.0
    %2336 = vmatpush2.msra.mxu0 0.0
    %2337 = vmatprep.subr.mxu0 0.0
    %2338 = vmatpush2.msra.mxu0 0.0
    %2339 = vmatprep.subr.mxu0 0.0
    %2340 = vmatpush2.msra.mxu0 0.0
    %2341 = vmatprep.subr.mxu0 0.0
    %2342 = vmatpush2.msra.mxu0 0.0
    %2343 = vmatprep.subr.mxu0 0.0
    %2344 = vmatpush2.msra.mxu0 0.0
    %2345 = vmatprep.subr.mxu0 0.0
    %2346 = vmatpush2.msra.mxu0 0.0
    %2347 = vmatprep.subr.mxu0 0.0
    %2348 = vmatpush2.msra.mxu0 0.0
    %2349 = vmatprep.subr.mxu0 0.0
    %2350 = vmatpush2.msra.mxu0 0.0
    %2351 = vmatprep.mubr.f32.mxu0 0.0
    %2352 = vmatmul.mubr.f32.gmra.mxu0 %v2282
    %v2353 = vpop.f32.mrf.mxu0
    %v2354 = vadd.f32 %v2280, %v2353
    %v2355 = vpop.f32.mrf.mxu0
    %2356 = vmatprep.mubr.f32.mxu0 0.0
    %2357 = vmatmul.mubr.f32.gmra.mxu0 %v2285
    %v2358 = vpop.f32.mrf.mxu0
    %v2359 = vadd.f32 %v2280, %v2358
    %v2360 = vpop.f32.mrf.mxu0
    %2361 = vdwg.mxu0
    %vm2362 = vcmask 7168
    %v2363 = vsel %vm2362, %v2354, -inf
    %v2364 = vsel %vm2362, %v2359, -inf
    %v2365 = vmax.f32 %v2363, %v2364
    %v2366 = vrot.slane %v2365, 4
    %v2367 = vmax.f32 %v2365, %v2366
    %v2368 = vrot.slane %v2367, 2
    %v2369 = vmax.f32 %v2367, %v2368
    %v2370 = vrot.slane %v2369, 1
    %v2371 = vmax.f32 %v2369, %v2370
    %v2372 = vsub.f32 %v2354, %v2371
    %v2373 = vsub.f32 %v2359, %v2371
    %v2374 = vmul.f32 %v2372, 1.442695
    %v2375 = vpow.pop %v2374
    %v2376 = vmul.f32 %v2373, 1.442695
    %v2377 = vpow.pop %v2376
    %2379 = vset.pattern.permute.xlu0 0
    %2380 = vperm.xlu0 %2379, %v2375
    %v2381 = vpop.permute.xlu0 %2380
    %2384 = vset.pattern.permute.xlu0 0
    %2385 = vperm.xlu0 %2384, %v2377
    %v2386 = vpop.permute.xlu0 %2385
    %v2388 = vmul.f32 %v2381, %v2256
    %v2389 = vmul.f32 %v2386, %v2257
    %2392 = vrot.lane.b32.xlu0 %v2388, 1
    %v2393 = vpop.permute.xlu0 %2392
    %2394 = vrot.lane.b32.xlu0 %v2389, 1
    %v2395 = vpop.permute.xlu0 %2394
    %v2398 = vsel %vm2362, %v2375, %v2393
    %v2399 = vsel %vm2362, %v2377, %v2395
    %v2401 = vsel %vm1122, %v2276, 0
    %2403 = vmatprep.subr.mxu0 0.0
    %2404 = vmatpush1.msra.mxu0 0.0
    %2405 = vmatprep.subr.mxu0 0.0
    %2406 = vmatpush1.msra.mxu0 0.0
    %2407 = vmatprep.subr.mxu0 0.0
    %2408 = vmatpush1.msra.mxu0 0.0
    %2409 = vmatprep.subr.mxu0 0.0
    %2410 = vmatpush1.msra.mxu0 0.0
    %2411 = vmatprep.subr.mxu0 0.0
    %2412 = vmatpush1.msra.mxu0 0.0
    %2413 = vmatprep.subr.mxu0 0.0
    %2414 = vmatpush1.msra.mxu0 0.0
    %2415 = vmatprep.subr.mxu0 0.0
    %2416 = vmatpush1.msra.mxu0 0.0
    %2417 = vmatprep.subr.mxu0 0.0
    %2418 = vmatpush1.msra.mxu0 0.0
    %2419 = vmatprep.subr.mxu0 0.0
    %2420 = vmatpush1.msra.mxu0 0.0
    %2421 = vmatprep.subr.mxu0 0.0
    %2422 = vmatpush1.msra.mxu0 0.0
    %2423 = vmatprep.subr.mxu0 0.0
    %2424 = vmatpush1.msra.mxu0 0.0
    %2425 = vmatprep.subr.mxu0 0.0
    %2426 = vmatpush1.msra.mxu0 0.0
    %2427 = vmatprep.subr.mxu0 0.0
    %2428 = vmatpush1.msra.mxu0 0.0
    %2429 = vmatprep.subr.mxu0 0.0
    %2430 = vmatpush1.msra.mxu0 0.0
    %2431 = vmatprep.subr.mxu0 0.0
    %2432 = vmatpush1.msra.mxu0 %v2399
    %2433 = vmatprep.subr.mxu0 0.0
    %2434 = vmatpush1.msra.mxu0 %v2398
    %2435 = vmatprep.subr.mxu0 0.0
    %2436 = vmatpush2.msra.mxu0 0.0
    %2437 = vmatprep.subr.mxu0 0.0
    %2438 = vmatpush2.msra.mxu0 0.0
    %2439 = vmatprep.subr.mxu0 0.0
    %2440 = vmatpush2.msra.mxu0 0.0
    %2441 = vmatprep.subr.mxu0 0.0
    %2442 = vmatpush2.msra.mxu0 0.0
    %2443 = vmatprep.subr.mxu0 0.0
    %2444 = vmatpush2.msra.mxu0 0.0
    %2445 = vmatprep.subr.mxu0 0.0
    %2446 = vmatpush2.msra.mxu0 0.0
    %2447 = vmatprep.subr.mxu0 0.0
    %2448 = vmatpush2.msra.mxu0 0.0
    %2449 = vmatprep.subr.mxu0 0.0
    %2450 = vmatpush2.msra.mxu0 0.0
    %2451 = vmatprep.subr.mxu0 0.0
    %2452 = vmatpush2.msra.mxu0 0.0
    %2453 = vmatprep.subr.mxu0 0.0
    %2454 = vmatpush2.msra.mxu0 0.0
    %2455 = vmatprep.subr.mxu0 0.0
    %2456 = vmatpush2.msra.mxu0 0.0
    %2457 = vmatprep.subr.mxu0 0.0
    %2458 = vmatpush2.msra.mxu0 0.0
    %2459 = vmatprep.subr.mxu0 0.0
    %2460 = vmatpush2.msra.mxu0 0.0
    %2461 = vmatprep.subr.mxu0 0.0
    %2462 = vmatpush2.msra.mxu0 0.0
    %2463 = vmatprep.subr.mxu0 0.0
    %2464 = vmatpush2.msra.mxu0 0.0
    %2465 = vmatprep.subr.mxu0 0.0
    %2466 = vmatpush2.msra.mxu0 0.0
    %2467 = vmatprep.mubr.f32.mxu0 0.0
    %2468 = vmatmul.mubr.f32.gmra.mxu0 %v2401
    %v2469 = vpop.f32.mrf.mxu0
    %v2470 = vadd.f32 0.0, %v2469
    %v2471 = vpop.f32.mrf.mxu0
    %2472 = vdwg.mxu0
    %2474 = vset.pattern.permute.xlu0 0
    %2475 = vperm.xlu0 %2474, %v2470
    %v2476 = vpop.permute.xlu0 %2475
    %v2478 = vrcp.pop %v2476
    %v2479 = vmul.f32 %v2470, %v2478
    %v2480 = vlaneseq
    %v2481 = vshrl.u32 %v2480, 7
    %v2482 = vsub.s32 0, %v2481
    %v2483 = vrot.slane %v2275, %v2482
    %2485 = vrot.lane.b32.xlu0 %v2479, 127
    %v2486 = vpop.permute.xlu0 %2485
    %v2487 = vsel %vm209, %v2486, 0
    %2489 = vmatprep.subr.mxu0 0.0
    %2490 = vmatpush1.msra.mxu0 0.0
    %2491 = vmatprep.subr.mxu0 0.0
    %2492 = vmatpush1.msra.mxu0 0.0
    %2493 = vmatprep.subr.mxu0 0.0
    %2494 = vmatpush1.msra.mxu0 0.0
    %2495 = vmatprep.subr.mxu0 0.0
    %2496 = vmatpush1.msra.mxu0 0.0
    %2497 = vmatprep.subr.mxu0 0.0
    %2498 = vmatpush1.msra.mxu0 0.0
    %2499 = vmatprep.subr.mxu0 0.0
    %2500 = vmatpush1.msra.mxu0 0.0
    %2501 = vmatprep.subr.mxu0 0.0
    %2502 = vmatpush1.msra.mxu0 0.0
    %2503 = vmatprep.subr.mxu0 0.0
    %2504 = vmatpush1.msra.mxu0 0.0
    %2505 = vmatprep.subr.mxu0 0.0
    %2506 = vmatpush1.msra.mxu0 %v2274
    %2507 = vmatprep.subr.mxu0 0.0
    %2508 = vmatpush1.msra.mxu0 %v2273
    %2509 = vmatprep.subr.mxu0 0.0
    %2510 = vmatpush1.msra.mxu0 %v2272
    %2511 = vmatprep.subr.mxu0 0.0
    %2512 = vmatpush1.msra.mxu0 %v2271
    %2513 = vmatprep.subr.mxu0 0.0
    %2514 = vmatpush1.msra.mxu0 %v2270
    %2515 = vmatprep.subr.mxu0 0.0
    %2516 = vmatpush1.msra.mxu0 %v2269
    %2517 = vmatprep.subr.mxu0 0.0
    %2518 = vmatpush1.msra.mxu0 %v2268
    %2519 = vmatprep.subr.mxu0 0.0
    %2520 = vmatpush1.msra.mxu0 %v2267
    %2521 = vmatprep.subr.mxu0 0.0
    %2522 = vmatpush2.msra.mxu0 0.0
    %2523 = vmatprep.subr.mxu0 0.0
    %2524 = vmatpush2.msra.mxu0 0.0
    %2525 = vmatprep.subr.mxu0 0.0
    %2526 = vmatpush2.msra.mxu0 0.0
    %2527 = vmatprep.subr.mxu0 0.0
    %2528 = vmatpush2.msra.mxu0 0.0
    %2529 = vmatprep.subr.mxu0 0.0
    %2530 = vmatpush2.msra.mxu0 0.0
    %2531 = vmatprep.subr.mxu0 0.0
    %2532 = vmatpush2.msra.mxu0 0.0
    %2533 = vmatprep.subr.mxu0 0.0
    %2534 = vmatpush2.msra.mxu0 0.0
    %2535 = vmatprep.subr.mxu0 0.0
    %2536 = vmatpush2.msra.mxu0 0.0
    %2537 = vmatprep.subr.mxu0 0.0
    %2538 = vmatpush2.msra.mxu0 0.0
    %2539 = vmatprep.subr.mxu0 0.0
    %2540 = vmatpush2.msra.mxu0 0.0
    %2541 = vmatprep.subr.mxu0 0.0
    %2542 = vmatpush2.msra.mxu0 0.0
    %2543 = vmatprep.subr.mxu0 0.0
    %2544 = vmatpush2.msra.mxu0 0.0
    %2545 = vmatprep.subr.mxu0 0.0
    %2546 = vmatpush2.msra.mxu0 0.0
    %2547 = vmatprep.subr.mxu0 0.0
    %2548 = vmatpush2.msra.mxu0 0.0
    %2549 = vmatprep.subr.mxu0 0.0
    %2550 = vmatpush2.msra.mxu0 0.0
    %2551 = vmatprep.subr.mxu0 0.0
    %2552 = vmatpush2.msra.mxu0 0.0
    %2553 = vmatprep.mubr.f32.mxu0 0.0
    %2554 = vmatmul.mubr.f32.gmra.mxu0 %v2487
    %v2555 = vpop.f32.mrf.mxu0
    %v2556 = vadd.f32 %v2483, %v2555
    %v2557 = vpop.f32.mrf.mxu0
    %2558 = vdwg.mxu0
    %vm2559 = vcmask 254976
    %2560 = vst.msk [vmem:[#allocation2] sm:$0x3] %vm2559, %v2556
    // Predicated region
    $region14: #{tpu_custom_call.1} parent=1 // pred_check
      _
    $region15: #{tpu_custom_call.1} parent=1 // pred_check_branch
      %2562 = sbr.rel (0) target = $region17
    $region16: #{tpu_custom_call.1} parent=1 // pred_region
      %s2564 = ssub.s32 32, 32
      %2565 = vsyncadd [#allocation3], %s2564
      %s2567 = sshll.u32 [#allocation2], 4
      %s2568 = int_to_ptr.vmem [resolvable:$true] %s2567
      %2570 = dma.vmem_to_hbm [thread:$0]  %s2568, 32, %s3, [#allocation3]
    $region17: #{tpu_custom_call.1} parent=1 // pred_fallthru
      _
    // Predicated region
    $region18: #{tpu_custom_call.1} parent=1 // pred_check
      _
    $region19: #{tpu_custom_call.1} parent=1 // pred_check_branch
      %2572 = sbr.rel (0) target = $region21
    $region20: #{tpu_custom_call.1} parent=1 // pred_region
      %2573 = dma.done [#allocation3], 32
    $region21: #{tpu_custom_call.1} parent=1 // pred_fallthru
      _
    %2574 = vsyncpa [#allocation3], 1

</llo_original>
